<compile_context>
chip_gen: v5e
topology: v5e:2x2
jax: 0.10.0
libtpu: 0.0.40
codegen_flags: <defaults>
</compile_context>

<pallas_src>
import functools

import jax
import jax.numpy as jnp
from jax.experimental import pallas as pl
from jax.experimental.pallas import tpu as pltpu


def _round_up(x, m):
    return (x + m - 1) // m * m


def _vmem_block_bytes(shape, dtype):
    """Approximate VMEM footprint of one block, including (sublane, lane) padding."""
    itemsize = jnp.dtype(dtype).itemsize
    sublane = 8 * max(4 // itemsize, 1)          # 8 rows/tile for f32, 16 for bf16
    if len(shape) == 1:
        lead, rows, cols = 1, 1, shape[0]
    else:
        rows, cols = shape[-2], shape[-1]
        lead = 1
        for d in shape[:-2]:
            lead *= d
    return lead * _round_up(rows, sublane) * _round_up(cols, 128) * itemsize


def sae_kernel(x_ref, w1_ref, b1_ref, w2_ref, b2_ref,
               w3_ref, b3_ref, w4_ref, b4_ref, o_ref):
    """Fused 4-layer MLP: 3x (linear + sigmoid) then linear.

    bf16 MXU operands, f32 accumulation / bias / sigmoid.
      x_ref : (bt, M)  f32/bf16   M = nb_movies (full array dim on the lane axis)
      w1_ref: (M, 20)  bf16       (in, out)  -> plain jnp.dot, no per-step transpose
      w2_ref: (20, 10) bf16       (in, out)
      w3_ref: (10, 20) bf16       (in, out)
      w4_ref: (20, M)  bf16       (in, out)  -> output lands directly on the lane axis
      b*_ref: (1, out) f32
    """
    x = x_ref[...].astype(jnp.bfloat16)                               # (bt, M)

    z1 = jnp.dot(x, w1_ref[...], preferred_element_type=jnp.float32)  # (bt, 20)
    h1 = jax.nn.sigmoid(z1 + b1_ref[...]).astype(jnp.bfloat16)

    z2 = jnp.dot(h1, w2_ref[...], preferred_element_type=jnp.float32)  # (bt, 10)
    h2 = jax.nn.sigmoid(z2 + b2_ref[...]).astype(jnp.bfloat16)

    z3 = jnp.dot(h2, w3_ref[...], preferred_element_type=jnp.float32)  # (bt, 20)
    h3 = jax.nn.sigmoid(z3 + b3_ref[...]).astype(jnp.bfloat16)

    out = jnp.dot(h3, w4_ref[...], preferred_element_type=jnp.float32) + b4_ref[...]
    o_ref[...] = out.astype(o_ref.dtype)                               # (bt, M)


def prepare_params(pt_params):
    """PyTorch-layout f32 params -> kernel layout (bf16 weights, (in,out), f32 biases).

    These are tiny (<=20*nb_movies) one-time transposes/casts; negligible next to x / out.
    """
    w1, b1, w2, b2, w3, b3, w4, b4 = pt_params
    bf16, f32 = jnp.bfloat16, jnp.float32
    w1k = w1.T.astype(bf16)            # (nb_movies, 20)
    w2k = w2.T.astype(bf16)            # (20, 10)
    w3k = w3.T.astype(bf16)            # (10, 20)
    w4k = w4.T.astype(bf16)            # (20, nb_movies)
    b1k = b1.reshape(1, -1).astype(f32)
    b2k = b2.reshape(1, -1).astype(f32)
    b3k = b3.reshape(1, -1).astype(f32)
    b4k = b4.reshape(1, -1).astype(f32)
    return (w1k, b1k, w2k, b2k, w3k, b3k, w4k, b4k)


def sae_forward(x, pt_params, *, batch_tile=1024, out_dtype=jnp.bfloat16):
    """SAE forward pass.  x: (B, nb_movies); returns (B, nb_movies) in out_dtype.

    No wrapper-side padding or slicing: Pallas masks the partial last batch block, and the
    lane dimension uses the full array extent (nb_movies).
    """
    B, nb_movies = x.shape

    # Batch tile: large (amortize per-step overhead), multiple of 16 (bf16 sublane packing),
    # but no larger than ceil(B/2) so the grid has >= 2 steps (v7x has 2 TensorCores).
    bt = min(_round_up(int(batch_tile), 16), _round_up(pl.cdiv(B, 2), 16))
    bt = max(bt, 16)
    grid = (pl.cdiv(B, bt),)

    params = prepare_params(pt_params)
    w1, b1, w2, b2, w3, b3, w4, b4 = params

    def rep(arr):  # small weights/biases: replicate the full tensor at every grid step
        return pl.BlockSpec(arr.shape, lambda i: (0, 0))

    in_specs = [
        pl.BlockSpec((bt, nb_movies), lambda i: (i, 0)),          # x tile
        rep(w1), rep(b1), rep(w2), rep(b2), rep(w3), rep(b3), rep(w4), rep(b4),
    ]
    out_spec = pl.BlockSpec((bt, nb_movies), lambda i: (i, 0))

    # VMEM budget: x/out blocks are double-buffered by the pipeline; 4x covers that plus
    # in-kernel temporaries (bf16 x copy, f32 pre-cast output).  Cap well under v7x's 64 MiB.
    block_bytes = (_vmem_block_bytes((bt, nb_movies), x.dtype)
                   + _vmem_block_bytes((bt, nb_movies), out_dtype)
                   + sum(_vmem_block_bytes(a.shape, a.dtype) for a in params))
    vmem_limit = int(min(4 * block_bytes + (8 << 20), 48 << 20))

    h1d, h2d = w2.shape                              # (20, 10)
    flops = 2 * B * (nb_movies * h1d + h1d * h2d + h2d * h1d + h1d * nb_movies)
    transcendentals = B * (h1d + h2d + h1d)
    bytes_accessed = (int(x.size) * x.dtype.itemsize
                      + B * nb_movies * jnp.dtype(out_dtype).itemsize
                      + sum(int(a.size) * a.dtype.itemsize for a in params))

    return pl.pallas_call(
        sae_kernel,
        out_shape=jax.ShapeDtypeStruct((B, nb_movies), out_dtype),
        grid_spec=pltpu.PrefetchScalarGridSpec(
            num_scalar_prefetch=0,
            grid=grid,
            in_specs=in_specs,
            out_specs=out_spec,
        ),
        compiler_params=pltpu.CompilerParams(
            dimension_semantics=("parallel",),       # megacore / v7x 2-TC sharding
            vmem_limit_bytes=vmem_limit,
        ),
        cost_estimate=pl.CostEstimate(
            flops=flops,
            transcendentals=transcendentals,
            bytes_accessed=bytes_accessed,
        ),
    )(x, w1, b1, w2, b2, w3, b3, w4, b4)


def init_pt_params(key, nb_movies):
    """Deterministic synthetic params in PyTorch nn.Linear layout: W (out, in), b (out,)."""
    dims = [(20, nb_movies), (10, 20), (20, 10), (nb_movies, 20)]
    params = []
    for i, (fan_out, fan_in) in enumerate(dims):
        kw, kb = jax.random.split(jax.random.fold_in(key, i))
        bound = float(1.0 / (fan_in ** 0.5))
        w = jax.random.uniform(kw, (fan_out, fan_in), jnp.float32, -bound, bound)
        b = jax.random.uniform(kb, (fan_out,), jnp.float32, -bound, bound)
        params.extend([w, b])
    return tuple(params)


def sae_reference(x, pt_params):
    """Plain-JAX reference mirroring the kernel's mixed precision:
    bf16 matmul operands, f32 accumulation / bias / sigmoid."""
    w1, b1, w2, b2, w3, b3, w4, b4 = pt_params
    bf = lambda a: a.astype(jnp.bfloat16).astype(jnp.float32)
    h = bf(jax.nn.sigmoid(bf(x) @ bf(w1).T + b1))
    h = bf(jax.nn.sigmoid(h @ bf(w2).T + b2))
    h = bf(jax.nn.sigmoid(h @ bf(w3).T + b3))
    return h @ bf(w4).T + b4


if __name__ == "__main__":
    key = jax.random.PRNGKey(0)
    B = 500          # not a multiple of the batch tile -> exercises masked last block
    NB_MOVIES = 300  # not a multiple of 128 -> exercises non-lane-aligned full-dim blocks

    kx, kp = jax.random.split(key)
    # Ratings are small non-negative ints (exact in bf16); emulate that.
    x = jax.random.randint(kx, (B, NB_MOVIES), 0, 6).astype(jnp.float32)
    pt_params = init_pt_params(kp, NB_MOVIES)

    fwd = jax.jit(functools.partial(sae_forward, batch_tile=1024))
    out = jax.block_until_ready(fwd(x, pt_params))

    assert out.shape == (B, NB_MOVIES)
    ref = sae_reference(x, pt_params)
    out_f32 = out.astype(jnp.float32)
    max_err = float(jnp.max(jnp.abs(out_f32 - ref)))
    # bf16 output store loses ~3 decimal digits vs f32; tolerance accounts for that.
    assert jnp.allclose(out_f32, ref, atol=2e-2, rtol=2e-2), \
        f"mismatch vs reference (max abs err={max_err})"

    print("KERNEL_OK")
</pallas_src>

<mosaic_0001>
module attributes {stable_mosaic.version = 11 : i64} {
  func.func @sae_kernel(%arg0: i32, %arg1: memref<256x300xf32, #tpu.memory_space<vmem>>, %arg2: memref<300x20xbf16, #tpu.memory_space<vmem>>, %arg3: memref<1x20xf32, #tpu.memory_space<vmem>>, %arg4: memref<20x10xbf16, #tpu.memory_space<vmem>>, %arg5: memref<1x10xf32, #tpu.memory_space<vmem>>, %arg6: memref<10x20xbf16, #tpu.memory_space<vmem>>, %arg7: memref<1x20xf32, #tpu.memory_space<vmem>>, %arg8: memref<20x300xbf16, #tpu.memory_space<vmem>>, %arg9: memref<1x300xf32, #tpu.memory_space<vmem>>, %arg10: memref<256x300xbf16, #tpu.memory_space<vmem>>) attributes {dimension_semantics = [#tpu.dimension_semantics<parallel>], iteration_bounds = array<i64: 2>, scalar_prefetch = 0 : i64, scratch_operands = 0 : i64, tpu.core_type = #tpu.core_type<tc>, window_params = [{transform_indices = @transform_0, window_bounds = array<i64: 256, 300>}, {pipeline_mode = #tpu.pipeline_mode<synchronous>, transform_indices = @transform_1, window_bounds = array<i64: 300, 20>}, {pipeline_mode = #tpu.pipeline_mode<synchronous>, transform_indices = @transform_2, window_bounds = array<i64: 1, 20>}, {pipeline_mode = #tpu.pipeline_mode<synchronous>, transform_indices = @transform_3, window_bounds = array<i64: 20, 10>}, {pipeline_mode = #tpu.pipeline_mode<synchronous>, transform_indices = @transform_4, window_bounds = array<i64: 1, 10>}, {pipeline_mode = #tpu.pipeline_mode<synchronous>, transform_indices = @transform_5, window_bounds = array<i64: 10, 20>}, {pipeline_mode = #tpu.pipeline_mode<synchronous>, transform_indices = @transform_6, window_bounds = array<i64: 1, 20>}, {pipeline_mode = #tpu.pipeline_mode<synchronous>, transform_indices = @transform_7, window_bounds = array<i64: 20, 300>}, {pipeline_mode = #tpu.pipeline_mode<synchronous>, transform_indices = @transform_8, window_bounds = array<i64: 1, 300>}, {transform_indices = @transform_9, window_bounds = array<i64: 256, 300>}]} {
    %c0 = arith.constant 0 : index
    %c0_0 = arith.constant 0 : index
    %0 = vector.load %arg1[%c0, %c0_0] : memref<256x300xf32, #tpu.memory_space<vmem>>, vector<256x300xf32>
    %1 = arith.truncf %0 : vector<256x300xf32> to vector<256x300xbf16>
    %c0_1 = arith.constant 0 : index
    %c0_2 = arith.constant 0 : index
    %2 = vector.load %arg2[%c0_1, %c0_2] : memref<300x20xbf16, #tpu.memory_space<vmem>>, vector<300x20xbf16>
    %cst = arith.constant dense<0.000000e+00> : vector<256x20xf32>
    %3 = tpu.matmul %1, %2, %cst {dimension_numbers = #tpu.dot_dimension_numbers<[1], [0], [0], [1], [0, 0, 1, 1], [], []>} : vector<256x300xbf16>, vector<300x20xbf16>, vector<256x20xf32> -> vector<256x20xf32>
    %c0_3 = arith.constant 0 : index
    %c0_4 = arith.constant 0 : index
    %4 = vector.load %arg3[%c0_3, %c0_4] : memref<1x20xf32, #tpu.memory_space<vmem>>, vector<1x20xf32>
    %5 = vector.broadcast %4 : vector<1x20xf32> to vector<256x20xf32>
    %6 = arith.addf %3, %5 : vector<256x20xf32>
    %7 = arith.negf %6 : vector<256x20xf32>
    %8 = math.exp %7 : vector<256x20xf32>
    %cst_5 = arith.constant 1.000000e+00 : f32
    %9 = vector.broadcast %cst_5 : f32 to vector<256x20xf32>
    %10 = arith.addf %9, %8 : vector<256x20xf32>
    %11 = arith.divf %9, %10 : vector<256x20xf32>
    %12 = arith.truncf %11 : vector<256x20xf32> to vector<256x20xbf16>
    %c0_6 = arith.constant 0 : index
    %c0_7 = arith.constant 0 : index
    %13 = vector.load %arg4[%c0_6, %c0_7] : memref<20x10xbf16, #tpu.memory_space<vmem>>, vector<20x10xbf16>
    %cst_8 = arith.constant dense<0.000000e+00> : vector<256x10xf32>
    %14 = tpu.matmul %12, %13, %cst_8 {dimension_numbers = #tpu.dot_dimension_numbers<[1], [0], [0], [1], [0, 0, 1, 1], [], []>} : vector<256x20xbf16>, vector<20x10xbf16>, vector<256x10xf32> -> vector<256x10xf32>
    %c0_9 = arith.constant 0 : index
    %c0_10 = arith.constant 0 : index
    %15 = vector.load %arg5[%c0_9, %c0_10] : memref<1x10xf32, #tpu.memory_space<vmem>>, vector<1x10xf32>
    %16 = vector.broadcast %15 : vector<1x10xf32> to vector<256x10xf32>
    %17 = arith.addf %14, %16 : vector<256x10xf32>
    %18 = arith.negf %17 : vector<256x10xf32>
    %19 = math.exp %18 : vector<256x10xf32>
    %cst_11 = arith.constant 1.000000e+00 : f32
    %20 = vector.broadcast %cst_11 : f32 to vector<256x10xf32>
    %21 = arith.addf %20, %19 : vector<256x10xf32>
    %22 = arith.divf %20, %21 : vector<256x10xf32>
    %23 = arith.truncf %22 : vector<256x10xf32> to vector<256x10xbf16>
    %c0_12 = arith.constant 0 : index
    %c0_13 = arith.constant 0 : index
    %24 = vector.load %arg6[%c0_12, %c0_13] : memref<10x20xbf16, #tpu.memory_space<vmem>>, vector<10x20xbf16>
    %cst_14 = arith.constant dense<0.000000e+00> : vector<256x20xf32>
    %25 = tpu.matmul %23, %24, %cst_14 {dimension_numbers = #tpu.dot_dimension_numbers<[1], [0], [0], [1], [0, 0, 1, 1], [], []>} : vector<256x10xbf16>, vector<10x20xbf16>, vector<256x20xf32> -> vector<256x20xf32>
    %c0_15 = arith.constant 0 : index
    %c0_16 = arith.constant 0 : index
    %26 = vector.load %arg7[%c0_15, %c0_16] : memref<1x20xf32, #tpu.memory_space<vmem>>, vector<1x20xf32>
    %27 = vector.broadcast %26 : vector<1x20xf32> to vector<256x20xf32>
    %28 = arith.addf %25, %27 : vector<256x20xf32>
    %29 = arith.negf %28 : vector<256x20xf32>
    %30 = math.exp %29 : vector<256x20xf32>
    %cst_17 = arith.constant 1.000000e+00 : f32
    %31 = vector.broadcast %cst_17 : f32 to vector<256x20xf32>
    %32 = arith.addf %31, %30 : vector<256x20xf32>
    %33 = arith.divf %31, %32 : vector<256x20xf32>
    %34 = arith.truncf %33 : vector<256x20xf32> to vector<256x20xbf16>
    %c0_18 = arith.constant 0 : index
    %c0_19 = arith.constant 0 : index
    %35 = vector.load %arg8[%c0_18, %c0_19] : memref<20x300xbf16, #tpu.memory_space<vmem>>, vector<20x300xbf16>
    %cst_20 = arith.constant dense<0.000000e+00> : vector<256x300xf32>
    %36 = tpu.matmul %34, %35, %cst_20 {dimension_numbers = #tpu.dot_dimension_numbers<[1], [0], [0], [1], [0, 0, 1, 1], [], []>} : vector<256x20xbf16>, vector<20x300xbf16>, vector<256x300xf32> -> vector<256x300xf32>
    %c0_21 = arith.constant 0 : index
    %c0_22 = arith.constant 0 : index
    %37 = vector.load %arg9[%c0_21, %c0_22] : memref<1x300xf32, #tpu.memory_space<vmem>>, vector<1x300xf32>
    %38 = vector.broadcast %37 : vector<1x300xf32> to vector<256x300xf32>
    %39 = arith.addf %36, %38 : vector<256x300xf32>
    %40 = arith.truncf %39 : vector<256x300xf32> to vector<256x300xbf16>
    %c0_23 = arith.constant 0 : index
    %c0_24 = arith.constant 0 : index
    %41 = vector.load %arg10[%c0_23, %c0_24] : memref<256x300xbf16, #tpu.memory_space<vmem>>, vector<256x300xbf16>
    tpu.vector_store %arg10[%c0_23, %c0_24], %40 {strides = array<i32>} : memref<256x300xbf16, #tpu.memory_space<vmem>>, vector<256x300xbf16>,
    return
  }
  func.func @transform_0(%arg0: i32) -> (i32, i32) {
    %c0_i32 = arith.constant 0 : i32
    %c0_i32_0 = arith.constant 0 : i32
    return %arg0, %c0_i32 : i32, i32
  }
  func.func @transform_1(%arg0: i32) -> (i32, i32) {
    %c0_i32 = arith.constant 0 : i32
    %c0_i32_0 = arith.constant 0 : i32
    %c0_i32_1 = arith.constant 0 : i32
    return %c0_i32, %c0_i32_0 : i32, i32
  }
  func.func @transform_2(%arg0: i32) -> (i32, i32) {
    %c0_i32 = arith.constant 0 : i32
    %c0_i32_0 = arith.constant 0 : i32
    %c0_i32_1 = arith.constant 0 : i32
    return %c0_i32, %c0_i32_0 : i32, i32
  }
  func.func @transform_3(%arg0: i32) -> (i32, i32) {
    %c0_i32 = arith.constant 0 : i32
    %c0_i32_0 = arith.constant 0 : i32
    %c0_i32_1 = arith.constant 0 : i32
    return %c0_i32, %c0_i32_0 : i32, i32
  }
  func.func @transform_4(%arg0: i32) -> (i32, i32) {
    %c0_i32 = arith.constant 0 : i32
    %c0_i32_0 = arith.constant 0 : i32
    %c0_i32_1 = arith.constant 0 : i32
    return %c0_i32, %c0_i32_0 : i32, i32
  }
  func.func @transform_5(%arg0: i32) -> (i32, i32) {
    %c0_i32 = arith.constant 0 : i32
    %c0_i32_0 = arith.constant 0 : i32
    %c0_i32_1 = arith.constant 0 : i32
    return %c0_i32, %c0_i32_0 : i32, i32
  }
  func.func @transform_6(%arg0: i32) -> (i32, i32) {
    %c0_i32 = arith.constant 0 : i32
    %c0_i32_0 = arith.constant 0 : i32
    %c0_i32_1 = arith.constant 0 : i32
    return %c0_i32, %c0_i32_0 : i32, i32
  }
  func.func @transform_7(%arg0: i32) -> (i32, i32) {
    %c0_i32 = arith.constant 0 : i32
    %c0_i32_0 = arith.constant 0 : i32
    %c0_i32_1 = arith.constant 0 : i32
    return %c0_i32, %c0_i32_0 : i32, i32
  }
  func.func @transform_8(%arg0: i32) -> (i32, i32) {
    %c0_i32 = arith.constant 0 : i32
    %c0_i32_0 = arith.constant 0 : i32
    %c0_i32_1 = arith.constant 0 : i32
    return %c0_i32, %c0_i32_0 : i32, i32
  }
  func.func @transform_9(%arg0: i32) -> (i32, i32) {
    %c0_i32 = arith.constant 0 : i32
    %c0_i32_0 = arith.constant 0 : i32
    return %arg0, %c0_i32 : i32, i32
  }
}

</mosaic_0001>

<llo_original>
// kernel: sae_forward.1
$region0: #{sae_forward.1}
  #allocation0 [shape = 'u32[]', space=smem, size = 0x4, offset = 0x4, fixed_abs, tag = 'smem constant byte address 0x4 - core index']
  #allocation1 [shape = 'u32[72,128]{1,0:T(1,128)}', space=vmem, size = 0x9000, scoped, tag = 'internal scratch']
  %s0 = inlined_call_operand.vmem [shape: f32[500,300], index: 0, kind: input, shape index: {}]
  %s1 = inlined_call_operand.vmem [shape: bf16[300,20], index: 1, kind: input, shape index: {}]
  %s2 = inlined_call_operand.vmem [shape: f32[1,20], index: 2, kind: input, shape index: {}]
  %s3 = inlined_call_operand.vmem [shape: bf16[20,10], index: 3, kind: input, shape index: {}]
  %s4 = inlined_call_operand.vmem [shape: f32[1,10], index: 4, kind: input, shape index: {}]
  %s5 = inlined_call_operand.vmem [shape: bf16[10,20], index: 5, kind: input, shape index: {}]
  %s6 = inlined_call_operand.vmem [shape: f32[1,20], index: 6, kind: input, shape index: {}]
  %s7 = inlined_call_operand.vmem [shape: bf16[20,300], index: 7, kind: input, shape index: {}]
  %s8 = inlined_call_operand.vmem [shape: f32[1,300], index: 8, kind: input, shape index: {}]
  %s9 = inlined_call_operand.vmem [shape: bf16[500,300], index: 9, kind: output, shape index: {}]
  %s10 = sld [smem:[#allocation0]]
  $region105: #{sae_forward.1} parent=0
    _
  %s12 = ssub.s32 1, %s10
  %s13 = scalar_select 0, %s12, %s10
  $region1: #{sae_forward.1} parent=0
    #allocation2 [shape = 'u8[393216]{0}', space=vmem, size = 0x60000, scoped, tag = 'output window, operand 0']
    loop: start=0, step=1, limit=4
    $region2: #{sae_forward.1} parent=1 // loop_pre_header
      _
    $region3: #{sae_forward.1} parent=1 // loop_header
      %s15 = sphi 0, %s19
      %p16 = scmp.ge.s32.totalorder %s15, 4
      %s25 = sphi 0, %s27
      %s28 = sphi 0, %s25
      %s29 = sphi 0, %s28
      %s45 = sphi 0, %s29
      %s49 = sphi 0, %s49
      %s51 = sphi 0, %s49
      %s52 = sphi 0, %s51
      %s66 = sphi 0, %s52
      %s70 = sphi 0, %s70
      %s72 = sphi 0, %s70
      %s73 = sphi 0, %s72
      %s87 = sphi 0, %s73
      %s91 = sphi 0, %s91
      %s93 = sphi 0, %s91
      %s94 = sphi 0, %s93
      %s108 = sphi 0, %s94
      %s112 = sphi 0, %s112
      %s114 = sphi 0, %s112
      %s115 = sphi 0, %s114
      %s129 = sphi 0, %s115
      %s133 = sphi 0, %s133
      %s135 = sphi 0, %s133
      %s136 = sphi 0, %s135
      %s150 = sphi 0, %s136
      %s154 = sphi 0, %s154
      %s156 = sphi 0, %s154
      %s157 = sphi 0, %s156
      %s171 = sphi 0, %s157
      %s175 = sphi 0, %s175
      %s177 = sphi 0, %s175
      %s178 = sphi 0, %s177
      %s192 = sphi 0, %s178
      %s196 = sphi 0, %s196
      %s198 = sphi 0, %s196
      %s199 = sphi 0, %s198
      %s213 = sphi 0, %s199
      %s219 = sphi 0, %s221
      %s222 = sphi 0, %s219
      %s223 = sphi 0, %s222
      %s239 = sphi 0, %s223
    $region4: #{sae_forward.1} parent=1 // loop_header_branch
      %18 = sbr.rel (%p16) target = $region8
    $region5: #{sae_forward.1} parent=1 // loop_body
      %s20 = ssub.s32 %s15, 1
      %s21 = ssub.s32 %s15, 2
      %s22 = sadd.s32 %s15, 1
      %s23 = ssub.s32 %s15, %s22
      %p24 = scmp.eq.s32.totalorder %s23, 0
      %s26 = sadd.s32 %s25, 1
      %s27 = scalar_select %p24, %s25, %s26
      %p30 = pneg %p24
      %p31 = scmp.eq.s32.totalorder %s15, 1
      %p32 = por %p30, %p31
      %p33 = scmp.ne.s32.totalorder %s25, %s28
      %p34 = scmp.eq.s32.totalorder %s15, 0
      %p35 = por %p33, %p34
      %p36 = scmp.ne.s32.totalorder %s25, %s28
      %p37 = scmp.eq.s32.totalorder %s20, 1
      %p38 = por %p36, %p37
      %p39 = scmp.ne.s32.totalorder %s28, %s29
      %p40 = scmp.eq.s32.totalorder %s20, 0
      %p41 = por %p39, %p40
      %p42 = scmp.ne.s32.totalorder %s28, %s29
      %p43 = scmp.eq.s32.totalorder %s21, 1
      %p44 = por %p42, %p43
      %p46 = scmp.ne.s32.totalorder %s29, %s45
      %p47 = scmp.eq.s32.totalorder %s21, 0
      %p48 = por %p46, %p47
      %s50 = sadd.s32 %s49, 1
      %p53 = scmp.eq.s32.totalorder %s15, 1
      %p54 = scmp.ne.s32.totalorder %s49, %s51
      %p55 = scmp.eq.s32.totalorder %s15, 0
      %p56 = por %p54, %p55
      %p57 = scmp.ne.s32.totalorder %s49, %s51
      %p58 = scmp.eq.s32.totalorder %s20, 1
      %p59 = por %p57, %p58
      %p60 = scmp.ne.s32.totalorder %s51, %s52
      %p61 = scmp.eq.s32.totalorder %s20, 0
      %p62 = por %p60, %p61
      %p63 = scmp.ne.s32.totalorder %s51, %s52
      %p64 = scmp.eq.s32.totalorder %s21, 1
      %p65 = por %p63, %p64
      %p67 = scmp.ne.s32.totalorder %s52, %s66
      %p68 = scmp.eq.s32.totalorder %s21, 0
      %p69 = por %p67, %p68
      %s71 = sadd.s32 %s70, 1
      %p74 = scmp.eq.s32.totalorder %s15, 1
      %p75 = scmp.ne.s32.totalorder %s70, %s72
      %p76 = scmp.eq.s32.totalorder %s15, 0
      %p77 = por %p75, %p76
      %p78 = scmp.ne.s32.totalorder %s70, %s72
      %p79 = scmp.eq.s32.totalorder %s20, 1
      %p80 = por %p78, %p79
      %p81 = scmp.ne.s32.totalorder %s72, %s73
      %p82 = scmp.eq.s32.totalorder %s20, 0
      %p83 = por %p81, %p82
      %p84 = scmp.ne.s32.totalorder %s72, %s73
      %p85 = scmp.eq.s32.totalorder %s21, 1
      %p86 = por %p84, %p85
      %p88 = scmp.ne.s32.totalorder %s73, %s87
      %p89 = scmp.eq.s32.totalorder %s21, 0
      %p90 = por %p88, %p89
      %s92 = sadd.s32 %s91, 1
      %p95 = scmp.eq.s32.totalorder %s15, 1
      %p96 = scmp.ne.s32.totalorder %s91, %s93
      %p97 = scmp.eq.s32.totalorder %s15, 0
      %p98 = por %p96, %p97
      %p99 = scmp.ne.s32.totalorder %s91, %s93
      %p100 = scmp.eq.s32.totalorder %s20, 1
      %p101 = por %p99, %p100
      %p102 = scmp.ne.s32.totalorder %s93, %s94
      %p103 = scmp.eq.s32.totalorder %s20, 0
      %p104 = por %p102, %p103
      %p105 = scmp.ne.s32.totalorder %s93, %s94
      %p106 = scmp.eq.s32.totalorder %s21, 1
      %p107 = por %p105, %p106
      %p109 = scmp.ne.s32.totalorder %s94, %s108
      %p110 = scmp.eq.s32.totalorder %s21, 0
      %p111 = por %p109, %p110
      %s113 = sadd.s32 %s112, 1
      %p116 = scmp.eq.s32.totalorder %s15, 1
      %p117 = scmp.ne.s32.totalorder %s112, %s114
      %p118 = scmp.eq.s32.totalorder %s15, 0
      %p119 = por %p117, %p118
      %p120 = scmp.ne.s32.totalorder %s112, %s114
      %p121 = scmp.eq.s32.totalorder %s20, 1
      %p122 = por %p120, %p121
      %p123 = scmp.ne.s32.totalorder %s114, %s115
      %p124 = scmp.eq.s32.totalorder %s20, 0
      %p125 = por %p123, %p124
      %p126 = scmp.ne.s32.totalorder %s114, %s115
      %p127 = scmp.eq.s32.totalorder %s21, 1
      %p128 = por %p126, %p127
      %p130 = scmp.ne.s32.totalorder %s115, %s129
      %p131 = scmp.eq.s32.totalorder %s21, 0
      %p132 = por %p130, %p131
      %s134 = sadd.s32 %s133, 1
      %p137 = scmp.eq.s32.totalorder %s15, 1
      %p138 = scmp.ne.s32.totalorder %s133, %s135
      %p139 = scmp.eq.s32.totalorder %s15, 0
      %p140 = por %p138, %p139
      %p141 = scmp.ne.s32.totalorder %s133, %s135
      %p142 = scmp.eq.s32.totalorder %s20, 1
      %p143 = por %p141, %p142
      %p144 = scmp.ne.s32.totalorder %s135, %s136
      %p145 = scmp.eq.s32.totalorder %s20, 0
      %p146 = por %p144, %p145
      %p147 = scmp.ne.s32.totalorder %s135, %s136
      %p148 = scmp.eq.s32.totalorder %s21, 1
      %p149 = por %p147, %p148
      %p151 = scmp.ne.s32.totalorder %s136, %s150
      %p152 = scmp.eq.s32.totalorder %s21, 0
      %p153 = por %p151, %p152
      %s155 = sadd.s32 %s154, 1
      %p158 = scmp.eq.s32.totalorder %s15, 1
      %p159 = scmp.ne.s32.totalorder %s154, %s156
      %p160 = scmp.eq.s32.totalorder %s15, 0
      %p161 = por %p159, %p160
      %p162 = scmp.ne.s32.totalorder %s154, %s156
      %p163 = scmp.eq.s32.totalorder %s20, 1
      %p164 = por %p162, %p163
      %p165 = scmp.ne.s32.totalorder %s156, %s157
      %p166 = scmp.eq.s32.totalorder %s20, 0
      %p167 = por %p165, %p166
      %p168 = scmp.ne.s32.totalorder %s156, %s157
      %p169 = scmp.eq.s32.totalorder %s21, 1
      %p170 = por %p168, %p169
      %p172 = scmp.ne.s32.totalorder %s157, %s171
      %p173 = scmp.eq.s32.totalorder %s21, 0
      %p174 = por %p172, %p173
      %s176 = sadd.s32 %s175, 1
      %p179 = scmp.eq.s32.totalorder %s15, 1
      %p180 = scmp.ne.s32.totalorder %s175, %s177
      %p181 = scmp.eq.s32.totalorder %s15, 0
      %p182 = por %p180, %p181
      %p183 = scmp.ne.s32.totalorder %s175, %s177
      %p184 = scmp.eq.s32.totalorder %s20, 1
      %p185 = por %p183, %p184
      %p186 = scmp.ne.s32.totalorder %s177, %s178
      %p187 = scmp.eq.s32.totalorder %s20, 0
      %p188 = por %p186, %p187
      %p189 = scmp.ne.s32.totalorder %s177, %s178
      %p190 = scmp.eq.s32.totalorder %s21, 1
      %p191 = por %p189, %p190
      %p193 = scmp.ne.s32.totalorder %s178, %s192
      %p194 = scmp.eq.s32.totalorder %s21, 0
      %p195 = por %p193, %p194
      %s197 = sadd.s32 %s196, 1
      %p200 = scmp.eq.s32.totalorder %s15, 1
      %p201 = scmp.ne.s32.totalorder %s196, %s198
      %p202 = scmp.eq.s32.totalorder %s15, 0
      %p203 = por %p201, %p202
      %p204 = scmp.ne.s32.totalorder %s196, %s198
      %p205 = scmp.eq.s32.totalorder %s20, 1
      %p206 = por %p204, %p205
      %p207 = scmp.ne.s32.totalorder %s198, %s199
      %p208 = scmp.eq.s32.totalorder %s20, 0
      %p209 = por %p207, %p208
      %p210 = scmp.ne.s32.totalorder %s198, %s199
      %p211 = scmp.eq.s32.totalorder %s21, 1
      %p212 = por %p210, %p211
      %p214 = scmp.ne.s32.totalorder %s199, %s213
      %p215 = scmp.eq.s32.totalorder %s21, 0
      %p216 = por %p214, %p215
      %s217 = ssub.s32 %s15, %s22
      %p218 = scmp.eq.s32.totalorder %s217, 0
      %s220 = sadd.s32 %s219, 1
      %s221 = scalar_select %p218, %s219, %s220
      %p224 = pneg %p218
      %p225 = scmp.eq.s32.totalorder %s15, 1
      %p226 = por %p224, %p225
      %p227 = scmp.ne.s32.totalorder %s219, %s222
      %p228 = scmp.eq.s32.totalorder %s15, 0
      %p229 = por %p227, %p228
      %p230 = scmp.ne.s32.totalorder %s219, %s222
      %p231 = scmp.eq.s32.totalorder %s20, 1
      %p232 = por %p230, %p231
      %p233 = scmp.ne.s32.totalorder %s222, %s223
      %p234 = scmp.eq.s32.totalorder %s20, 0
      %p235 = por %p233, %p234
      %p236 = scmp.ne.s32.totalorder %s222, %s223
      %p237 = scmp.eq.s32.totalorder %s21, 1
      %p238 = por %p236, %p237
      %p240 = scmp.ne.s32.totalorder %s223, %s239
      %p241 = scmp.eq.s32.totalorder %s21, 0
      %p242 = por %p240, %p241
      %p243 = scmp.le.s32.totalorder 1, %s15
      %p244 = scmp.lt.s32.totalorder %s15, 3
      %p245 = pnand %p243, %p244
      %p246 = pneg %p245
      // Predicated region
      $region9: #{sae_forward.1} parent=5 // pred_check
        _
      $region10: #{sae_forward.1} parent=5 // pred_check_branch
        %248 = sbr.rel (%p245) target = $region12
      $region11: #{sae_forward.1} parent=5 // pred_region
        %s249 = ssub.s32 %s15, 1
        // Predicated region
        $region13: #{sae_forward.1} parent=11 // pred_check
          %p250 = pneg %p62
        $region14: #{sae_forward.1} parent=11 // pred_check_branch
          %252 = sbr.rel (%p250) target = $region16
        $region15: #{sae_forward.1} parent=11 // pred_region
          _
        $region16: #{sae_forward.1} parent=11 // pred_fallthru
          _
        // Predicated region
        $region17: #{sae_forward.1} parent=11 // pred_check
          %p253 = pneg %p83
        $region18: #{sae_forward.1} parent=11 // pred_check_branch
          %255 = sbr.rel (%p253) target = $region20
        $region19: #{sae_forward.1} parent=11 // pred_region
          _
        $region20: #{sae_forward.1} parent=11 // pred_fallthru
          _
        // Predicated region
        $region21: #{sae_forward.1} parent=11 // pred_check
          %p256 = pneg %p104
        $region22: #{sae_forward.1} parent=11 // pred_check_branch
          %258 = sbr.rel (%p256) target = $region24
        $region23: #{sae_forward.1} parent=11 // pred_region
          _
        $region24: #{sae_forward.1} parent=11 // pred_fallthru
          _
        // Predicated region
        $region25: #{sae_forward.1} parent=11 // pred_check
          %p259 = pneg %p125
        $region26: #{sae_forward.1} parent=11 // pred_check_branch
          %261 = sbr.rel (%p259) target = $region28
        $region27: #{sae_forward.1} parent=11 // pred_region
          _
        $region28: #{sae_forward.1} parent=11 // pred_fallthru
          _
        // Predicated region
        $region29: #{sae_forward.1} parent=11 // pred_check
          %p262 = pneg %p146
        $region30: #{sae_forward.1} parent=11 // pred_check_branch
          %264 = sbr.rel (%p262) target = $region32
        $region31: #{sae_forward.1} parent=11 // pred_region
          _
        $region32: #{sae_forward.1} parent=11 // pred_fallthru
          _
        // Predicated region
        $region33: #{sae_forward.1} parent=11 // pred_check
          %p265 = pneg %p167
        $region34: #{sae_forward.1} parent=11 // pred_check_branch
          %267 = sbr.rel (%p265) target = $region36
        $region35: #{sae_forward.1} parent=11 // pred_region
          _
        $region36: #{sae_forward.1} parent=11 // pred_fallthru
          _
        // Predicated region
        $region37: #{sae_forward.1} parent=11 // pred_check
          %p268 = pneg %p188
        $region38: #{sae_forward.1} parent=11 // pred_check_branch
          %270 = sbr.rel (%p268) target = $region40
        $region39: #{sae_forward.1} parent=11 // pred_region
          _
        $region40: #{sae_forward.1} parent=11 // pred_fallthru
          _
        // Predicated region
        $region41: #{sae_forward.1} parent=11 // pred_check
          %p271 = pneg %p209
        $region42: #{sae_forward.1} parent=11 // pred_check_branch
          %273 = sbr.rel (%p271) target = $region44
        $region43: #{sae_forward.1} parent=11 // pred_region
          _
        $region44: #{sae_forward.1} parent=11 // pred_fallthru
          _
      $region12: #{sae_forward.1} parent=5 // pred_fallthru
        _
      %p274 = scmp.lt.s32.totalorder %s15, 2
      // Predicated region
      $region45: #{sae_forward.1} parent=5 // pred_check
        %p275 = pneg %p274
      $region46: #{sae_forward.1} parent=5 // pred_check_branch
        %277 = sbr.rel (%p275) target = $region48
      $region47: #{sae_forward.1} parent=5 // pred_region
        // Predicated region
        $region49: #{sae_forward.1} parent=47 // pred_check
          %p278 = pneg %p35
        $region50: #{sae_forward.1} parent=47 // pred_check_branch
          %280 = sbr.rel (%p278) target = $region52
        $region51: #{sae_forward.1} parent=47 // pred_region
          %s281 = smul.u32 32, %s15
          %s282 = ssub.s32 63, %s281
          %p283 = scmp.lt.s32.totalorder %s282, 32
          %s284 = scalar_select %p283, %s282, 32
          %s285 = smul.u32 8, %s284
          %s286 = smul.u32 %s285, 3
          %p287 = scmp.lt.s32.totalorder %s281, 62
          %s288 = scalar_select %p287, %s281, 62
          %s289 = smul.addr %s288, 3
          %s290 = smul.addr %s289, 8
          %s291 = scalar_lea.vmem %s0, %s290
          %s292 = smul.u32 32, %s15
          %s293 = ssub.s32 63, %s292
          %p294 = scmp.lt.s32.totalorder %s293, 32
          %s295 = scalar_select %p294, %s293, 32
          %s296 = smul.u32 8, %s295
          %s297 = smul.u32 %s296, 3
        $region52: #{sae_forward.1} parent=47 // pred_fallthru
          _
      $region48: #{sae_forward.1} parent=5 // pred_fallthru
        _
      %p298 = scmp.le.s32.totalorder 1, %s15
      %p299 = scmp.lt.s32.totalorder %s15, 3
      %p300 = pnand %p298, %p299
      %p301 = pneg %p300
      // Predicated region
      $region53: #{sae_forward.1} parent=5 // pred_check
        _
      $region54: #{sae_forward.1} parent=5 // pred_check_branch
        %303 = sbr.rel (%p300) target = $region56
      $region55: #{sae_forward.1} parent=5 // pred_region
        %s304 = ssub.s32 %s15, 1
        %s305 = smul.u32 32, %s20
        %s306 = ssub.s32 63, %s305
        %p307 = scmp.lt.s32.totalorder %s306, 32
        %s308 = scalar_select %p307, %s306, 32
        %s309 = smul.u32 8, %s308
        %s310 = smul.u32 %s309, 3
        %p311 = scmp.lt.s32.totalorder %s305, 62
        %s312 = scalar_select %p311, %s305, 62
        %s313 = smul.addr %s312, 3
        %s314 = smul.addr %s313, 8
        %s315 = scalar_lea.vmem %s0, %s314
        %p316 = pneg %p41
        %p317 = pneg %p38
        %p318 = pneg %p62
        %p319 = pneg %p59
        %p320 = pneg %p83
        %p321 = pneg %p80
        %p322 = pneg %p104
        %p323 = pneg %p101
        %p324 = pneg %p125
        %p325 = pneg %p122
        %p326 = pneg %p146
        %p327 = pneg %p143
        %p328 = pneg %p167
        %p329 = pneg %p164
        %p330 = pneg %p188
        %p331 = pneg %p185
        %p332 = pneg %p209
        %p333 = pneg %p206
        %p334 = pneg %p235
        %p335 = pneg %p232
        %s336 = sand.u32 %s222, 1
        %s337 = sand.u32 %s222, 1
        %s338 = smul.addr %s337, 384
        %s339 = scalar_lea.vmem [#allocation2], %s338
        %s340 = smul.u32 32, %s20
        %s341 = ssub.s32 63, %s340
        %p342 = scmp.lt.s32.totalorder %s341, 32
        %s343 = scalar_select %p342, %s341, 32
        %s344 = smul.u32 8, %s343
        %s345 = smul.u32 %s344, 3
        %p346 = scmp.lt.s32.totalorder %s340, 62
        %s347 = scalar_select %p346, %s340, 62
        %s348 = smul.addr %s347, 3
        %s349 = smul.addr %s348, 8
        %s350 = scalar_lea.vmem %s0, %s349
        %s351 = smul.u32 32, %s20
        %s352 = ssub.s32 63, %s351
        %p353 = scmp.lt.s32.totalorder %s352, 32
        %s354 = scalar_select %p353, %s352, 32
        %s355 = smul.u32 8, %s354
        %s356 = smul.u32 %s355, 3
        %s357 = smul.u32 32, %s20
        %s358 = ssub.s32 63, %s357
        %p359 = scmp.lt.s32.totalorder %s358, 32
        %s360 = scalar_select %p359, %s358, 32
        %s361 = smul.u32 4, %s360
        %s362 = smul.u32 %s361, 3
        %v364 = vld [vmem:[%s350] sm:$0xff]
        %v365 = vld [vmem:[%s350 + $0x8] sm:$0xff]
        %v366 = vld [vmem:[%s350 + $0x10] sm:$0xff]
        %v367 = vld [vmem:[%s350 + $0x18] sm:$0xff]
        %v368 = vld [vmem:[%s350 + $0x20] sm:$0xff]
        %v369 = vld [vmem:[%s350 + $0x28] sm:$0xff]
        %v370 = vld [vmem:[%s350 + $0x30] sm:$0xff]
        %v371 = vld [vmem:[%s350 + $0x38] sm:$0xff]
        %v372 = vld [vmem:[%s350 + $0x40] sm:$0xff]
        %v373 = vld [vmem:[%s350 + $0x48] sm:$0xff]
        %v374 = vld [vmem:[%s350 + $0x50] sm:$0xff]
        %v375 = vld [vmem:[%s350 + $0x58] sm:$0xff]
        %v376 = vld [vmem:[%s350 + $0x60] sm:$0xff]
        %v377 = vld [vmem:[%s350 + $0x68] sm:$0xff]
        %v378 = vld [vmem:[%s350 + $0x70] sm:$0xff]
        %v379 = vld [vmem:[%s350 + $0x78] sm:$0xff]
        %v380 = vld [vmem:[%s350 + $0x80] sm:$0xff]
        %v381 = vld [vmem:[%s350 + $0x88] sm:$0xff]
        %v382 = vld [vmem:[%s350 + $0x90] sm:$0xff]
        %v383 = vld [vmem:[%s350 + $0x98] sm:$0xff]
        %v384 = vld [vmem:[%s350 + $0xa0] sm:$0xff]
        %v385 = vld [vmem:[%s350 + $0xa8] sm:$0xff]
        %v386 = vld [vmem:[%s350 + $0xb0] sm:$0xff]
        %v387 = vld [vmem:[%s350 + $0xb8] sm:$0xff]
        %v388 = vld [vmem:[%s350 + $0xc0] sm:$0xff]
        %v389 = vld [vmem:[%s350 + $0xc8] sm:$0xff]
        %v390 = vld [vmem:[%s350 + $0xd0] sm:$0xff]
        %v391 = vld [vmem:[%s350 + $0xd8] sm:$0xff]
        %v392 = vld [vmem:[%s350 + $0xe0] sm:$0xff]
        %v393 = vld [vmem:[%s350 + $0xe8] sm:$0xff]
        %v394 = vld [vmem:[%s350 + $0xf0] sm:$0xff]
        %v395 = vld [vmem:[%s350 + $0xf8] sm:$0xff]
        %v396 = vld [vmem:[%s350 + $0x100] sm:$0xff]
        %v397 = vld [vmem:[%s350 + $0x108] sm:$0xff]
        %v398 = vld [vmem:[%s350 + $0x110] sm:$0xff]
        %v399 = vld [vmem:[%s350 + $0x118] sm:$0xff]
        %v400 = vld [vmem:[%s350 + $0x120] sm:$0xff]
        %v401 = vld [vmem:[%s350 + $0x128] sm:$0xff]
        %v402 = vld [vmem:[%s350 + $0x130] sm:$0xff]
        %v403 = vld [vmem:[%s350 + $0x138] sm:$0xff]
        %v404 = vld [vmem:[%s350 + $0x140] sm:$0xff]
        %v405 = vld [vmem:[%s350 + $0x148] sm:$0xff]
        %v406 = vld [vmem:[%s350 + $0x150] sm:$0xff]
        %v407 = vld [vmem:[%s350 + $0x158] sm:$0xff]
        %v408 = vld [vmem:[%s350 + $0x160] sm:$0xff]
        %v409 = vld [vmem:[%s350 + $0x168] sm:$0xff]
        %v410 = vld [vmem:[%s350 + $0x170] sm:$0xff]
        %v411 = vld [vmem:[%s350 + $0x178] sm:$0xff]
        %v412 = vld [vmem:[%s350 + $0x180] sm:$0xff]
        %v413 = vld [vmem:[%s350 + $0x188] sm:$0xff]
        %v414 = vld [vmem:[%s350 + $0x190] sm:$0xff]
        %v415 = vld [vmem:[%s350 + $0x198] sm:$0xff]
        %v416 = vld [vmem:[%s350 + $0x1a0] sm:$0xff]
        %v417 = vld [vmem:[%s350 + $0x1a8] sm:$0xff]
        %v418 = vld [vmem:[%s350 + $0x1b0] sm:$0xff]
        %v419 = vld [vmem:[%s350 + $0x1b8] sm:$0xff]
        %v420 = vld [vmem:[%s350 + $0x1c0] sm:$0xff]
        %v421 = vld [vmem:[%s350 + $0x1c8] sm:$0xff]
        %v422 = vld [vmem:[%s350 + $0x1d0] sm:$0xff]
        %v423 = vld [vmem:[%s350 + $0x1d8] sm:$0xff]
        %v424 = vld [vmem:[%s350 + $0x1e0] sm:$0xff]
        %v425 = vld [vmem:[%s350 + $0x1e8] sm:$0xff]
        %v426 = vld [vmem:[%s350 + $0x1f0] sm:$0xff]
        %v427 = vld [vmem:[%s350 + $0x1f8] sm:$0xff]
        %v428 = vld [vmem:[%s350 + $0x200] sm:$0xff]
        %v429 = vld [vmem:[%s350 + $0x208] sm:$0xff]
        %v430 = vld [vmem:[%s350 + $0x210] sm:$0xff]
        %v431 = vld [vmem:[%s350 + $0x218] sm:$0xff]
        %v432 = vld [vmem:[%s350 + $0x220] sm:$0xff]
        %v433 = vld [vmem:[%s350 + $0x228] sm:$0xff]
        %v434 = vld [vmem:[%s350 + $0x230] sm:$0xff]
        %v435 = vld [vmem:[%s350 + $0x238] sm:$0xff]
        %v436 = vld [vmem:[%s350 + $0x240] sm:$0xff]
        %v437 = vld [vmem:[%s350 + $0x248] sm:$0xff]
        %v438 = vld [vmem:[%s350 + $0x250] sm:$0xff]
        %v439 = vld [vmem:[%s350 + $0x258] sm:$0xff]
        %v440 = vld [vmem:[%s350 + $0x260] sm:$0xff]
        %v441 = vld [vmem:[%s350 + $0x268] sm:$0xff]
        %v442 = vld [vmem:[%s350 + $0x270] sm:$0xff]
        %v443 = vld [vmem:[%s350 + $0x278] sm:$0xff]
        %v444 = vld [vmem:[%s350 + $0x280] sm:$0xff]
        %v445 = vld [vmem:[%s350 + $0x288] sm:$0xff]
        %v446 = vld [vmem:[%s350 + $0x290] sm:$0xff]
        %v447 = vld [vmem:[%s350 + $0x298] sm:$0xff]
        %v448 = vld [vmem:[%s350 + $0x2a0] sm:$0xff]
        %v449 = vld [vmem:[%s350 + $0x2a8] sm:$0xff]
        %v450 = vld [vmem:[%s350 + $0x2b0] sm:$0xff]
        %v451 = vld [vmem:[%s350 + $0x2b8] sm:$0xff]
        %v452 = vld [vmem:[%s350 + $0x2c0] sm:$0xff]
        %v453 = vld [vmem:[%s350 + $0x2c8] sm:$0xff]
        %v454 = vld [vmem:[%s350 + $0x2d0] sm:$0xff]
        %v455 = vld [vmem:[%s350 + $0x2d8] sm:$0xff]
        %v456 = vld [vmem:[%s350 + $0x2e0] sm:$0xff]
        %v457 = vld [vmem:[%s350 + $0x2e8] sm:$0xff]
        %v458 = vld [vmem:[%s350 + $0x2f0] sm:$0xff]
        %v459 = vld [vmem:[%s350 + $0x2f8] sm:$0xff]
        %v460 = vpack.c.bf16 %v367, %v364
        %v461 = vpack.c.bf16 %v368, %v365
        %v462 = vpack.c.bf16 %v369, %v366
        %v463 = vpack.c.bf16 %v373, %v370
        %v464 = vpack.c.bf16 %v374, %v371
        %v465 = vpack.c.bf16 %v375, %v372
        %v466 = vpack.c.bf16 %v379, %v376
        %v467 = vpack.c.bf16 %v380, %v377
        %v468 = vpack.c.bf16 %v381, %v378
        %v469 = vpack.c.bf16 %v385, %v382
        %v470 = vpack.c.bf16 %v386, %v383
        %v471 = vpack.c.bf16 %v387, %v384
        %v472 = vpack.c.bf16 %v391, %v388
        %v473 = vpack.c.bf16 %v392, %v389
        %v474 = vpack.c.bf16 %v393, %v390
        %v475 = vpack.c.bf16 %v397, %v394
        %v476 = vpack.c.bf16 %v398, %v395
        %v477 = vpack.c.bf16 %v399, %v396
        %v478 = vpack.c.bf16 %v403, %v400
        %v479 = vpack.c.bf16 %v404, %v401
        %v480 = vpack.c.bf16 %v405, %v402
        %v481 = vpack.c.bf16 %v409, %v406
        %v482 = vpack.c.bf16 %v410, %v407
        %v483 = vpack.c.bf16 %v411, %v408
        %v484 = vpack.c.bf16 %v415, %v412
        %v485 = vpack.c.bf16 %v416, %v413
        %v486 = vpack.c.bf16 %v417, %v414
        %v487 = vpack.c.bf16 %v421, %v418
        %v488 = vpack.c.bf16 %v422, %v419
        %v489 = vpack.c.bf16 %v423, %v420
        %v490 = vpack.c.bf16 %v427, %v424
        %v491 = vpack.c.bf16 %v428, %v425
        %v492 = vpack.c.bf16 %v429, %v426
        %v493 = vpack.c.bf16 %v433, %v430
        %v494 = vpack.c.bf16 %v434, %v431
        %v495 = vpack.c.bf16 %v435, %v432
        %v496 = vpack.c.bf16 %v439, %v436
        %v497 = vpack.c.bf16 %v440, %v437
        %v498 = vpack.c.bf16 %v441, %v438
        %v499 = vpack.c.bf16 %v445, %v442
        %v500 = vpack.c.bf16 %v446, %v443
        %v501 = vpack.c.bf16 %v447, %v444
        %v502 = vpack.c.bf16 %v451, %v448
        %v503 = vpack.c.bf16 %v452, %v449
        %v504 = vpack.c.bf16 %v453, %v450
        %v505 = vpack.c.bf16 %v457, %v454
        %v506 = vpack.c.bf16 %v458, %v455
        %v507 = vpack.c.bf16 %v459, %v456
        %v508 = vld [vmem:[%s1] sm:$0xf]
        %v509 = vld [vmem:[%s1 + $0x4] sm:$0xf]
        %v510 = vld [vmem:[%s1 + $0x8] sm:$0xf]
        %v511 = vld [vmem:[%s1 + $0xc] sm:$0xf]
        %v512 = vld [vmem:[%s1 + $0x10] sm:$0xf]
        %v513 = vld [vmem:[%s1 + $0x14] sm:$0xf]
        %v514 = vld [vmem:[%s1 + $0x18] sm:$0xf]
        %v515 = vld [vmem:[%s1 + $0x1c] sm:$0xf]
        %v516 = vld [vmem:[%s1 + $0x20] sm:$0xf]
        %v517 = vld [vmem:[%s1 + $0x24] sm:$0xf]
        %v518 = vld [vmem:[%s1 + $0x28] sm:$0xf]
        %v519 = vld [vmem:[%s1 + $0x2c] sm:$0xf]
        %v520 = vld [vmem:[%s1 + $0x30] sm:$0xf]
        %v521 = vld [vmem:[%s1 + $0x34] sm:$0xf]
        %v522 = vld [vmem:[%s1 + $0x38] sm:$0xf]
        %v523 = vld [vmem:[%s1 + $0x3c] sm:$0xf]
        %v524 = vld [vmem:[%s1 + $0x40] sm:$0xf]
        %v525 = vld [vmem:[%s1 + $0x44] sm:$0xf]
        %v526 = vld [vmem:[%s1 + $0x48] sm:$0xf]
        %v527 = vld [vmem:[%s1 + $0x4c] sm:$0xf]
        %v528 = vld [vmem:[%s1 + $0x50] sm:$0xf]
        %v529 = vld [vmem:[%s1 + $0x54] sm:$0xf]
        %v530 = vld [vmem:[%s1 + $0x58] sm:$0xf]
        %v531 = vld [vmem:[%s1 + $0x5c] sm:$0xf]
        %v532 = vld [vmem:[%s1 + $0x60] sm:$0xf]
        %v533 = vld [vmem:[%s1 + $0x64] sm:$0xf]
        %v534 = vld [vmem:[%s1 + $0x68] sm:$0xf]
        %v535 = vld [vmem:[%s1 + $0x6c] sm:$0xf]
        %v536 = vld [vmem:[%s1 + $0x70] sm:$0xf]
        %v537 = vld [vmem:[%s1 + $0x74] sm:$0xf]
        %v538 = vld [vmem:[%s1 + $0x78] sm:$0xf]
        %v539 = vld [vmem:[%s1 + $0x7c] sm:$0xf]
        %v540 = vld [vmem:[%s1 + $0x80] sm:$0xf]
        %v541 = vld [vmem:[%s1 + $0x84] sm:$0xf]
        %v542 = vld [vmem:[%s1 + $0x88] sm:$0xf]
        %v543 = vld [vmem:[%s1 + $0x8c] sm:$0xf]
        %v544 = vld [vmem:[%s1 + $0x90] sm:$0xf]
        %v545 = vld [vmem:[%s1 + $0x94] sm:$0x3]
        %v546 = vld [vmem:[%s2] sm:$0x1]
        %v548 = vperm.slane %v546, 0
        %v588 = vunpack.c.l.b16 %v508
        %v589 = vunpack.c.l.b16 %v509
        %v590 = vunpack.c.l.b16 %v510
        %v591 = vunpack.c.l.b16 %v511
        %v592 = vunpack.c.l.b16 %v512
        %v593 = vunpack.c.l.b16 %v513
        %v594 = vunpack.c.l.b16 %v514
        %v595 = vunpack.c.l.b16 %v515
        %v596 = vunpack.c.l.b16 %v516
        %v597 = vunpack.c.l.b16 %v517
        %v598 = vunpack.c.l.b16 %v518
        %v599 = vunpack.c.l.b16 %v519
        %v600 = vunpack.c.l.b16 %v520
        %v601 = vunpack.c.l.b16 %v521
        %v602 = vunpack.c.l.b16 %v522
        %v603 = vunpack.c.l.b16 %v523
        %v604 = vunpack.c.l.b16 %v524
        %v605 = vunpack.c.l.b16 %v525
        %v606 = vunpack.c.l.b16 %v526
        %v607 = vunpack.c.l.b16 %v527
        %v608 = vunpack.c.l.b16 %v528
        %v609 = vunpack.c.l.b16 %v529
        %v610 = vunpack.c.l.b16 %v530
        %v611 = vunpack.c.l.b16 %v531
        %v612 = vunpack.c.l.b16 %v532
        %v613 = vunpack.c.l.b16 %v533
        %v614 = vunpack.c.l.b16 %v534
        %v615 = vunpack.c.l.b16 %v535
        %v616 = vunpack.c.l.b16 %v536
        %v617 = vunpack.c.l.b16 %v537
        %v618 = vunpack.c.l.b16 %v538
        %v619 = vunpack.c.l.b16 %v539
        %v620 = vunpack.c.l.b16 %v540
        %v621 = vunpack.c.l.b16 %v541
        %v622 = vunpack.c.l.b16 %v542
        %v623 = vunpack.c.l.b16 %v543
        %v624 = vunpack.c.l.b16 %v544
        %v625 = vunpack.c.l.b16 %v545
        %v626 = vpack.c.b16 %v589, %v588
        %v627 = vpack.c.b16 %v591, %v590
        %v628 = vpack.c.b16 %v593, %v592
        %v629 = vpack.c.b16 %v595, %v594
        %v630 = vpack.c.b16 %v597, %v596
        %v631 = vpack.c.b16 %v599, %v598
        %v632 = vpack.c.b16 %v601, %v600
        %v633 = vpack.c.b16 %v603, %v602
        %v634 = vpack.c.b16 %v605, %v604
        %v635 = vpack.c.b16 %v607, %v606
        %v636 = vpack.c.b16 %v609, %v608
        %v637 = vpack.c.b16 %v611, %v610
        %v638 = vpack.c.b16 %v613, %v612
        %v639 = vpack.c.b16 %v615, %v614
        %v640 = vpack.c.b16 %v617, %v616
        %v641 = vpack.c.b16 %v619, %v618
        %v642 = vpack.c.b16 %v621, %v620
        %v643 = vpack.c.b16 %v623, %v622
        %v644 = vpack.c.b16 %v625, %v624
        %vm663 = vcmask 359424
        %v665 = vsel %vm663, %v462, 0
        %v668 = vsel %vm663, %v465, 0
        %v671 = vsel %vm663, %v468, 0
        %v674 = vsel %vm663, %v471, 0
        %v677 = vsel %vm663, %v474, 0
        %v680 = vsel %vm663, %v477, 0
        %v683 = vsel %vm663, %v480, 0
        %v686 = vsel %vm663, %v483, 0
        %v689 = vsel %vm663, %v486, 0
        %v692 = vsel %vm663, %v489, 0
        %v695 = vsel %vm663, %v492, 0
        %v698 = vsel %vm663, %v495, 0
        %v701 = vsel %vm663, %v498, 0
        %v704 = vsel %vm663, %v501, 0
        %v707 = vsel %vm663, %v504, 0
        %v710 = vsel %vm663, %v507, 0
        %vm712 = vcmask 1045504
        %v714 = vsel %vm712, %v644, 0
        %716 = vmatpush.bf16.msra.mxu0 %v633
        %717 = vmatpush.bf16.msra.mxu0 %v632
        %718 = vmatpush.bf16.msra.mxu0 %v631
        %719 = vmatpush.bf16.msra.mxu0 %v630
        %720 = vmatpush.bf16.msra.mxu0 %v629
        %721 = vmatpush.bf16.msra.mxu0 %v628
        %722 = vmatpush.bf16.msra.mxu0 %v627
        %723 = vmatpush.bf16.msra.mxu0 %v626
        %724 = vmatmul.bf16.gmra.mxu0 %v460
        %v725 = vpop.f32.mrf.mxu0
        %v726 = vadd.f32 %v548, %v725
        %v727 = vpop.f32.mrf.mxu0
        %v728 = vadd.f32 %v548, %v727
        %729 = vmatmul.bf16.gmra.mxu0 %v463
        %v730 = vpop.f32.mrf.mxu0
        %v731 = vadd.f32 %v548, %v730
        %v732 = vpop.f32.mrf.mxu0
        %v733 = vadd.f32 %v548, %v732
        %734 = vmatmul.bf16.gmra.mxu0 %v466
        %v735 = vpop.f32.mrf.mxu0
        %v736 = vadd.f32 %v548, %v735
        %v737 = vpop.f32.mrf.mxu0
        %v738 = vadd.f32 %v548, %v737
        %739 = vmatmul.bf16.gmra.mxu0 %v469
        %v740 = vpop.f32.mrf.mxu0
        %v741 = vadd.f32 %v548, %v740
        %v742 = vpop.f32.mrf.mxu0
        %v743 = vadd.f32 %v548, %v742
        %744 = vmatmul.bf16.gmra.mxu0 %v472
        %v745 = vpop.f32.mrf.mxu0
        %v746 = vadd.f32 %v548, %v745
        %v747 = vpop.f32.mrf.mxu0
        %v748 = vadd.f32 %v548, %v747
        %749 = vmatmul.bf16.gmra.mxu0 %v475
        %v750 = vpop.f32.mrf.mxu0
        %v751 = vadd.f32 %v548, %v750
        %v752 = vpop.f32.mrf.mxu0
        %v753 = vadd.f32 %v548, %v752
        %754 = vmatmul.bf16.gmra.mxu0 %v478
        %v755 = vpop.f32.mrf.mxu0
        %v756 = vadd.f32 %v548, %v755
        %v757 = vpop.f32.mrf.mxu0
        %v758 = vadd.f32 %v548, %v757
        %759 = vmatmul.bf16.gmra.mxu0 %v481
        %v760 = vpop.f32.mrf.mxu0
        %v761 = vadd.f32 %v548, %v760
        %v762 = vpop.f32.mrf.mxu0
        %v763 = vadd.f32 %v548, %v762
        %764 = vmatmul.bf16.gmra.mxu0 %v484
        %v765 = vpop.f32.mrf.mxu0
        %v766 = vadd.f32 %v548, %v765
        %v767 = vpop.f32.mrf.mxu0
        %v768 = vadd.f32 %v548, %v767
        %769 = vmatmul.bf16.gmra.mxu0 %v487
        %v770 = vpop.f32.mrf.mxu0
        %v771 = vadd.f32 %v548, %v770
        %v772 = vpop.f32.mrf.mxu0
        %v773 = vadd.f32 %v548, %v772
        %774 = vmatmul.bf16.gmra.mxu0 %v490
        %v775 = vpop.f32.mrf.mxu0
        %v776 = vadd.f32 %v548, %v775
        %v777 = vpop.f32.mrf.mxu0
        %v778 = vadd.f32 %v548, %v777
        %779 = vmatmul.bf16.gmra.mxu0 %v493
        %v780 = vpop.f32.mrf.mxu0
        %v781 = vadd.f32 %v548, %v780
        %v782 = vpop.f32.mrf.mxu0
        %v783 = vadd.f32 %v548, %v782
        %784 = vmatmul.bf16.gmra.mxu0 %v496
        %v785 = vpop.f32.mrf.mxu0
        %v786 = vadd.f32 %v548, %v785
        %v787 = vpop.f32.mrf.mxu0
        %v788 = vadd.f32 %v548, %v787
        %789 = vmatmul.bf16.gmra.mxu0 %v499
        %v790 = vpop.f32.mrf.mxu0
        %v791 = vadd.f32 %v548, %v790
        %v792 = vpop.f32.mrf.mxu0
        %v793 = vadd.f32 %v548, %v792
        %794 = vmatmul.bf16.gmra.mxu0 %v502
        %v795 = vpop.f32.mrf.mxu0
        %v796 = vadd.f32 %v548, %v795
        %v797 = vpop.f32.mrf.mxu0
        %v798 = vadd.f32 %v548, %v797
        %799 = vmatmul.bf16.gmra.mxu0 %v505
        %v800 = vpop.f32.mrf.mxu0
        %v801 = vadd.f32 %v548, %v800
        %v802 = vpop.f32.mrf.mxu0
        %v803 = vadd.f32 %v548, %v802
        %804 = vdwg.mxu0
        %805 = vmatpush.bf16.msra.mxu0 %v641
        %806 = vmatpush.bf16.msra.mxu0 %v640
        %807 = vmatpush.bf16.msra.mxu0 %v639
        %808 = vmatpush.bf16.msra.mxu0 %v638
        %809 = vmatpush.bf16.msra.mxu0 %v637
        %810 = vmatpush.bf16.msra.mxu0 %v636
        %811 = vmatpush.bf16.msra.mxu0 %v635
        %812 = vmatpush.bf16.msra.mxu0 %v634
        %813 = vmatmul.bf16.gmra.mxu0 %v461
        %v814 = vpop.f32.mrf.mxu0
        %v815 = vadd.f32 %v726, %v814
        %v816 = vpop.f32.mrf.mxu0
        %v817 = vadd.f32 %v728, %v816
        %818 = vmatmul.bf16.gmra.mxu0 %v464
        %v819 = vpop.f32.mrf.mxu0
        %v820 = vadd.f32 %v731, %v819
        %v821 = vpop.f32.mrf.mxu0
        %v822 = vadd.f32 %v733, %v821
        %823 = vmatmul.bf16.gmra.mxu0 %v467
        %v824 = vpop.f32.mrf.mxu0
        %v825 = vadd.f32 %v736, %v824
        %v826 = vpop.f32.mrf.mxu0
        %v827 = vadd.f32 %v738, %v826
        %828 = vmatmul.bf16.gmra.mxu0 %v470
        %v829 = vpop.f32.mrf.mxu0
        %v830 = vadd.f32 %v741, %v829
        %v831 = vpop.f32.mrf.mxu0
        %v832 = vadd.f32 %v743, %v831
        %833 = vmatmul.bf16.gmra.mxu0 %v473
        %v834 = vpop.f32.mrf.mxu0
        %v835 = vadd.f32 %v746, %v834
        %v836 = vpop.f32.mrf.mxu0
        %v837 = vadd.f32 %v748, %v836
        %838 = vmatmul.bf16.gmra.mxu0 %v476
        %v839 = vpop.f32.mrf.mxu0
        %v840 = vadd.f32 %v751, %v839
        %v841 = vpop.f32.mrf.mxu0
        %v842 = vadd.f32 %v753, %v841
        %843 = vmatmul.bf16.gmra.mxu0 %v479
        %v844 = vpop.f32.mrf.mxu0
        %v845 = vadd.f32 %v756, %v844
        %v846 = vpop.f32.mrf.mxu0
        %v847 = vadd.f32 %v758, %v846
        %848 = vmatmul.bf16.gmra.mxu0 %v482
        %v849 = vpop.f32.mrf.mxu0
        %v850 = vadd.f32 %v761, %v849
        %v851 = vpop.f32.mrf.mxu0
        %v852 = vadd.f32 %v763, %v851
        %853 = vmatmul.bf16.gmra.mxu0 %v485
        %v854 = vpop.f32.mrf.mxu0
        %v855 = vadd.f32 %v766, %v854
        %v856 = vpop.f32.mrf.mxu0
        %v857 = vadd.f32 %v768, %v856
        %858 = vmatmul.bf16.gmra.mxu0 %v488
        %v859 = vpop.f32.mrf.mxu0
        %v860 = vadd.f32 %v771, %v859
        %v861 = vpop.f32.mrf.mxu0
        %v862 = vadd.f32 %v773, %v861
        %863 = vmatmul.bf16.gmra.mxu0 %v491
        %v864 = vpop.f32.mrf.mxu0
        %v865 = vadd.f32 %v776, %v864
        %v866 = vpop.f32.mrf.mxu0
        %v867 = vadd.f32 %v778, %v866
        %868 = vmatmul.bf16.gmra.mxu0 %v494
        %v869 = vpop.f32.mrf.mxu0
        %v870 = vadd.f32 %v781, %v869
        %v871 = vpop.f32.mrf.mxu0
        %v872 = vadd.f32 %v783, %v871
        %873 = vmatmul.bf16.gmra.mxu0 %v497
        %v874 = vpop.f32.mrf.mxu0
        %v875 = vadd.f32 %v786, %v874
        %v876 = vpop.f32.mrf.mxu0
        %v877 = vadd.f32 %v788, %v876
        %878 = vmatmul.bf16.gmra.mxu0 %v500
        %v879 = vpop.f32.mrf.mxu0
        %v880 = vadd.f32 %v791, %v879
        %v881 = vpop.f32.mrf.mxu0
        %v882 = vadd.f32 %v793, %v881
        %883 = vmatmul.bf16.gmra.mxu0 %v503
        %v884 = vpop.f32.mrf.mxu0
        %v885 = vadd.f32 %v796, %v884
        %v886 = vpop.f32.mrf.mxu0
        %v887 = vadd.f32 %v798, %v886
        %888 = vmatmul.bf16.gmra.mxu0 %v506
        %v889 = vpop.f32.mrf.mxu0
        %v890 = vadd.f32 %v801, %v889
        %v891 = vpop.f32.mrf.mxu0
        %v892 = vadd.f32 %v803, %v891
        %893 = vdwg.mxu0
        %894 = vmatpush.bf16.msra.mxu0 0
        %895 = vmatpush.bf16.msra.mxu0 0
        %896 = vmatpush.bf16.msra.mxu0 0
        %897 = vmatpush.bf16.msra.mxu0 0
        %898 = vmatpush.bf16.msra.mxu0 0
        %899 = vmatpush.bf16.msra.mxu0 %v714
        %900 = vmatpush.bf16.msra.mxu0 %v643
        %901 = vmatpush.bf16.msra.mxu0 %v642
        %902 = vmatmul.bf16.gmra.mxu0 %v665
        %v903 = vpop.f32.mrf.mxu0
        %v904 = vadd.f32 %v815, %v903
        %v905 = vpop.f32.mrf.mxu0
        %v906 = vadd.f32 %v817, %v905
        %907 = vmatmul.bf16.gmra.mxu0 %v668
        %v908 = vpop.f32.mrf.mxu0
        %v909 = vadd.f32 %v820, %v908
        %v910 = vpop.f32.mrf.mxu0
        %v911 = vadd.f32 %v822, %v910
        %912 = vmatmul.bf16.gmra.mxu0 %v671
        %v913 = vpop.f32.mrf.mxu0
        %v914 = vadd.f32 %v825, %v913
        %v915 = vpop.f32.mrf.mxu0
        %v916 = vadd.f32 %v827, %v915
        %917 = vmatmul.bf16.gmra.mxu0 %v674
        %v918 = vpop.f32.mrf.mxu0
        %v919 = vadd.f32 %v830, %v918
        %v920 = vpop.f32.mrf.mxu0
        %v921 = vadd.f32 %v832, %v920
        %922 = vmatmul.bf16.gmra.mxu0 %v677
        %v923 = vpop.f32.mrf.mxu0
        %v924 = vadd.f32 %v835, %v923
        %v925 = vpop.f32.mrf.mxu0
        %v926 = vadd.f32 %v837, %v925
        %927 = vmatmul.bf16.gmra.mxu0 %v680
        %v928 = vpop.f32.mrf.mxu0
        %v929 = vadd.f32 %v840, %v928
        %v930 = vpop.f32.mrf.mxu0
        %v931 = vadd.f32 %v842, %v930
        %932 = vmatmul.bf16.gmra.mxu0 %v683
        %v933 = vpop.f32.mrf.mxu0
        %v934 = vadd.f32 %v845, %v933
        %v935 = vpop.f32.mrf.mxu0
        %v936 = vadd.f32 %v847, %v935
        %937 = vmatmul.bf16.gmra.mxu0 %v686
        %v938 = vpop.f32.mrf.mxu0
        %v939 = vadd.f32 %v850, %v938
        %v940 = vpop.f32.mrf.mxu0
        %v941 = vadd.f32 %v852, %v940
        %942 = vmatmul.bf16.gmra.mxu0 %v689
        %v943 = vpop.f32.mrf.mxu0
        %v944 = vadd.f32 %v855, %v943
        %v945 = vpop.f32.mrf.mxu0
        %v946 = vadd.f32 %v857, %v945
        %947 = vmatmul.bf16.gmra.mxu0 %v692
        %v948 = vpop.f32.mrf.mxu0
        %v949 = vadd.f32 %v860, %v948
        %v950 = vpop.f32.mrf.mxu0
        %v951 = vadd.f32 %v862, %v950
        %952 = vmatmul.bf16.gmra.mxu0 %v695
        %v953 = vpop.f32.mrf.mxu0
        %v954 = vadd.f32 %v865, %v953
        %v955 = vpop.f32.mrf.mxu0
        %v956 = vadd.f32 %v867, %v955
        %957 = vmatmul.bf16.gmra.mxu0 %v698
        %v958 = vpop.f32.mrf.mxu0
        %v959 = vadd.f32 %v870, %v958
        %v960 = vpop.f32.mrf.mxu0
        %v961 = vadd.f32 %v872, %v960
        %962 = vmatmul.bf16.gmra.mxu0 %v701
        %v963 = vpop.f32.mrf.mxu0
        %v964 = vadd.f32 %v875, %v963
        %v965 = vpop.f32.mrf.mxu0
        %v966 = vadd.f32 %v877, %v965
        %967 = vmatmul.bf16.gmra.mxu0 %v704
        %v968 = vpop.f32.mrf.mxu0
        %v969 = vadd.f32 %v880, %v968
        %v970 = vpop.f32.mrf.mxu0
        %v971 = vadd.f32 %v882, %v970
        %972 = vmatmul.bf16.gmra.mxu0 %v707
        %v973 = vpop.f32.mrf.mxu0
        %v974 = vadd.f32 %v885, %v973
        %v975 = vpop.f32.mrf.mxu0
        %v976 = vadd.f32 %v887, %v975
        %977 = vmatmul.bf16.gmra.mxu0 %v710
        %v978 = vpop.f32.mrf.mxu0
        %v979 = vadd.f32 %v890, %v978
        %v980 = vpop.f32.mrf.mxu0
        %v981 = vadd.f32 %v892, %v980
        %982 = vdwg.mxu0
        %v983 = vxor.u32 %v904, 2147483648
        %v984 = vxor.u32 %v906, 2147483648
        %v985 = vxor.u32 %v909, 2147483648
        %v986 = vxor.u32 %v911, 2147483648
        %v987 = vxor.u32 %v914, 2147483648
        %v988 = vxor.u32 %v916, 2147483648
        %v989 = vxor.u32 %v919, 2147483648
        %v990 = vxor.u32 %v921, 2147483648
        %v991 = vxor.u32 %v924, 2147483648
        %v992 = vxor.u32 %v926, 2147483648
        %v993 = vxor.u32 %v929, 2147483648
        %v994 = vxor.u32 %v931, 2147483648
        %v995 = vxor.u32 %v934, 2147483648
        %v996 = vxor.u32 %v936, 2147483648
        %v997 = vxor.u32 %v939, 2147483648
        %v998 = vxor.u32 %v941, 2147483648
        %v999 = vxor.u32 %v944, 2147483648
        %v1000 = vxor.u32 %v946, 2147483648
        %v1001 = vxor.u32 %v949, 2147483648
        %v1002 = vxor.u32 %v951, 2147483648
        %v1003 = vxor.u32 %v954, 2147483648
        %v1004 = vxor.u32 %v956, 2147483648
        %v1005 = vxor.u32 %v959, 2147483648
        %v1006 = vxor.u32 %v961, 2147483648
        %v1007 = vxor.u32 %v964, 2147483648
        %v1008 = vxor.u32 %v966, 2147483648
        %v1009 = vxor.u32 %v969, 2147483648
        %v1010 = vxor.u32 %v971, 2147483648
        %v1011 = vxor.u32 %v974, 2147483648
        %v1012 = vxor.u32 %v976, 2147483648
        %v1013 = vxor.u32 %v979, 2147483648
        %v1014 = vxor.u32 %v981, 2147483648
        %v1015 = vmul.f32 %v983, 1.442695
        %v1016 = vpow.pop %v1015
        %v1017 = vmul.f32 %v984, 1.442695
        %v1018 = vpow.pop %v1017
        %v1019 = vmul.f32 %v985, 1.442695
        %v1020 = vpow.pop %v1019
        %v1021 = vmul.f32 %v986, 1.442695
        %v1022 = vpow.pop %v1021
        %v1023 = vmul.f32 %v987, 1.442695
        %v1024 = vpow.pop %v1023
        %v1025 = vmul.f32 %v988, 1.442695
        %v1026 = vpow.pop %v1025
        %v1027 = vmul.f32 %v989, 1.442695
        %v1028 = vpow.pop %v1027
        %v1029 = vmul.f32 %v990, 1.442695
        %v1030 = vpow.pop %v1029
        %v1031 = vmul.f32 %v991, 1.442695
        %v1032 = vpow.pop %v1031
        %v1033 = vmul.f32 %v992, 1.442695
        %v1034 = vpow.pop %v1033
        %v1035 = vmul.f32 %v993, 1.442695
        %v1036 = vpow.pop %v1035
        %v1037 = vmul.f32 %v994, 1.442695
        %v1038 = vpow.pop %v1037
        %v1039 = vmul.f32 %v995, 1.442695
        %v1040 = vpow.pop %v1039
        %v1041 = vmul.f32 %v996, 1.442695
        %v1042 = vpow.pop %v1041
        %v1043 = vmul.f32 %v997, 1.442695
        %v1044 = vpow.pop %v1043
        %v1045 = vmul.f32 %v998, 1.442695
        %v1046 = vpow.pop %v1045
        %v1047 = vmul.f32 %v999, 1.442695
        %v1048 = vpow.pop %v1047
        %v1049 = vmul.f32 %v1000, 1.442695
        %v1050 = vpow.pop %v1049
        %v1051 = vmul.f32 %v1001, 1.442695
        %v1052 = vpow.pop %v1051
        %v1053 = vmul.f32 %v1002, 1.442695
        %v1054 = vpow.pop %v1053
        %v1055 = vmul.f32 %v1003, 1.442695
        %v1056 = vpow.pop %v1055
        %v1057 = vmul.f32 %v1004, 1.442695
        %v1058 = vpow.pop %v1057
        %v1059 = vmul.f32 %v1005, 1.442695
        %v1060 = vpow.pop %v1059
        %v1061 = vmul.f32 %v1006, 1.442695
        %v1062 = vpow.pop %v1061
        %v1063 = vmul.f32 %v1007, 1.442695
        %v1064 = vpow.pop %v1063
        %v1065 = vmul.f32 %v1008, 1.442695
        %v1066 = vpow.pop %v1065
        %v1067 = vmul.f32 %v1009, 1.442695
        %v1068 = vpow.pop %v1067
        %v1069 = vmul.f32 %v1010, 1.442695
        %v1070 = vpow.pop %v1069
        %v1071 = vmul.f32 %v1011, 1.442695
        %v1072 = vpow.pop %v1071
        %v1073 = vmul.f32 %v1012, 1.442695
        %v1074 = vpow.pop %v1073
        %v1075 = vmul.f32 %v1013, 1.442695
        %v1076 = vpow.pop %v1075
        %v1077 = vmul.f32 %v1014, 1.442695
        %v1078 = vpow.pop %v1077
        %v1079 = vadd.f32 %v1016, 1.0
        %v1080 = vadd.f32 %v1018, 1.0
        %v1081 = vadd.f32 %v1020, 1.0
        %v1082 = vadd.f32 %v1022, 1.0
        %v1083 = vadd.f32 %v1024, 1.0
        %v1084 = vadd.f32 %v1026, 1.0
        %v1085 = vadd.f32 %v1028, 1.0
        %v1086 = vadd.f32 %v1030, 1.0
        %v1087 = vadd.f32 %v1032, 1.0
        %v1088 = vadd.f32 %v1034, 1.0
        %v1089 = vadd.f32 %v1036, 1.0
        %v1090 = vadd.f32 %v1038, 1.0
        %v1091 = vadd.f32 %v1040, 1.0
        %v1092 = vadd.f32 %v1042, 1.0
        %v1093 = vadd.f32 %v1044, 1.0
        %v1094 = vadd.f32 %v1046, 1.0
        %v1095 = vadd.f32 %v1048, 1.0
        %v1096 = vadd.f32 %v1050, 1.0
        %v1097 = vadd.f32 %v1052, 1.0
        %v1098 = vadd.f32 %v1054, 1.0
        %v1099 = vadd.f32 %v1056, 1.0
        %v1100 = vadd.f32 %v1058, 1.0
        %v1101 = vadd.f32 %v1060, 1.0
        %v1102 = vadd.f32 %v1062, 1.0
        %v1103 = vadd.f32 %v1064, 1.0
        %v1104 = vadd.f32 %v1066, 1.0
        %v1105 = vadd.f32 %v1068, 1.0
        %v1106 = vadd.f32 %v1070, 1.0
        %v1107 = vadd.f32 %v1072, 1.0
        %v1108 = vadd.f32 %v1074, 1.0
        %v1109 = vadd.f32 %v1076, 1.0
        %v1110 = vadd.f32 %v1078, 1.0
        %v1111 = vrcp.pop %v1079
        %v1112 = vmul.f32 %v1079, %v1111
        %v1113 = vsub.f32 1.0, %v1112
        %v1114 = vmul.f32 %v1111, %v1113
        %v1115 = vadd.f32 %v1111, %v1114
        %vm1116 = vweird.f32 %v1079
        %vm1117 = vweird.f32 %v1111
        %vm1118 = vmor %vm1116, %vm1117
        %v1119 = vsel %vm1118, %v1111, %v1115
        %v1120 = vand.u32 2147483647, %v1079
        %vm1121 = vcmp.eq.f32.partialorder %v1120, 8.507059e+37
        %v1122 = vand.u32 %v1079, 2147483648
        %v1123 = vor.u32 1.1754944e-38, %v1122
        %v1124 = vsel %vm1121, %v1123, %v1119
        %v1125 = vmul.f32 1.0, %v1124
        %v1126 = vrcp.pop %v1080
        %v1127 = vmul.f32 %v1080, %v1126
        %v1128 = vsub.f32 1.0, %v1127
        %v1129 = vmul.f32 %v1126, %v1128
        %v1130 = vadd.f32 %v1126, %v1129
        %vm1131 = vweird.f32 %v1080
        %vm1132 = vweird.f32 %v1126
        %vm1133 = vmor %vm1131, %vm1132
        %v1134 = vsel %vm1133, %v1126, %v1130
        %v1135 = vand.u32 2147483647, %v1080
        %vm1136 = vcmp.eq.f32.partialorder %v1135, 8.507059e+37
        %v1137 = vand.u32 %v1080, 2147483648
        %v1138 = vor.u32 1.1754944e-38, %v1137
        %v1139 = vsel %vm1136, %v1138, %v1134
        %v1140 = vmul.f32 1.0, %v1139
        %v1141 = vrcp.pop %v1081
        %v1142 = vmul.f32 %v1081, %v1141
        %v1143 = vsub.f32 1.0, %v1142
        %v1144 = vmul.f32 %v1141, %v1143
        %v1145 = vadd.f32 %v1141, %v1144
        %vm1146 = vweird.f32 %v1081
        %vm1147 = vweird.f32 %v1141
        %vm1148 = vmor %vm1146, %vm1147
        %v1149 = vsel %vm1148, %v1141, %v1145
        %v1150 = vand.u32 2147483647, %v1081
        %vm1151 = vcmp.eq.f32.partialorder %v1150, 8.507059e+37
        %v1152 = vand.u32 %v1081, 2147483648
        %v1153 = vor.u32 1.1754944e-38, %v1152
        %v1154 = vsel %vm1151, %v1153, %v1149
        %v1155 = vmul.f32 1.0, %v1154
        %v1156 = vrcp.pop %v1082
        %v1157 = vmul.f32 %v1082, %v1156
        %v1158 = vsub.f32 1.0, %v1157
        %v1159 = vmul.f32 %v1156, %v1158
        %v1160 = vadd.f32 %v1156, %v1159
        %vm1161 = vweird.f32 %v1082
        %vm1162 = vweird.f32 %v1156
        %vm1163 = vmor %vm1161, %vm1162
        %v1164 = vsel %vm1163, %v1156, %v1160
        %v1165 = vand.u32 2147483647, %v1082
        %vm1166 = vcmp.eq.f32.partialorder %v1165, 8.507059e+37
        %v1167 = vand.u32 %v1082, 2147483648
        %v1168 = vor.u32 1.1754944e-38, %v1167
        %v1169 = vsel %vm1166, %v1168, %v1164
        %v1170 = vmul.f32 1.0, %v1169
        %v1171 = vrcp.pop %v1083
        %v1172 = vmul.f32 %v1083, %v1171
        %v1173 = vsub.f32 1.0, %v1172
        %v1174 = vmul.f32 %v1171, %v1173
        %v1175 = vadd.f32 %v1171, %v1174
        %vm1176 = vweird.f32 %v1083
        %vm1177 = vweird.f32 %v1171
        %vm1178 = vmor %vm1176, %vm1177
        %v1179 = vsel %vm1178, %v1171, %v1175
        %v1180 = vand.u32 2147483647, %v1083
        %vm1181 = vcmp.eq.f32.partialorder %v1180, 8.507059e+37
        %v1182 = vand.u32 %v1083, 2147483648
        %v1183 = vor.u32 1.1754944e-38, %v1182
        %v1184 = vsel %vm1181, %v1183, %v1179
        %v1185 = vmul.f32 1.0, %v1184
        %v1186 = vrcp.pop %v1084
        %v1187 = vmul.f32 %v1084, %v1186
        %v1188 = vsub.f32 1.0, %v1187
        %v1189 = vmul.f32 %v1186, %v1188
        %v1190 = vadd.f32 %v1186, %v1189
        %vm1191 = vweird.f32 %v1084
        %vm1192 = vweird.f32 %v1186
        %vm1193 = vmor %vm1191, %vm1192
        %v1194 = vsel %vm1193, %v1186, %v1190
        %v1195 = vand.u32 2147483647, %v1084
        %vm1196 = vcmp.eq.f32.partialorder %v1195, 8.507059e+37
        %v1197 = vand.u32 %v1084, 2147483648
        %v1198 = vor.u32 1.1754944e-38, %v1197
        %v1199 = vsel %vm1196, %v1198, %v1194
        %v1200 = vmul.f32 1.0, %v1199
        %v1201 = vrcp.pop %v1085
        %v1202 = vmul.f32 %v1085, %v1201
        %v1203 = vsub.f32 1.0, %v1202
        %v1204 = vmul.f32 %v1201, %v1203
        %v1205 = vadd.f32 %v1201, %v1204
        %vm1206 = vweird.f32 %v1085
        %vm1207 = vweird.f32 %v1201
        %vm1208 = vmor %vm1206, %vm1207
        %v1209 = vsel %vm1208, %v1201, %v1205
        %v1210 = vand.u32 2147483647, %v1085
        %vm1211 = vcmp.eq.f32.partialorder %v1210, 8.507059e+37
        %v1212 = vand.u32 %v1085, 2147483648
        %v1213 = vor.u32 1.1754944e-38, %v1212
        %v1214 = vsel %vm1211, %v1213, %v1209
        %v1215 = vmul.f32 1.0, %v1214
        %v1216 = vrcp.pop %v1086
        %v1217 = vmul.f32 %v1086, %v1216
        %v1218 = vsub.f32 1.0, %v1217
        %v1219 = vmul.f32 %v1216, %v1218
        %v1220 = vadd.f32 %v1216, %v1219
        %vm1221 = vweird.f32 %v1086
        %vm1222 = vweird.f32 %v1216
        %vm1223 = vmor %vm1221, %vm1222
        %v1224 = vsel %vm1223, %v1216, %v1220
        %v1225 = vand.u32 2147483647, %v1086
        %vm1226 = vcmp.eq.f32.partialorder %v1225, 8.507059e+37
        %v1227 = vand.u32 %v1086, 2147483648
        %v1228 = vor.u32 1.1754944e-38, %v1227
        %v1229 = vsel %vm1226, %v1228, %v1224
        %v1230 = vmul.f32 1.0, %v1229
        %v1231 = vrcp.pop %v1087
        %v1232 = vmul.f32 %v1087, %v1231
        %v1233 = vsub.f32 1.0, %v1232
        %v1234 = vmul.f32 %v1231, %v1233
        %v1235 = vadd.f32 %v1231, %v1234
        %vm1236 = vweird.f32 %v1087
        %vm1237 = vweird.f32 %v1231
        %vm1238 = vmor %vm1236, %vm1237
        %v1239 = vsel %vm1238, %v1231, %v1235
        %v1240 = vand.u32 2147483647, %v1087
        %vm1241 = vcmp.eq.f32.partialorder %v1240, 8.507059e+37
        %v1242 = vand.u32 %v1087, 2147483648
        %v1243 = vor.u32 1.1754944e-38, %v1242
        %v1244 = vsel %vm1241, %v1243, %v1239
        %v1245 = vmul.f32 1.0, %v1244
        %v1246 = vrcp.pop %v1088
        %v1247 = vmul.f32 %v1088, %v1246
        %v1248 = vsub.f32 1.0, %v1247
        %v1249 = vmul.f32 %v1246, %v1248
        %v1250 = vadd.f32 %v1246, %v1249
        %vm1251 = vweird.f32 %v1088
        %vm1252 = vweird.f32 %v1246
        %vm1253 = vmor %vm1251, %vm1252
        %v1254 = vsel %vm1253, %v1246, %v1250
        %v1255 = vand.u32 2147483647, %v1088
        %vm1256 = vcmp.eq.f32.partialorder %v1255, 8.507059e+37
        %v1257 = vand.u32 %v1088, 2147483648
        %v1258 = vor.u32 1.1754944e-38, %v1257
        %v1259 = vsel %vm1256, %v1258, %v1254
        %v1260 = vmul.f32 1.0, %v1259
        %v1261 = vrcp.pop %v1089
        %v1262 = vmul.f32 %v1089, %v1261
        %v1263 = vsub.f32 1.0, %v1262
        %v1264 = vmul.f32 %v1261, %v1263
        %v1265 = vadd.f32 %v1261, %v1264
        %vm1266 = vweird.f32 %v1089
        %vm1267 = vweird.f32 %v1261
        %vm1268 = vmor %vm1266, %vm1267
        %v1269 = vsel %vm1268, %v1261, %v1265
        %v1270 = vand.u32 2147483647, %v1089
        %vm1271 = vcmp.eq.f32.partialorder %v1270, 8.507059e+37
        %v1272 = vand.u32 %v1089, 2147483648
        %v1273 = vor.u32 1.1754944e-38, %v1272
        %v1274 = vsel %vm1271, %v1273, %v1269
        %v1275 = vmul.f32 1.0, %v1274
        %v1276 = vrcp.pop %v1090
        %v1277 = vmul.f32 %v1090, %v1276
        %v1278 = vsub.f32 1.0, %v1277
        %v1279 = vmul.f32 %v1276, %v1278
        %v1280 = vadd.f32 %v1276, %v1279
        %vm1281 = vweird.f32 %v1090
        %vm1282 = vweird.f32 %v1276
        %vm1283 = vmor %vm1281, %vm1282
        %v1284 = vsel %vm1283, %v1276, %v1280
        %v1285 = vand.u32 2147483647, %v1090
        %vm1286 = vcmp.eq.f32.partialorder %v1285, 8.507059e+37
        %v1287 = vand.u32 %v1090, 2147483648
        %v1288 = vor.u32 1.1754944e-38, %v1287
        %v1289 = vsel %vm1286, %v1288, %v1284
        %v1290 = vmul.f32 1.0, %v1289
        %v1291 = vrcp.pop %v1091
        %v1292 = vmul.f32 %v1091, %v1291
        %v1293 = vsub.f32 1.0, %v1292
        %v1294 = vmul.f32 %v1291, %v1293
        %v1295 = vadd.f32 %v1291, %v1294
        %vm1296 = vweird.f32 %v1091
        %vm1297 = vweird.f32 %v1291
        %vm1298 = vmor %vm1296, %vm1297
        %v1299 = vsel %vm1298, %v1291, %v1295
        %v1300 = vand.u32 2147483647, %v1091
        %vm1301 = vcmp.eq.f32.partialorder %v1300, 8.507059e+37
        %v1302 = vand.u32 %v1091, 2147483648
        %v1303 = vor.u32 1.1754944e-38, %v1302
        %v1304 = vsel %vm1301, %v1303, %v1299
        %v1305 = vmul.f32 1.0, %v1304
        %v1306 = vrcp.pop %v1092
        %v1307 = vmul.f32 %v1092, %v1306
        %v1308 = vsub.f32 1.0, %v1307
        %v1309 = vmul.f32 %v1306, %v1308
        %v1310 = vadd.f32 %v1306, %v1309
        %vm1311 = vweird.f32 %v1092
        %vm1312 = vweird.f32 %v1306
        %vm1313 = vmor %vm1311, %vm1312
        %v1314 = vsel %vm1313, %v1306, %v1310
        %v1315 = vand.u32 2147483647, %v1092
        %vm1316 = vcmp.eq.f32.partialorder %v1315, 8.507059e+37
        %v1317 = vand.u32 %v1092, 2147483648
        %v1318 = vor.u32 1.1754944e-38, %v1317
        %v1319 = vsel %vm1316, %v1318, %v1314
        %v1320 = vmul.f32 1.0, %v1319
        %v1321 = vrcp.pop %v1093
        %v1322 = vmul.f32 %v1093, %v1321
        %v1323 = vsub.f32 1.0, %v1322
        %v1324 = vmul.f32 %v1321, %v1323
        %v1325 = vadd.f32 %v1321, %v1324
        %vm1326 = vweird.f32 %v1093
        %vm1327 = vweird.f32 %v1321
        %vm1328 = vmor %vm1326, %vm1327
        %v1329 = vsel %vm1328, %v1321, %v1325
        %v1330 = vand.u32 2147483647, %v1093
        %vm1331 = vcmp.eq.f32.partialorder %v1330, 8.507059e+37
        %v1332 = vand.u32 %v1093, 2147483648
        %v1333 = vor.u32 1.1754944e-38, %v1332
        %v1334 = vsel %vm1331, %v1333, %v1329
        %v1335 = vmul.f32 1.0, %v1334
        %v1336 = vrcp.pop %v1094
        %v1337 = vmul.f32 %v1094, %v1336
        %v1338 = vsub.f32 1.0, %v1337
        %v1339 = vmul.f32 %v1336, %v1338
        %v1340 = vadd.f32 %v1336, %v1339
        %vm1341 = vweird.f32 %v1094
        %vm1342 = vweird.f32 %v1336
        %vm1343 = vmor %vm1341, %vm1342
        %v1344 = vsel %vm1343, %v1336, %v1340
        %v1345 = vand.u32 2147483647, %v1094
        %vm1346 = vcmp.eq.f32.partialorder %v1345, 8.507059e+37
        %v1347 = vand.u32 %v1094, 2147483648
        %v1348 = vor.u32 1.1754944e-38, %v1347
        %v1349 = vsel %vm1346, %v1348, %v1344
        %v1350 = vmul.f32 1.0, %v1349
        %v1351 = vrcp.pop %v1095
        %v1352 = vmul.f32 %v1095, %v1351
        %v1353 = vsub.f32 1.0, %v1352
        %v1354 = vmul.f32 %v1351, %v1353
        %v1355 = vadd.f32 %v1351, %v1354
        %vm1356 = vweird.f32 %v1095
        %vm1357 = vweird.f32 %v1351
        %vm1358 = vmor %vm1356, %vm1357
        %v1359 = vsel %vm1358, %v1351, %v1355
        %v1360 = vand.u32 2147483647, %v1095
        %vm1361 = vcmp.eq.f32.partialorder %v1360, 8.507059e+37
        %v1362 = vand.u32 %v1095, 2147483648
        %v1363 = vor.u32 1.1754944e-38, %v1362
        %v1364 = vsel %vm1361, %v1363, %v1359
        %v1365 = vmul.f32 1.0, %v1364
        %v1366 = vrcp.pop %v1096
        %v1367 = vmul.f32 %v1096, %v1366
        %v1368 = vsub.f32 1.0, %v1367
        %v1369 = vmul.f32 %v1366, %v1368
        %v1370 = vadd.f32 %v1366, %v1369
        %vm1371 = vweird.f32 %v1096
        %vm1372 = vweird.f32 %v1366
        %vm1373 = vmor %vm1371, %vm1372
        %v1374 = vsel %vm1373, %v1366, %v1370
        %v1375 = vand.u32 2147483647, %v1096
        %vm1376 = vcmp.eq.f32.partialorder %v1375, 8.507059e+37
        %v1377 = vand.u32 %v1096, 2147483648
        %v1378 = vor.u32 1.1754944e-38, %v1377
        %v1379 = vsel %vm1376, %v1378, %v1374
        %v1380 = vmul.f32 1.0, %v1379
        %v1381 = vrcp.pop %v1097
        %v1382 = vmul.f32 %v1097, %v1381
        %v1383 = vsub.f32 1.0, %v1382
        %v1384 = vmul.f32 %v1381, %v1383
        %v1385 = vadd.f32 %v1381, %v1384
        %vm1386 = vweird.f32 %v1097
        %vm1387 = vweird.f32 %v1381
        %vm1388 = vmor %vm1386, %vm1387
        %v1389 = vsel %vm1388, %v1381, %v1385
        %v1390 = vand.u32 2147483647, %v1097
        %vm1391 = vcmp.eq.f32.partialorder %v1390, 8.507059e+37
        %v1392 = vand.u32 %v1097, 2147483648
        %v1393 = vor.u32 1.1754944e-38, %v1392
        %v1394 = vsel %vm1391, %v1393, %v1389
        %v1395 = vmul.f32 1.0, %v1394
        %v1396 = vrcp.pop %v1098
        %v1397 = vmul.f32 %v1098, %v1396
        %v1398 = vsub.f32 1.0, %v1397
        %v1399 = vmul.f32 %v1396, %v1398
        %v1400 = vadd.f32 %v1396, %v1399
        %vm1401 = vweird.f32 %v1098
        %vm1402 = vweird.f32 %v1396
        %vm1403 = vmor %vm1401, %vm1402
        %v1404 = vsel %vm1403, %v1396, %v1400
        %v1405 = vand.u32 2147483647, %v1098
        %vm1406 = vcmp.eq.f32.partialorder %v1405, 8.507059e+37
        %v1407 = vand.u32 %v1098, 2147483648
        %v1408 = vor.u32 1.1754944e-38, %v1407
        %v1409 = vsel %vm1406, %v1408, %v1404
        %v1410 = vmul.f32 1.0, %v1409
        %v1411 = vrcp.pop %v1099
        %v1412 = vmul.f32 %v1099, %v1411
        %v1413 = vsub.f32 1.0, %v1412
        %v1414 = vmul.f32 %v1411, %v1413
        %v1415 = vadd.f32 %v1411, %v1414
        %vm1416 = vweird.f32 %v1099
        %vm1417 = vweird.f32 %v1411
        %vm1418 = vmor %vm1416, %vm1417
        %v1419 = vsel %vm1418, %v1411, %v1415
        %v1420 = vand.u32 2147483647, %v1099
        %vm1421 = vcmp.eq.f32.partialorder %v1420, 8.507059e+37
        %v1422 = vand.u32 %v1099, 2147483648
        %v1423 = vor.u32 1.1754944e-38, %v1422
        %v1424 = vsel %vm1421, %v1423, %v1419
        %v1425 = vmul.f32 1.0, %v1424
        %v1426 = vrcp.pop %v1100
        %v1427 = vmul.f32 %v1100, %v1426
        %v1428 = vsub.f32 1.0, %v1427
        %v1429 = vmul.f32 %v1426, %v1428
        %v1430 = vadd.f32 %v1426, %v1429
        %vm1431 = vweird.f32 %v1100
        %vm1432 = vweird.f32 %v1426
        %vm1433 = vmor %vm1431, %vm1432
        %v1434 = vsel %vm1433, %v1426, %v1430
        %v1435 = vand.u32 2147483647, %v1100
        %vm1436 = vcmp.eq.f32.partialorder %v1435, 8.507059e+37
        %v1437 = vand.u32 %v1100, 2147483648
        %v1438 = vor.u32 1.1754944e-38, %v1437
        %v1439 = vsel %vm1436, %v1438, %v1434
        %v1440 = vmul.f32 1.0, %v1439
        %v1441 = vrcp.pop %v1101
        %v1442 = vmul.f32 %v1101, %v1441
        %v1443 = vsub.f32 1.0, %v1442
        %v1444 = vmul.f32 %v1441, %v1443
        %v1445 = vadd.f32 %v1441, %v1444
        %vm1446 = vweird.f32 %v1101
        %vm1447 = vweird.f32 %v1441
        %vm1448 = vmor %vm1446, %vm1447
        %v1449 = vsel %vm1448, %v1441, %v1445
        %v1450 = vand.u32 2147483647, %v1101
        %vm1451 = vcmp.eq.f32.partialorder %v1450, 8.507059e+37
        %v1452 = vand.u32 %v1101, 2147483648
        %v1453 = vor.u32 1.1754944e-38, %v1452
        %v1454 = vsel %vm1451, %v1453, %v1449
        %v1455 = vmul.f32 1.0, %v1454
        %v1456 = vrcp.pop %v1102
        %v1457 = vmul.f32 %v1102, %v1456
        %v1458 = vsub.f32 1.0, %v1457
        %v1459 = vmul.f32 %v1456, %v1458
        %v1460 = vadd.f32 %v1456, %v1459
        %vm1461 = vweird.f32 %v1102
        %vm1462 = vweird.f32 %v1456
        %vm1463 = vmor %vm1461, %vm1462
        %v1464 = vsel %vm1463, %v1456, %v1460
        %v1465 = vand.u32 2147483647, %v1102
        %vm1466 = vcmp.eq.f32.partialorder %v1465, 8.507059e+37
        %v1467 = vand.u32 %v1102, 2147483648
        %v1468 = vor.u32 1.1754944e-38, %v1467
        %v1469 = vsel %vm1466, %v1468, %v1464
        %v1470 = vmul.f32 1.0, %v1469
        %v1471 = vrcp.pop %v1103
        %v1472 = vmul.f32 %v1103, %v1471
        %v1473 = vsub.f32 1.0, %v1472
        %v1474 = vmul.f32 %v1471, %v1473
        %v1475 = vadd.f32 %v1471, %v1474
        %vm1476 = vweird.f32 %v1103
        %vm1477 = vweird.f32 %v1471
        %vm1478 = vmor %vm1476, %vm1477
        %v1479 = vsel %vm1478, %v1471, %v1475
        %v1480 = vand.u32 2147483647, %v1103
        %vm1481 = vcmp.eq.f32.partialorder %v1480, 8.507059e+37
        %v1482 = vand.u32 %v1103, 2147483648
        %v1483 = vor.u32 1.1754944e-38, %v1482
        %v1484 = vsel %vm1481, %v1483, %v1479
        %v1485 = vmul.f32 1.0, %v1484
        %v1486 = vrcp.pop %v1104
        %v1487 = vmul.f32 %v1104, %v1486
        %v1488 = vsub.f32 1.0, %v1487
        %v1489 = vmul.f32 %v1486, %v1488
        %v1490 = vadd.f32 %v1486, %v1489
        %vm1491 = vweird.f32 %v1104
        %vm1492 = vweird.f32 %v1486
        %vm1493 = vmor %vm1491, %vm1492
        %v1494 = vsel %vm1493, %v1486, %v1490
        %v1495 = vand.u32 2147483647, %v1104
        %vm1496 = vcmp.eq.f32.partialorder %v1495, 8.507059e+37
        %v1497 = vand.u32 %v1104, 2147483648
        %v1498 = vor.u32 1.1754944e-38, %v1497
        %v1499 = vsel %vm1496, %v1498, %v1494
        %v1500 = vmul.f32 1.0, %v1499
        %v1501 = vrcp.pop %v1105
        %v1502 = vmul.f32 %v1105, %v1501
        %v1503 = vsub.f32 1.0, %v1502
        %v1504 = vmul.f32 %v1501, %v1503
        %v1505 = vadd.f32 %v1501, %v1504
        %vm1506 = vweird.f32 %v1105
        %vm1507 = vweird.f32 %v1501
        %vm1508 = vmor %vm1506, %vm1507
        %v1509 = vsel %vm1508, %v1501, %v1505
        %v1510 = vand.u32 2147483647, %v1105
        %vm1511 = vcmp.eq.f32.partialorder %v1510, 8.507059e+37
        %v1512 = vand.u32 %v1105, 2147483648
        %v1513 = vor.u32 1.1754944e-38, %v1512
        %v1514 = vsel %vm1511, %v1513, %v1509
        %v1515 = vmul.f32 1.0, %v1514
        %v1516 = vrcp.pop %v1106
        %v1517 = vmul.f32 %v1106, %v1516
        %v1518 = vsub.f32 1.0, %v1517
        %v1519 = vmul.f32 %v1516, %v1518
        %v1520 = vadd.f32 %v1516, %v1519
        %vm1521 = vweird.f32 %v1106
        %vm1522 = vweird.f32 %v1516
        %vm1523 = vmor %vm1521, %vm1522
        %v1524 = vsel %vm1523, %v1516, %v1520
        %v1525 = vand.u32 2147483647, %v1106
        %vm1526 = vcmp.eq.f32.partialorder %v1525, 8.507059e+37
        %v1527 = vand.u32 %v1106, 2147483648
        %v1528 = vor.u32 1.1754944e-38, %v1527
        %v1529 = vsel %vm1526, %v1528, %v1524
        %v1530 = vmul.f32 1.0, %v1529
        %v1531 = vrcp.pop %v1107
        %v1532 = vmul.f32 %v1107, %v1531
        %v1533 = vsub.f32 1.0, %v1532
        %v1534 = vmul.f32 %v1531, %v1533
        %v1535 = vadd.f32 %v1531, %v1534
        %vm1536 = vweird.f32 %v1107
        %vm1537 = vweird.f32 %v1531
        %vm1538 = vmor %vm1536, %vm1537
        %v1539 = vsel %vm1538, %v1531, %v1535
        %v1540 = vand.u32 2147483647, %v1107
        %vm1541 = vcmp.eq.f32.partialorder %v1540, 8.507059e+37
        %v1542 = vand.u32 %v1107, 2147483648
        %v1543 = vor.u32 1.1754944e-38, %v1542
        %v1544 = vsel %vm1541, %v1543, %v1539
        %v1545 = vmul.f32 1.0, %v1544
        %v1546 = vrcp.pop %v1108
        %v1547 = vmul.f32 %v1108, %v1546
        %v1548 = vsub.f32 1.0, %v1547
        %v1549 = vmul.f32 %v1546, %v1548
        %v1550 = vadd.f32 %v1546, %v1549
        %vm1551 = vweird.f32 %v1108
        %vm1552 = vweird.f32 %v1546
        %vm1553 = vmor %vm1551, %vm1552
        %v1554 = vsel %vm1553, %v1546, %v1550
        %v1555 = vand.u32 2147483647, %v1108
        %vm1556 = vcmp.eq.f32.partialorder %v1555, 8.507059e+37
        %v1557 = vand.u32 %v1108, 2147483648
        %v1558 = vor.u32 1.1754944e-38, %v1557
        %v1559 = vsel %vm1556, %v1558, %v1554
        %v1560 = vmul.f32 1.0, %v1559
        %v1561 = vrcp.pop %v1109
        %v1562 = vmul.f32 %v1109, %v1561
        %v1563 = vsub.f32 1.0, %v1562
        %v1564 = vmul.f32 %v1561, %v1563
        %v1565 = vadd.f32 %v1561, %v1564
        %vm1566 = vweird.f32 %v1109
        %vm1567 = vweird.f32 %v1561
        %vm1568 = vmor %vm1566, %vm1567
        %v1569 = vsel %vm1568, %v1561, %v1565
        %v1570 = vand.u32 2147483647, %v1109
        %vm1571 = vcmp.eq.f32.partialorder %v1570, 8.507059e+37
        %v1572 = vand.u32 %v1109, 2147483648
        %v1573 = vor.u32 1.1754944e-38, %v1572
        %v1574 = vsel %vm1571, %v1573, %v1569
        %v1575 = vmul.f32 1.0, %v1574
        %v1576 = vrcp.pop %v1110
        %v1577 = vmul.f32 %v1110, %v1576
        %v1578 = vsub.f32 1.0, %v1577
        %v1579 = vmul.f32 %v1576, %v1578
        %v1580 = vadd.f32 %v1576, %v1579
        %vm1581 = vweird.f32 %v1110
        %vm1582 = vweird.f32 %v1576
        %vm1583 = vmor %vm1581, %vm1582
        %v1584 = vsel %vm1583, %v1576, %v1580
        %v1585 = vand.u32 2147483647, %v1110
        %vm1586 = vcmp.eq.f32.partialorder %v1585, 8.507059e+37
        %v1587 = vand.u32 %v1110, 2147483648
        %v1588 = vor.u32 1.1754944e-38, %v1587
        %v1589 = vsel %vm1586, %v1588, %v1584
        %v1590 = vmul.f32 1.0, %v1589
        %v1591 = vpack.c.bf16 %v1140, %v1125
        %v1592 = vpack.c.bf16 %v1170, %v1155
        %v1593 = vpack.c.bf16 %v1200, %v1185
        %v1594 = vpack.c.bf16 %v1230, %v1215
        %v1595 = vpack.c.bf16 %v1260, %v1245
        %v1596 = vpack.c.bf16 %v1290, %v1275
        %v1597 = vpack.c.bf16 %v1320, %v1305
        %v1598 = vpack.c.bf16 %v1350, %v1335
        %v1599 = vpack.c.bf16 %v1380, %v1365
        %v1600 = vpack.c.bf16 %v1410, %v1395
        %v1601 = vpack.c.bf16 %v1440, %v1425
        %v1602 = vpack.c.bf16 %v1470, %v1455
        %v1603 = vpack.c.bf16 %v1500, %v1485
        %v1604 = vpack.c.bf16 %v1530, %v1515
        %v1605 = vpack.c.bf16 %v1560, %v1545
        %v1606 = vpack.c.bf16 %v1590, %v1575
        %v1607 = vld [vmem:[%s3] sm:$0xf]
        %v1608 = vld [vmem:[%s3 + $0x4] sm:$0xf]
        %v1609 = vld [vmem:[%s3 + $0x8] sm:$0x3]
        %v1610 = vld [vmem:[%s4] sm:$0x1]
        %v1612 = vperm.slane %v1610, 0
        %v1617 = vunpack.c.l.b16 %v1607
        %v1618 = vunpack.c.l.b16 %v1608
        %v1619 = vunpack.c.l.b16 %v1609
        %v1620 = vpack.c.b16 %v1618, %v1617
        %v1621 = vpack.c.b16 %v1619, %v1619
        %vm1623 = vcmask 162816
        %v1625 = vsel %vm1623, %v1591, 0
        %v1628 = vsel %vm1623, %v1592, 0
        %v1631 = vsel %vm1623, %v1593, 0
        %v1634 = vsel %vm1623, %v1594, 0
        %v1637 = vsel %vm1623, %v1595, 0
        %v1640 = vsel %vm1623, %v1596, 0
        %v1643 = vsel %vm1623, %v1597, 0
        %v1646 = vsel %vm1623, %v1598, 0
        %v1649 = vsel %vm1623, %v1599, 0
        %v1652 = vsel %vm1623, %v1600, 0
        %v1655 = vsel %vm1623, %v1601, 0
        %v1658 = vsel %vm1623, %v1602, 0
        %v1661 = vsel %vm1623, %v1603, 0
        %v1664 = vsel %vm1623, %v1604, 0
        %v1667 = vsel %vm1623, %v1605, 0
        %v1670 = vsel %vm1623, %v1606, 0
        %vm1672 = vcmask 1041408
        %v1674 = vsel %vm1672, %v1621, 0
        %1676 = vmatpush.bf16.msra.mxu0 0
        %1677 = vmatpush.bf16.msra.mxu0 0
        %1678 = vmatpush.bf16.msra.mxu0 0
        %1679 = vmatpush.bf16.msra.mxu0 0
        %1680 = vmatpush.bf16.msra.mxu0 0
        %1681 = vmatpush.bf16.msra.mxu0 0
        %1682 = vmatpush.bf16.msra.mxu0 %v1674
        %1683 = vmatpush.bf16.msra.mxu0 %v1620
        %1684 = vmatmul.bf16.gmra.mxu0 %v1625
        %v1685 = vpop.f32.mrf.mxu0
        %v1686 = vadd.f32 %v1612, %v1685
        %v1687 = vpop.f32.mrf.mxu0
        %v1688 = vadd.f32 %v1612, %v1687
        %1689 = vmatmul.bf16.gmra.mxu0 %v1628
        %v1690 = vpop.f32.mrf.mxu0
        %v1691 = vadd.f32 %v1612, %v1690
        %v1692 = vpop.f32.mrf.mxu0
        %v1693 = vadd.f32 %v1612, %v1692
        %1694 = vmatmul.bf16.gmra.mxu0 %v1631
        %v1695 = vpop.f32.mrf.mxu0
        %v1696 = vadd.f32 %v1612, %v1695
        %v1697 = vpop.f32.mrf.mxu0
        %v1698 = vadd.f32 %v1612, %v1697
        %1699 = vmatmul.bf16.gmra.mxu0 %v1634
        %v1700 = vpop.f32.mrf.mxu0
        %v1701 = vadd.f32 %v1612, %v1700
        %v1702 = vpop.f32.mrf.mxu0
        %v1703 = vadd.f32 %v1612, %v1702
        %1704 = vmatmul.bf16.gmra.mxu0 %v1637
        %v1705 = vpop.f32.mrf.mxu0
        %v1706 = vadd.f32 %v1612, %v1705
        %v1707 = vpop.f32.mrf.mxu0
        %v1708 = vadd.f32 %v1612, %v1707
        %1709 = vmatmul.bf16.gmra.mxu0 %v1640
        %v1710 = vpop.f32.mrf.mxu0
        %v1711 = vadd.f32 %v1612, %v1710
        %v1712 = vpop.f32.mrf.mxu0
        %v1713 = vadd.f32 %v1612, %v1712
        %1714 = vmatmul.bf16.gmra.mxu0 %v1643
        %v1715 = vpop.f32.mrf.mxu0
        %v1716 = vadd.f32 %v1612, %v1715
        %v1717 = vpop.f32.mrf.mxu0
        %v1718 = vadd.f32 %v1612, %v1717
        %1719 = vmatmul.bf16.gmra.mxu0 %v1646
        %v1720 = vpop.f32.mrf.mxu0
        %v1721 = vadd.f32 %v1612, %v1720
        %v1722 = vpop.f32.mrf.mxu0
        %v1723 = vadd.f32 %v1612, %v1722
        %1724 = vmatmul.bf16.gmra.mxu0 %v1649
        %v1725 = vpop.f32.mrf.mxu0
        %v1726 = vadd.f32 %v1612, %v1725
        %v1727 = vpop.f32.mrf.mxu0
        %v1728 = vadd.f32 %v1612, %v1727
        %1729 = vmatmul.bf16.gmra.mxu0 %v1652
        %v1730 = vpop.f32.mrf.mxu0
        %v1731 = vadd.f32 %v1612, %v1730
        %v1732 = vpop.f32.mrf.mxu0
        %v1733 = vadd.f32 %v1612, %v1732
        %1734 = vmatmul.bf16.gmra.mxu0 %v1655
        %v1735 = vpop.f32.mrf.mxu0
        %v1736 = vadd.f32 %v1612, %v1735
        %v1737 = vpop.f32.mrf.mxu0
        %v1738 = vadd.f32 %v1612, %v1737
        %1739 = vmatmul.bf16.gmra.mxu0 %v1658
        %v1740 = vpop.f32.mrf.mxu0
        %v1741 = vadd.f32 %v1612, %v1740
        %v1742 = vpop.f32.mrf.mxu0
        %v1743 = vadd.f32 %v1612, %v1742
        %1744 = vmatmul.bf16.gmra.mxu0 %v1661
        %v1745 = vpop.f32.mrf.mxu0
        %v1746 = vadd.f32 %v1612, %v1745
        %v1747 = vpop.f32.mrf.mxu0
        %v1748 = vadd.f32 %v1612, %v1747
        %1749 = vmatmul.bf16.gmra.mxu0 %v1664
        %v1750 = vpop.f32.mrf.mxu0
        %v1751 = vadd.f32 %v1612, %v1750
        %v1752 = vpop.f32.mrf.mxu0
        %v1753 = vadd.f32 %v1612, %v1752
        %1754 = vmatmul.bf16.gmra.mxu0 %v1667
        %v1755 = vpop.f32.mrf.mxu0
        %v1756 = vadd.f32 %v1612, %v1755
        %v1757 = vpop.f32.mrf.mxu0
        %v1758 = vadd.f32 %v1612, %v1757
        %1759 = vmatmul.bf16.gmra.mxu0 %v1670
        %v1760 = vpop.f32.mrf.mxu0
        %v1761 = vadd.f32 %v1612, %v1760
        %v1762 = vpop.f32.mrf.mxu0
        %v1763 = vadd.f32 %v1612, %v1762
        %1764 = vdwg.mxu0
        %v1765 = vxor.u32 %v1686, 2147483648
        %v1766 = vxor.u32 %v1688, 2147483648
        %v1767 = vxor.u32 %v1691, 2147483648
        %v1768 = vxor.u32 %v1693, 2147483648
        %v1769 = vxor.u32 %v1696, 2147483648
        %v1770 = vxor.u32 %v1698, 2147483648
        %v1771 = vxor.u32 %v1701, 2147483648
        %v1772 = vxor.u32 %v1703, 2147483648
        %v1773 = vxor.u32 %v1706, 2147483648
        %v1774 = vxor.u32 %v1708, 2147483648
        %v1775 = vxor.u32 %v1711, 2147483648
        %v1776 = vxor.u32 %v1713, 2147483648
        %v1777 = vxor.u32 %v1716, 2147483648
        %v1778 = vxor.u32 %v1718, 2147483648
        %v1779 = vxor.u32 %v1721, 2147483648
        %v1780 = vxor.u32 %v1723, 2147483648
        %v1781 = vxor.u32 %v1726, 2147483648
        %v1782 = vxor.u32 %v1728, 2147483648
        %v1783 = vxor.u32 %v1731, 2147483648
        %v1784 = vxor.u32 %v1733, 2147483648
        %v1785 = vxor.u32 %v1736, 2147483648
        %v1786 = vxor.u32 %v1738, 2147483648
        %v1787 = vxor.u32 %v1741, 2147483648
        %v1788 = vxor.u32 %v1743, 2147483648
        %v1789 = vxor.u32 %v1746, 2147483648
        %v1790 = vxor.u32 %v1748, 2147483648
        %v1791 = vxor.u32 %v1751, 2147483648
        %v1792 = vxor.u32 %v1753, 2147483648
        %v1793 = vxor.u32 %v1756, 2147483648
        %v1794 = vxor.u32 %v1758, 2147483648
        %v1795 = vxor.u32 %v1761, 2147483648
        %v1796 = vxor.u32 %v1763, 2147483648
        %v1797 = vmul.f32 %v1765, 1.442695
        %v1798 = vpow.pop %v1797
        %v1799 = vmul.f32 %v1766, 1.442695
        %v1800 = vpow.pop %v1799
        %v1801 = vmul.f32 %v1767, 1.442695
        %v1802 = vpow.pop %v1801
        %v1803 = vmul.f32 %v1768, 1.442695
        %v1804 = vpow.pop %v1803
        %v1805 = vmul.f32 %v1769, 1.442695
        %v1806 = vpow.pop %v1805
        %v1807 = vmul.f32 %v1770, 1.442695
        %v1808 = vpow.pop %v1807
        %v1809 = vmul.f32 %v1771, 1.442695
        %v1810 = vpow.pop %v1809
        %v1811 = vmul.f32 %v1772, 1.442695
        %v1812 = vpow.pop %v1811
        %v1813 = vmul.f32 %v1773, 1.442695
        %v1814 = vpow.pop %v1813
        %v1815 = vmul.f32 %v1774, 1.442695
        %v1816 = vpow.pop %v1815
        %v1817 = vmul.f32 %v1775, 1.442695
        %v1818 = vpow.pop %v1817
        %v1819 = vmul.f32 %v1776, 1.442695
        %v1820 = vpow.pop %v1819
        %v1821 = vmul.f32 %v1777, 1.442695
        %v1822 = vpow.pop %v1821
        %v1823 = vmul.f32 %v1778, 1.442695
        %v1824 = vpow.pop %v1823
        %v1825 = vmul.f32 %v1779, 1.442695
        %v1826 = vpow.pop %v1825
        %v1827 = vmul.f32 %v1780, 1.442695
        %v1828 = vpow.pop %v1827
        %v1829 = vmul.f32 %v1781, 1.442695
        %v1830 = vpow.pop %v1829
        %v1831 = vmul.f32 %v1782, 1.442695
        %v1832 = vpow.pop %v1831
        %v1833 = vmul.f32 %v1783, 1.442695
        %v1834 = vpow.pop %v1833
        %v1835 = vmul.f32 %v1784, 1.442695
        %v1836 = vpow.pop %v1835
        %v1837 = vmul.f32 %v1785, 1.442695
        %v1838 = vpow.pop %v1837
        %v1839 = vmul.f32 %v1786, 1.442695
        %v1840 = vpow.pop %v1839
        %v1841 = vmul.f32 %v1787, 1.442695
        %v1842 = vpow.pop %v1841
        %v1843 = vmul.f32 %v1788, 1.442695
        %v1844 = vpow.pop %v1843
        %v1845 = vmul.f32 %v1789, 1.442695
        %v1846 = vpow.pop %v1845
        %v1847 = vmul.f32 %v1790, 1.442695
        %v1848 = vpow.pop %v1847
        %v1849 = vmul.f32 %v1791, 1.442695
        %v1850 = vpow.pop %v1849
        %v1851 = vmul.f32 %v1792, 1.442695
        %v1852 = vpow.pop %v1851
        %v1853 = vmul.f32 %v1793, 1.442695
        %v1854 = vpow.pop %v1853
        %v1855 = vmul.f32 %v1794, 1.442695
        %v1856 = vpow.pop %v1855
        %v1857 = vmul.f32 %v1795, 1.442695
        %v1858 = vpow.pop %v1857
        %v1859 = vmul.f32 %v1796, 1.442695
        %v1860 = vpow.pop %v1859
        %v1861 = vadd.f32 %v1798, 1.0
        %v1862 = vadd.f32 %v1800, 1.0
        %v1863 = vadd.f32 %v1802, 1.0
        %v1864 = vadd.f32 %v1804, 1.0
        %v1865 = vadd.f32 %v1806, 1.0
        %v1866 = vadd.f32 %v1808, 1.0
        %v1867 = vadd.f32 %v1810, 1.0
        %v1868 = vadd.f32 %v1812, 1.0
        %v1869 = vadd.f32 %v1814, 1.0
        %v1870 = vadd.f32 %v1816, 1.0
        %v1871 = vadd.f32 %v1818, 1.0
        %v1872 = vadd.f32 %v1820, 1.0
        %v1873 = vadd.f32 %v1822, 1.0
        %v1874 = vadd.f32 %v1824, 1.0
        %v1875 = vadd.f32 %v1826, 1.0
        %v1876 = vadd.f32 %v1828, 1.0
        %v1877 = vadd.f32 %v1830, 1.0
        %v1878 = vadd.f32 %v1832, 1.0
        %v1879 = vadd.f32 %v1834, 1.0
        %v1880 = vadd.f32 %v1836, 1.0
        %v1881 = vadd.f32 %v1838, 1.0
        %v1882 = vadd.f32 %v1840, 1.0
        %v1883 = vadd.f32 %v1842, 1.0
        %v1884 = vadd.f32 %v1844, 1.0
        %v1885 = vadd.f32 %v1846, 1.0
        %v1886 = vadd.f32 %v1848, 1.0
        %v1887 = vadd.f32 %v1850, 1.0
        %v1888 = vadd.f32 %v1852, 1.0
        %v1889 = vadd.f32 %v1854, 1.0
        %v1890 = vadd.f32 %v1856, 1.0
        %v1891 = vadd.f32 %v1858, 1.0
        %v1892 = vadd.f32 %v1860, 1.0
        %v1893 = vrcp.pop %v1861
        %v1894 = vmul.f32 %v1861, %v1893
        %v1895 = vsub.f32 1.0, %v1894
        %v1896 = vmul.f32 %v1893, %v1895
        %v1897 = vadd.f32 %v1893, %v1896
        %vm1898 = vweird.f32 %v1861
        %vm1899 = vweird.f32 %v1893
        %vm1900 = vmor %vm1898, %vm1899
        %v1901 = vsel %vm1900, %v1893, %v1897
        %v1902 = vand.u32 2147483647, %v1861
        %vm1903 = vcmp.eq.f32.partialorder %v1902, 8.507059e+37
        %v1904 = vand.u32 %v1861, 2147483648
        %v1905 = vor.u32 1.1754944e-38, %v1904
        %v1906 = vsel %vm1903, %v1905, %v1901
        %v1907 = vmul.f32 1.0, %v1906
        %v1908 = vrcp.pop %v1862
        %v1909 = vmul.f32 %v1862, %v1908
        %v1910 = vsub.f32 1.0, %v1909
        %v1911 = vmul.f32 %v1908, %v1910
        %v1912 = vadd.f32 %v1908, %v1911
        %vm1913 = vweird.f32 %v1862
        %vm1914 = vweird.f32 %v1908
        %vm1915 = vmor %vm1913, %vm1914
        %v1916 = vsel %vm1915, %v1908, %v1912
        %v1917 = vand.u32 2147483647, %v1862
        %vm1918 = vcmp.eq.f32.partialorder %v1917, 8.507059e+37
        %v1919 = vand.u32 %v1862, 2147483648
        %v1920 = vor.u32 1.1754944e-38, %v1919
        %v1921 = vsel %vm1918, %v1920, %v1916
        %v1922 = vmul.f32 1.0, %v1921
        %v1923 = vrcp.pop %v1863
        %v1924 = vmul.f32 %v1863, %v1923
        %v1925 = vsub.f32 1.0, %v1924
        %v1926 = vmul.f32 %v1923, %v1925
        %v1927 = vadd.f32 %v1923, %v1926
        %vm1928 = vweird.f32 %v1863
        %vm1929 = vweird.f32 %v1923
        %vm1930 = vmor %vm1928, %vm1929
        %v1931 = vsel %vm1930, %v1923, %v1927
        %v1932 = vand.u32 2147483647, %v1863
        %vm1933 = vcmp.eq.f32.partialorder %v1932, 8.507059e+37
        %v1934 = vand.u32 %v1863, 2147483648
        %v1935 = vor.u32 1.1754944e-38, %v1934
        %v1936 = vsel %vm1933, %v1935, %v1931
        %v1937 = vmul.f32 1.0, %v1936
        %v1938 = vrcp.pop %v1864
        %v1939 = vmul.f32 %v1864, %v1938
        %v1940 = vsub.f32 1.0, %v1939
        %v1941 = vmul.f32 %v1938, %v1940
        %v1942 = vadd.f32 %v1938, %v1941
        %vm1943 = vweird.f32 %v1864
        %vm1944 = vweird.f32 %v1938
        %vm1945 = vmor %vm1943, %vm1944
        %v1946 = vsel %vm1945, %v1938, %v1942
        %v1947 = vand.u32 2147483647, %v1864
        %vm1948 = vcmp.eq.f32.partialorder %v1947, 8.507059e+37
        %v1949 = vand.u32 %v1864, 2147483648
        %v1950 = vor.u32 1.1754944e-38, %v1949
        %v1951 = vsel %vm1948, %v1950, %v1946
        %v1952 = vmul.f32 1.0, %v1951
        %v1953 = vrcp.pop %v1865
        %v1954 = vmul.f32 %v1865, %v1953
        %v1955 = vsub.f32 1.0, %v1954
        %v1956 = vmul.f32 %v1953, %v1955
        %v1957 = vadd.f32 %v1953, %v1956
        %vm1958 = vweird.f32 %v1865
        %vm1959 = vweird.f32 %v1953
        %vm1960 = vmor %vm1958, %vm1959
        %v1961 = vsel %vm1960, %v1953, %v1957
        %v1962 = vand.u32 2147483647, %v1865
        %vm1963 = vcmp.eq.f32.partialorder %v1962, 8.507059e+37
        %v1964 = vand.u32 %v1865, 2147483648
        %v1965 = vor.u32 1.1754944e-38, %v1964
        %v1966 = vsel %vm1963, %v1965, %v1961
        %v1967 = vmul.f32 1.0, %v1966
        %v1968 = vrcp.pop %v1866
        %v1969 = vmul.f32 %v1866, %v1968
        %v1970 = vsub.f32 1.0, %v1969
        %v1971 = vmul.f32 %v1968, %v1970
        %v1972 = vadd.f32 %v1968, %v1971
        %vm1973 = vweird.f32 %v1866
        %vm1974 = vweird.f32 %v1968
        %vm1975 = vmor %vm1973, %vm1974
        %v1976 = vsel %vm1975, %v1968, %v1972
        %v1977 = vand.u32 2147483647, %v1866
        %vm1978 = vcmp.eq.f32.partialorder %v1977, 8.507059e+37
        %v1979 = vand.u32 %v1866, 2147483648
        %v1980 = vor.u32 1.1754944e-38, %v1979
        %v1981 = vsel %vm1978, %v1980, %v1976
        %v1982 = vmul.f32 1.0, %v1981
        %v1983 = vrcp.pop %v1867
        %v1984 = vmul.f32 %v1867, %v1983
        %v1985 = vsub.f32 1.0, %v1984
        %v1986 = vmul.f32 %v1983, %v1985
        %v1987 = vadd.f32 %v1983, %v1986
        %vm1988 = vweird.f32 %v1867
        %vm1989 = vweird.f32 %v1983
        %vm1990 = vmor %vm1988, %vm1989
        %v1991 = vsel %vm1990, %v1983, %v1987
        %v1992 = vand.u32 2147483647, %v1867
        %vm1993 = vcmp.eq.f32.partialorder %v1992, 8.507059e+37
        %v1994 = vand.u32 %v1867, 2147483648
        %v1995 = vor.u32 1.1754944e-38, %v1994
        %v1996 = vsel %vm1993, %v1995, %v1991
        %v1997 = vmul.f32 1.0, %v1996
        %v1998 = vrcp.pop %v1868
        %v1999 = vmul.f32 %v1868, %v1998
        %v2000 = vsub.f32 1.0, %v1999
        %v2001 = vmul.f32 %v1998, %v2000
        %v2002 = vadd.f32 %v1998, %v2001
        %vm2003 = vweird.f32 %v1868
        %vm2004 = vweird.f32 %v1998
        %vm2005 = vmor %vm2003, %vm2004
        %v2006 = vsel %vm2005, %v1998, %v2002
        %v2007 = vand.u32 2147483647, %v1868
        %vm2008 = vcmp.eq.f32.partialorder %v2007, 8.507059e+37
        %v2009 = vand.u32 %v1868, 2147483648
        %v2010 = vor.u32 1.1754944e-38, %v2009
        %v2011 = vsel %vm2008, %v2010, %v2006
        %v2012 = vmul.f32 1.0, %v2011
        %v2013 = vrcp.pop %v1869
        %v2014 = vmul.f32 %v1869, %v2013
        %v2015 = vsub.f32 1.0, %v2014
        %v2016 = vmul.f32 %v2013, %v2015
        %v2017 = vadd.f32 %v2013, %v2016
        %vm2018 = vweird.f32 %v1869
        %vm2019 = vweird.f32 %v2013
        %vm2020 = vmor %vm2018, %vm2019
        %v2021 = vsel %vm2020, %v2013, %v2017
        %v2022 = vand.u32 2147483647, %v1869
        %vm2023 = vcmp.eq.f32.partialorder %v2022, 8.507059e+37
        %v2024 = vand.u32 %v1869, 2147483648
        %v2025 = vor.u32 1.1754944e-38, %v2024
        %v2026 = vsel %vm2023, %v2025, %v2021
        %v2027 = vmul.f32 1.0, %v2026
        %v2028 = vrcp.pop %v1870
        %v2029 = vmul.f32 %v1870, %v2028
        %v2030 = vsub.f32 1.0, %v2029
        %v2031 = vmul.f32 %v2028, %v2030
        %v2032 = vadd.f32 %v2028, %v2031
        %vm2033 = vweird.f32 %v1870
        %vm2034 = vweird.f32 %v2028
        %vm2035 = vmor %vm2033, %vm2034
        %v2036 = vsel %vm2035, %v2028, %v2032
        %v2037 = vand.u32 2147483647, %v1870
        %vm2038 = vcmp.eq.f32.partialorder %v2037, 8.507059e+37
        %v2039 = vand.u32 %v1870, 2147483648
        %v2040 = vor.u32 1.1754944e-38, %v2039
        %v2041 = vsel %vm2038, %v2040, %v2036
        %v2042 = vmul.f32 1.0, %v2041
        %v2043 = vrcp.pop %v1871
        %v2044 = vmul.f32 %v1871, %v2043
        %v2045 = vsub.f32 1.0, %v2044
        %v2046 = vmul.f32 %v2043, %v2045
        %v2047 = vadd.f32 %v2043, %v2046
        %vm2048 = vweird.f32 %v1871
        %vm2049 = vweird.f32 %v2043
        %vm2050 = vmor %vm2048, %vm2049
        %v2051 = vsel %vm2050, %v2043, %v2047
        %v2052 = vand.u32 2147483647, %v1871
        %vm2053 = vcmp.eq.f32.partialorder %v2052, 8.507059e+37
        %v2054 = vand.u32 %v1871, 2147483648
        %v2055 = vor.u32 1.1754944e-38, %v2054
        %v2056 = vsel %vm2053, %v2055, %v2051
        %v2057 = vmul.f32 1.0, %v2056
        %v2058 = vrcp.pop %v1872
        %v2059 = vmul.f32 %v1872, %v2058
        %v2060 = vsub.f32 1.0, %v2059
        %v2061 = vmul.f32 %v2058, %v2060
        %v2062 = vadd.f32 %v2058, %v2061
        %vm2063 = vweird.f32 %v1872
        %vm2064 = vweird.f32 %v2058
        %vm2065 = vmor %vm2063, %vm2064
        %v2066 = vsel %vm2065, %v2058, %v2062
        %v2067 = vand.u32 2147483647, %v1872
        %vm2068 = vcmp.eq.f32.partialorder %v2067, 8.507059e+37
        %v2069 = vand.u32 %v1872, 2147483648
        %v2070 = vor.u32 1.1754944e-38, %v2069
        %v2071 = vsel %vm2068, %v2070, %v2066
        %v2072 = vmul.f32 1.0, %v2071
        %v2073 = vrcp.pop %v1873
        %v2074 = vmul.f32 %v1873, %v2073
        %v2075 = vsub.f32 1.0, %v2074
        %v2076 = vmul.f32 %v2073, %v2075
        %v2077 = vadd.f32 %v2073, %v2076
        %vm2078 = vweird.f32 %v1873
        %vm2079 = vweird.f32 %v2073
        %vm2080 = vmor %vm2078, %vm2079
        %v2081 = vsel %vm2080, %v2073, %v2077
        %v2082 = vand.u32 2147483647, %v1873
        %vm2083 = vcmp.eq.f32.partialorder %v2082, 8.507059e+37
        %v2084 = vand.u32 %v1873, 2147483648
        %v2085 = vor.u32 1.1754944e-38, %v2084
        %v2086 = vsel %vm2083, %v2085, %v2081
        %v2087 = vmul.f32 1.0, %v2086
        %v2088 = vrcp.pop %v1874
        %v2089 = vmul.f32 %v1874, %v2088
        %v2090 = vsub.f32 1.0, %v2089
        %v2091 = vmul.f32 %v2088, %v2090
        %v2092 = vadd.f32 %v2088, %v2091
        %vm2093 = vweird.f32 %v1874
        %vm2094 = vweird.f32 %v2088
        %vm2095 = vmor %vm2093, %vm2094
        %v2096 = vsel %vm2095, %v2088, %v2092
        %v2097 = vand.u32 2147483647, %v1874
        %vm2098 = vcmp.eq.f32.partialorder %v2097, 8.507059e+37
        %v2099 = vand.u32 %v1874, 2147483648
        %v2100 = vor.u32 1.1754944e-38, %v2099
        %v2101 = vsel %vm2098, %v2100, %v2096
        %v2102 = vmul.f32 1.0, %v2101
        %v2103 = vrcp.pop %v1875
        %v2104 = vmul.f32 %v1875, %v2103
        %v2105 = vsub.f32 1.0, %v2104
        %v2106 = vmul.f32 %v2103, %v2105
        %v2107 = vadd.f32 %v2103, %v2106
        %vm2108 = vweird.f32 %v1875
        %vm2109 = vweird.f32 %v2103
        %vm2110 = vmor %vm2108, %vm2109
        %v2111 = vsel %vm2110, %v2103, %v2107
        %v2112 = vand.u32 2147483647, %v1875
        %vm2113 = vcmp.eq.f32.partialorder %v2112, 8.507059e+37
        %v2114 = vand.u32 %v1875, 2147483648
        %v2115 = vor.u32 1.1754944e-38, %v2114
        %v2116 = vsel %vm2113, %v2115, %v2111
        %v2117 = vmul.f32 1.0, %v2116
        %v2118 = vrcp.pop %v1876
        %v2119 = vmul.f32 %v1876, %v2118
        %v2120 = vsub.f32 1.0, %v2119
        %v2121 = vmul.f32 %v2118, %v2120
        %v2122 = vadd.f32 %v2118, %v2121
        %vm2123 = vweird.f32 %v1876
        %vm2124 = vweird.f32 %v2118
        %vm2125 = vmor %vm2123, %vm2124
        %v2126 = vsel %vm2125, %v2118, %v2122
        %v2127 = vand.u32 2147483647, %v1876
        %vm2128 = vcmp.eq.f32.partialorder %v2127, 8.507059e+37
        %v2129 = vand.u32 %v1876, 2147483648
        %v2130 = vor.u32 1.1754944e-38, %v2129
        %v2131 = vsel %vm2128, %v2130, %v2126
        %v2132 = vmul.f32 1.0, %v2131
        %v2133 = vrcp.pop %v1877
        %v2134 = vmul.f32 %v1877, %v2133
        %v2135 = vsub.f32 1.0, %v2134
        %v2136 = vmul.f32 %v2133, %v2135
        %v2137 = vadd.f32 %v2133, %v2136
        %vm2138 = vweird.f32 %v1877
        %vm2139 = vweird.f32 %v2133
        %vm2140 = vmor %vm2138, %vm2139
        %v2141 = vsel %vm2140, %v2133, %v2137
        %v2142 = vand.u32 2147483647, %v1877
        %vm2143 = vcmp.eq.f32.partialorder %v2142, 8.507059e+37
        %v2144 = vand.u32 %v1877, 2147483648
        %v2145 = vor.u32 1.1754944e-38, %v2144
        %v2146 = vsel %vm2143, %v2145, %v2141
        %v2147 = vmul.f32 1.0, %v2146
        %v2148 = vrcp.pop %v1878
        %v2149 = vmul.f32 %v1878, %v2148
        %v2150 = vsub.f32 1.0, %v2149
        %v2151 = vmul.f32 %v2148, %v2150
        %v2152 = vadd.f32 %v2148, %v2151
        %vm2153 = vweird.f32 %v1878
        %vm2154 = vweird.f32 %v2148
        %vm2155 = vmor %vm2153, %vm2154
        %v2156 = vsel %vm2155, %v2148, %v2152
        %v2157 = vand.u32 2147483647, %v1878
        %vm2158 = vcmp.eq.f32.partialorder %v2157, 8.507059e+37
        %v2159 = vand.u32 %v1878, 2147483648
        %v2160 = vor.u32 1.1754944e-38, %v2159
        %v2161 = vsel %vm2158, %v2160, %v2156
        %v2162 = vmul.f32 1.0, %v2161
        %v2163 = vrcp.pop %v1879
        %v2164 = vmul.f32 %v1879, %v2163
        %v2165 = vsub.f32 1.0, %v2164
        %v2166 = vmul.f32 %v2163, %v2165
        %v2167 = vadd.f32 %v2163, %v2166
        %vm2168 = vweird.f32 %v1879
        %vm2169 = vweird.f32 %v2163
        %vm2170 = vmor %vm2168, %vm2169
        %v2171 = vsel %vm2170, %v2163, %v2167
        %v2172 = vand.u32 2147483647, %v1879
        %vm2173 = vcmp.eq.f32.partialorder %v2172, 8.507059e+37
        %v2174 = vand.u32 %v1879, 2147483648
        %v2175 = vor.u32 1.1754944e-38, %v2174
        %v2176 = vsel %vm2173, %v2175, %v2171
        %v2177 = vmul.f32 1.0, %v2176
        %v2178 = vrcp.pop %v1880
        %v2179 = vmul.f32 %v1880, %v2178
        %v2180 = vsub.f32 1.0, %v2179
        %v2181 = vmul.f32 %v2178, %v2180
        %v2182 = vadd.f32 %v2178, %v2181
        %vm2183 = vweird.f32 %v1880
        %vm2184 = vweird.f32 %v2178
        %vm2185 = vmor %vm2183, %vm2184
        %v2186 = vsel %vm2185, %v2178, %v2182
        %v2187 = vand.u32 2147483647, %v1880
        %vm2188 = vcmp.eq.f32.partialorder %v2187, 8.507059e+37
        %v2189 = vand.u32 %v1880, 2147483648
        %v2190 = vor.u32 1.1754944e-38, %v2189
        %v2191 = vsel %vm2188, %v2190, %v2186
        %v2192 = vmul.f32 1.0, %v2191
        %v2193 = vrcp.pop %v1881
        %v2194 = vmul.f32 %v1881, %v2193
        %v2195 = vsub.f32 1.0, %v2194
        %v2196 = vmul.f32 %v2193, %v2195
        %v2197 = vadd.f32 %v2193, %v2196
        %vm2198 = vweird.f32 %v1881
        %vm2199 = vweird.f32 %v2193
        %vm2200 = vmor %vm2198, %vm2199
        %v2201 = vsel %vm2200, %v2193, %v2197
        %v2202 = vand.u32 2147483647, %v1881
        %vm2203 = vcmp.eq.f32.partialorder %v2202, 8.507059e+37
        %v2204 = vand.u32 %v1881, 2147483648
        %v2205 = vor.u32 1.1754944e-38, %v2204
        %v2206 = vsel %vm2203, %v2205, %v2201
        %v2207 = vmul.f32 1.0, %v2206
        %v2208 = vrcp.pop %v1882
        %v2209 = vmul.f32 %v1882, %v2208
        %v2210 = vsub.f32 1.0, %v2209
        %v2211 = vmul.f32 %v2208, %v2210
        %v2212 = vadd.f32 %v2208, %v2211
        %vm2213 = vweird.f32 %v1882
        %vm2214 = vweird.f32 %v2208
        %vm2215 = vmor %vm2213, %vm2214
        %v2216 = vsel %vm2215, %v2208, %v2212
        %v2217 = vand.u32 2147483647, %v1882
        %vm2218 = vcmp.eq.f32.partialorder %v2217, 8.507059e+37
        %v2219 = vand.u32 %v1882, 2147483648
        %v2220 = vor.u32 1.1754944e-38, %v2219
        %v2221 = vsel %vm2218, %v2220, %v2216
        %v2222 = vmul.f32 1.0, %v2221
        %v2223 = vrcp.pop %v1883
        %v2224 = vmul.f32 %v1883, %v2223
        %v2225 = vsub.f32 1.0, %v2224
        %v2226 = vmul.f32 %v2223, %v2225
        %v2227 = vadd.f32 %v2223, %v2226
        %vm2228 = vweird.f32 %v1883
        %vm2229 = vweird.f32 %v2223
        %vm2230 = vmor %vm2228, %vm2229
        %v2231 = vsel %vm2230, %v2223, %v2227
        %v2232 = vand.u32 2147483647, %v1883
        %vm2233 = vcmp.eq.f32.partialorder %v2232, 8.507059e+37
        %v2234 = vand.u32 %v1883, 2147483648
        %v2235 = vor.u32 1.1754944e-38, %v2234
        %v2236 = vsel %vm2233, %v2235, %v2231
        %v2237 = vmul.f32 1.0, %v2236
        %v2238 = vrcp.pop %v1884
        %v2239 = vmul.f32 %v1884, %v2238
        %v2240 = vsub.f32 1.0, %v2239
        %v2241 = vmul.f32 %v2238, %v2240
        %v2242 = vadd.f32 %v2238, %v2241
        %vm2243 = vweird.f32 %v1884
        %vm2244 = vweird.f32 %v2238
        %vm2245 = vmor %vm2243, %vm2244
        %v2246 = vsel %vm2245, %v2238, %v2242
        %v2247 = vand.u32 2147483647, %v1884
        %vm2248 = vcmp.eq.f32.partialorder %v2247, 8.507059e+37
        %v2249 = vand.u32 %v1884, 2147483648
        %v2250 = vor.u32 1.1754944e-38, %v2249
        %v2251 = vsel %vm2248, %v2250, %v2246
        %v2252 = vmul.f32 1.0, %v2251
        %v2253 = vrcp.pop %v1885
        %v2254 = vmul.f32 %v1885, %v2253
        %v2255 = vsub.f32 1.0, %v2254
        %v2256 = vmul.f32 %v2253, %v2255
        %v2257 = vadd.f32 %v2253, %v2256
        %vm2258 = vweird.f32 %v1885
        %vm2259 = vweird.f32 %v2253
        %vm2260 = vmor %vm2258, %vm2259
        %v2261 = vsel %vm2260, %v2253, %v2257
        %v2262 = vand.u32 2147483647, %v1885
        %vm2263 = vcmp.eq.f32.partialorder %v2262, 8.507059e+37
        %v2264 = vand.u32 %v1885, 2147483648
        %v2265 = vor.u32 1.1754944e-38, %v2264
        %v2266 = vsel %vm2263, %v2265, %v2261
        %v2267 = vmul.f32 1.0, %v2266
        %v2268 = vrcp.pop %v1886
        %v2269 = vmul.f32 %v1886, %v2268
        %v2270 = vsub.f32 1.0, %v2269
        %v2271 = vmul.f32 %v2268, %v2270
        %v2272 = vadd.f32 %v2268, %v2271
        %vm2273 = vweird.f32 %v1886
        %vm2274 = vweird.f32 %v2268
        %vm2275 = vmor %vm2273, %vm2274
        %v2276 = vsel %vm2275, %v2268, %v2272
        %v2277 = vand.u32 2147483647, %v1886
        %vm2278 = vcmp.eq.f32.partialorder %v2277, 8.507059e+37
        %v2279 = vand.u32 %v1886, 2147483648
        %v2280 = vor.u32 1.1754944e-38, %v2279
        %v2281 = vsel %vm2278, %v2280, %v2276
        %v2282 = vmul.f32 1.0, %v2281
        %v2283 = vrcp.pop %v1887
        %v2284 = vmul.f32 %v1887, %v2283
        %v2285 = vsub.f32 1.0, %v2284
        %v2286 = vmul.f32 %v2283, %v2285
        %v2287 = vadd.f32 %v2283, %v2286
        %vm2288 = vweird.f32 %v1887
        %vm2289 = vweird.f32 %v2283
        %vm2290 = vmor %vm2288, %vm2289
        %v2291 = vsel %vm2290, %v2283, %v2287
        %v2292 = vand.u32 2147483647, %v1887
        %vm2293 = vcmp.eq.f32.partialorder %v2292, 8.507059e+37
        %v2294 = vand.u32 %v1887, 2147483648
        %v2295 = vor.u32 1.1754944e-38, %v2294
        %v2296 = vsel %vm2293, %v2295, %v2291
        %v2297 = vmul.f32 1.0, %v2296
        %v2298 = vrcp.pop %v1888
        %v2299 = vmul.f32 %v1888, %v2298
        %v2300 = vsub.f32 1.0, %v2299
        %v2301 = vmul.f32 %v2298, %v2300
        %v2302 = vadd.f32 %v2298, %v2301
        %vm2303 = vweird.f32 %v1888
        %vm2304 = vweird.f32 %v2298
        %vm2305 = vmor %vm2303, %vm2304
        %v2306 = vsel %vm2305, %v2298, %v2302
        %v2307 = vand.u32 2147483647, %v1888
        %vm2308 = vcmp.eq.f32.partialorder %v2307, 8.507059e+37
        %v2309 = vand.u32 %v1888, 2147483648
        %v2310 = vor.u32 1.1754944e-38, %v2309
        %v2311 = vsel %vm2308, %v2310, %v2306
        %v2312 = vmul.f32 1.0, %v2311
        %v2313 = vrcp.pop %v1889
        %v2314 = vmul.f32 %v1889, %v2313
        %v2315 = vsub.f32 1.0, %v2314
        %v2316 = vmul.f32 %v2313, %v2315
        %v2317 = vadd.f32 %v2313, %v2316
        %vm2318 = vweird.f32 %v1889
        %vm2319 = vweird.f32 %v2313
        %vm2320 = vmor %vm2318, %vm2319
        %v2321 = vsel %vm2320, %v2313, %v2317
        %v2322 = vand.u32 2147483647, %v1889
        %vm2323 = vcmp.eq.f32.partialorder %v2322, 8.507059e+37
        %v2324 = vand.u32 %v1889, 2147483648
        %v2325 = vor.u32 1.1754944e-38, %v2324
        %v2326 = vsel %vm2323, %v2325, %v2321
        %v2327 = vmul.f32 1.0, %v2326
        %v2328 = vrcp.pop %v1890
        %v2329 = vmul.f32 %v1890, %v2328
        %v2330 = vsub.f32 1.0, %v2329
        %v2331 = vmul.f32 %v2328, %v2330
        %v2332 = vadd.f32 %v2328, %v2331
        %vm2333 = vweird.f32 %v1890
        %vm2334 = vweird.f32 %v2328
        %vm2335 = vmor %vm2333, %vm2334
        %v2336 = vsel %vm2335, %v2328, %v2332
        %v2337 = vand.u32 2147483647, %v1890
        %vm2338 = vcmp.eq.f32.partialorder %v2337, 8.507059e+37
        %v2339 = vand.u32 %v1890, 2147483648
        %v2340 = vor.u32 1.1754944e-38, %v2339
        %v2341 = vsel %vm2338, %v2340, %v2336
        %v2342 = vmul.f32 1.0, %v2341
        %v2343 = vrcp.pop %v1891
        %v2344 = vmul.f32 %v1891, %v2343
        %v2345 = vsub.f32 1.0, %v2344
        %v2346 = vmul.f32 %v2343, %v2345
        %v2347 = vadd.f32 %v2343, %v2346
        %vm2348 = vweird.f32 %v1891
        %vm2349 = vweird.f32 %v2343
        %vm2350 = vmor %vm2348, %vm2349
        %v2351 = vsel %vm2350, %v2343, %v2347
        %v2352 = vand.u32 2147483647, %v1891
        %vm2353 = vcmp.eq.f32.partialorder %v2352, 8.507059e+37
        %v2354 = vand.u32 %v1891, 2147483648
        %v2355 = vor.u32 1.1754944e-38, %v2354
        %v2356 = vsel %vm2353, %v2355, %v2351
        %v2357 = vmul.f32 1.0, %v2356
        %v2358 = vrcp.pop %v1892
        %v2359 = vmul.f32 %v1892, %v2358
        %v2360 = vsub.f32 1.0, %v2359
        %v2361 = vmul.f32 %v2358, %v2360
        %v2362 = vadd.f32 %v2358, %v2361
        %vm2363 = vweird.f32 %v1892
        %vm2364 = vweird.f32 %v2358
        %vm2365 = vmor %vm2363, %vm2364
        %v2366 = vsel %vm2365, %v2358, %v2362
        %v2367 = vand.u32 2147483647, %v1892
        %vm2368 = vcmp.eq.f32.partialorder %v2367, 8.507059e+37
        %v2369 = vand.u32 %v1892, 2147483648
        %v2370 = vor.u32 1.1754944e-38, %v2369
        %v2371 = vsel %vm2368, %v2370, %v2366
        %v2372 = vmul.f32 1.0, %v2371
        %v2373 = vpack.c.bf16 %v1922, %v1907
        %v2374 = vpack.c.bf16 %v1952, %v1937
        %v2375 = vpack.c.bf16 %v1982, %v1967
        %v2376 = vpack.c.bf16 %v2012, %v1997
        %v2377 = vpack.c.bf16 %v2042, %v2027
        %v2378 = vpack.c.bf16 %v2072, %v2057
        %v2379 = vpack.c.bf16 %v2102, %v2087
        %v2380 = vpack.c.bf16 %v2132, %v2117
        %v2381 = vpack.c.bf16 %v2162, %v2147
        %v2382 = vpack.c.bf16 %v2192, %v2177
        %v2383 = vpack.c.bf16 %v2222, %v2207
        %v2384 = vpack.c.bf16 %v2252, %v2237
        %v2385 = vpack.c.bf16 %v2282, %v2267
        %v2386 = vpack.c.bf16 %v2312, %v2297
        %v2387 = vpack.c.bf16 %v2342, %v2327
        %v2388 = vpack.c.bf16 %v2372, %v2357
        %v2389 = vld [vmem:[%s5] sm:$0xf]
        %v2390 = vld [vmem:[%s5 + $0x4] sm:$0x1]
        %v2391 = vld [vmem:[%s6] sm:$0x1]
        %v2393 = vperm.slane %v2391, 0
        %v2397 = vunpack.c.l.b16 %v2389
        %v2398 = vunpack.c.l.b16 %v2390
        %v2399 = vpack.c.b16 %v2398, %v2397
        %vm2400 = vcmask 80896
        %v2402 = vsel %vm2400, %v2373, 0
        %v2405 = vsel %vm2400, %v2374, 0
        %v2408 = vsel %vm2400, %v2375, 0
        %v2411 = vsel %vm2400, %v2376, 0
        %v2414 = vsel %vm2400, %v2377, 0
        %v2417 = vsel %vm2400, %v2378, 0
        %v2420 = vsel %vm2400, %v2379, 0
        %v2423 = vsel %vm2400, %v2380, 0
        %v2426 = vsel %vm2400, %v2381, 0
        %v2429 = vsel %vm2400, %v2382, 0
        %v2432 = vsel %vm2400, %v2383, 0
        %v2435 = vsel %vm2400, %v2384, 0
        %v2438 = vsel %vm2400, %v2385, 0
        %v2441 = vsel %vm2400, %v2386, 0
        %v2444 = vsel %vm2400, %v2387, 0
        %v2447 = vsel %vm2400, %v2388, 0
        %vm2449 = vcmask 1044480
        %v2451 = vsel %vm2449, %v2399, 0
        %2453 = vmatpush.bf16.msra.mxu0 0
        %2454 = vmatpush.bf16.msra.mxu0 0
        %2455 = vmatpush.bf16.msra.mxu0 0
        %2456 = vmatpush.bf16.msra.mxu0 0
        %2457 = vmatpush.bf16.msra.mxu0 0
        %2458 = vmatpush.bf16.msra.mxu0 0
        %2459 = vmatpush.bf16.msra.mxu0 0
        %2460 = vmatpush.bf16.msra.mxu0 %v2451
        %2461 = vmatmul.bf16.gmra.mxu0 %v2402
        %v2462 = vpop.f32.mrf.mxu0
        %v2463 = vadd.f32 %v2393, %v2462
        %v2464 = vpop.f32.mrf.mxu0
        %v2465 = vadd.f32 %v2393, %v2464
        %2466 = vmatmul.bf16.gmra.mxu0 %v2405
        %v2467 = vpop.f32.mrf.mxu0
        %v2468 = vadd.f32 %v2393, %v2467
        %v2469 = vpop.f32.mrf.mxu0
        %v2470 = vadd.f32 %v2393, %v2469
        %2471 = vmatmul.bf16.gmra.mxu0 %v2408
        %v2472 = vpop.f32.mrf.mxu0
        %v2473 = vadd.f32 %v2393, %v2472
        %v2474 = vpop.f32.mrf.mxu0
        %v2475 = vadd.f32 %v2393, %v2474
        %2476 = vmatmul.bf16.gmra.mxu0 %v2411
        %v2477 = vpop.f32.mrf.mxu0
        %v2478 = vadd.f32 %v2393, %v2477
        %v2479 = vpop.f32.mrf.mxu0
        %v2480 = vadd.f32 %v2393, %v2479
        %2481 = vmatmul.bf16.gmra.mxu0 %v2414
        %v2482 = vpop.f32.mrf.mxu0
        %v2483 = vadd.f32 %v2393, %v2482
        %v2484 = vpop.f32.mrf.mxu0
        %v2485 = vadd.f32 %v2393, %v2484
        %2486 = vmatmul.bf16.gmra.mxu0 %v2417
        %v2487 = vpop.f32.mrf.mxu0
        %v2488 = vadd.f32 %v2393, %v2487
        %v2489 = vpop.f32.mrf.mxu0
        %v2490 = vadd.f32 %v2393, %v2489
        %2491 = vmatmul.bf16.gmra.mxu0 %v2420
        %v2492 = vpop.f32.mrf.mxu0
        %v2493 = vadd.f32 %v2393, %v2492
        %v2494 = vpop.f32.mrf.mxu0
        %v2495 = vadd.f32 %v2393, %v2494
        %2496 = vmatmul.bf16.gmra.mxu0 %v2423
        %v2497 = vpop.f32.mrf.mxu0
        %v2498 = vadd.f32 %v2393, %v2497
        %v2499 = vpop.f32.mrf.mxu0
        %v2500 = vadd.f32 %v2393, %v2499
        %2501 = vmatmul.bf16.gmra.mxu0 %v2426
        %v2502 = vpop.f32.mrf.mxu0
        %v2503 = vadd.f32 %v2393, %v2502
        %v2504 = vpop.f32.mrf.mxu0
        %v2505 = vadd.f32 %v2393, %v2504
        %2506 = vmatmul.bf16.gmra.mxu0 %v2429
        %v2507 = vpop.f32.mrf.mxu0
        %v2508 = vadd.f32 %v2393, %v2507
        %v2509 = vpop.f32.mrf.mxu0
        %v2510 = vadd.f32 %v2393, %v2509
        %2511 = vmatmul.bf16.gmra.mxu0 %v2432
        %v2512 = vpop.f32.mrf.mxu0
        %v2513 = vadd.f32 %v2393, %v2512
        %v2514 = vpop.f32.mrf.mxu0
        %v2515 = vadd.f32 %v2393, %v2514
        %2516 = vmatmul.bf16.gmra.mxu0 %v2435
        %v2517 = vpop.f32.mrf.mxu0
        %v2518 = vadd.f32 %v2393, %v2517
        %v2519 = vpop.f32.mrf.mxu0
        %v2520 = vadd.f32 %v2393, %v2519
        %2521 = vmatmul.bf16.gmra.mxu0 %v2438
        %v2522 = vpop.f32.mrf.mxu0
        %v2523 = vadd.f32 %v2393, %v2522
        %v2524 = vpop.f32.mrf.mxu0
        %v2525 = vadd.f32 %v2393, %v2524
        %2526 = vmatmul.bf16.gmra.mxu0 %v2441
        %v2527 = vpop.f32.mrf.mxu0
        %v2528 = vadd.f32 %v2393, %v2527
        %v2529 = vpop.f32.mrf.mxu0
        %v2530 = vadd.f32 %v2393, %v2529
        %2531 = vmatmul.bf16.gmra.mxu0 %v2444
        %v2532 = vpop.f32.mrf.mxu0
        %v2533 = vadd.f32 %v2393, %v2532
        %v2534 = vpop.f32.mrf.mxu0
        %v2535 = vadd.f32 %v2393, %v2534
        %2536 = vmatmul.bf16.gmra.mxu0 %v2447
        %v2537 = vpop.f32.mrf.mxu0
        %v2538 = vadd.f32 %v2393, %v2537
        %v2539 = vpop.f32.mrf.mxu0
        %v2540 = vadd.f32 %v2393, %v2539
        %2541 = vdwg.mxu0
        %v2542 = vxor.u32 %v2463, 2147483648
        %v2543 = vxor.u32 %v2465, 2147483648
        %v2544 = vxor.u32 %v2468, 2147483648
        %v2545 = vxor.u32 %v2470, 2147483648
        %v2546 = vxor.u32 %v2473, 2147483648
        %v2547 = vxor.u32 %v2475, 2147483648
        %v2548 = vxor.u32 %v2478, 2147483648
        %v2549 = vxor.u32 %v2480, 2147483648
        %v2550 = vxor.u32 %v2483, 2147483648
        %v2551 = vxor.u32 %v2485, 2147483648
        %v2552 = vxor.u32 %v2488, 2147483648
        %v2553 = vxor.u32 %v2490, 2147483648
        %v2554 = vxor.u32 %v2493, 2147483648
        %v2555 = vxor.u32 %v2495, 2147483648
        %v2556 = vxor.u32 %v2498, 2147483648
        %v2557 = vxor.u32 %v2500, 2147483648
        %v2558 = vxor.u32 %v2503, 2147483648
        %v2559 = vxor.u32 %v2505, 2147483648
        %v2560 = vxor.u32 %v2508, 2147483648
        %v2561 = vxor.u32 %v2510, 2147483648
        %v2562 = vxor.u32 %v2513, 2147483648
        %v2563 = vxor.u32 %v2515, 2147483648
        %v2564 = vxor.u32 %v2518, 2147483648
        %v2565 = vxor.u32 %v2520, 2147483648
        %v2566 = vxor.u32 %v2523, 2147483648
        %v2567 = vxor.u32 %v2525, 2147483648
        %v2568 = vxor.u32 %v2528, 2147483648
        %v2569 = vxor.u32 %v2530, 2147483648
        %v2570 = vxor.u32 %v2533, 2147483648
        %v2571 = vxor.u32 %v2535, 2147483648
        %v2572 = vxor.u32 %v2538, 2147483648
        %v2573 = vxor.u32 %v2540, 2147483648
        %v2574 = vmul.f32 %v2542, 1.442695
        %v2575 = vpow.pop %v2574
        %v2576 = vmul.f32 %v2543, 1.442695
        %v2577 = vpow.pop %v2576
        %v2578 = vmul.f32 %v2544, 1.442695
        %v2579 = vpow.pop %v2578
        %v2580 = vmul.f32 %v2545, 1.442695
        %v2581 = vpow.pop %v2580
        %v2582 = vmul.f32 %v2546, 1.442695
        %v2583 = vpow.pop %v2582
        %v2584 = vmul.f32 %v2547, 1.442695
        %v2585 = vpow.pop %v2584
        %v2586 = vmul.f32 %v2548, 1.442695
        %v2587 = vpow.pop %v2586
        %v2588 = vmul.f32 %v2549, 1.442695
        %v2589 = vpow.pop %v2588
        %v2590 = vmul.f32 %v2550, 1.442695
        %v2591 = vpow.pop %v2590
        %v2592 = vmul.f32 %v2551, 1.442695
        %v2593 = vpow.pop %v2592
        %v2594 = vmul.f32 %v2552, 1.442695
        %v2595 = vpow.pop %v2594
        %v2596 = vmul.f32 %v2553, 1.442695
        %v2597 = vpow.pop %v2596
        %v2598 = vmul.f32 %v2554, 1.442695
        %v2599 = vpow.pop %v2598
        %v2600 = vmul.f32 %v2555, 1.442695
        %v2601 = vpow.pop %v2600
        %v2602 = vmul.f32 %v2556, 1.442695
        %v2603 = vpow.pop %v2602
        %v2604 = vmul.f32 %v2557, 1.442695
        %v2605 = vpow.pop %v2604
        %v2606 = vmul.f32 %v2558, 1.442695
        %v2607 = vpow.pop %v2606
        %v2608 = vmul.f32 %v2559, 1.442695
        %v2609 = vpow.pop %v2608
        %v2610 = vmul.f32 %v2560, 1.442695
        %v2611 = vpow.pop %v2610
        %v2612 = vmul.f32 %v2561, 1.442695
        %v2613 = vpow.pop %v2612
        %v2614 = vmul.f32 %v2562, 1.442695
        %v2615 = vpow.pop %v2614
        %v2616 = vmul.f32 %v2563, 1.442695
        %v2617 = vpow.pop %v2616
        %v2618 = vmul.f32 %v2564, 1.442695
        %v2619 = vpow.pop %v2618
        %v2620 = vmul.f32 %v2565, 1.442695
        %v2621 = vpow.pop %v2620
        %v2622 = vmul.f32 %v2566, 1.442695
        %v2623 = vpow.pop %v2622
        %v2624 = vmul.f32 %v2567, 1.442695
        %v2625 = vpow.pop %v2624
        %v2626 = vmul.f32 %v2568, 1.442695
        %v2627 = vpow.pop %v2626
        %v2628 = vmul.f32 %v2569, 1.442695
        %v2629 = vpow.pop %v2628
        %v2630 = vmul.f32 %v2570, 1.442695
        %v2631 = vpow.pop %v2630
        %v2632 = vmul.f32 %v2571, 1.442695
        %v2633 = vpow.pop %v2632
        %v2634 = vmul.f32 %v2572, 1.442695
        %v2635 = vpow.pop %v2634
        %v2636 = vmul.f32 %v2573, 1.442695
        %v2637 = vpow.pop %v2636
        %v2638 = vadd.f32 %v2575, 1.0
        %v2639 = vadd.f32 %v2577, 1.0
        %v2640 = vadd.f32 %v2579, 1.0
        %v2641 = vadd.f32 %v2581, 1.0
        %v2642 = vadd.f32 %v2583, 1.0
        %v2643 = vadd.f32 %v2585, 1.0
        %v2644 = vadd.f32 %v2587, 1.0
        %v2645 = vadd.f32 %v2589, 1.0
        %v2646 = vadd.f32 %v2591, 1.0
        %v2647 = vadd.f32 %v2593, 1.0
        %v2648 = vadd.f32 %v2595, 1.0
        %v2649 = vadd.f32 %v2597, 1.0
        %v2650 = vadd.f32 %v2599, 1.0
        %v2651 = vadd.f32 %v2601, 1.0
        %v2652 = vadd.f32 %v2603, 1.0
        %v2653 = vadd.f32 %v2605, 1.0
        %v2654 = vadd.f32 %v2607, 1.0
        %v2655 = vadd.f32 %v2609, 1.0
        %v2656 = vadd.f32 %v2611, 1.0
        %v2657 = vadd.f32 %v2613, 1.0
        %v2658 = vadd.f32 %v2615, 1.0
        %v2659 = vadd.f32 %v2617, 1.0
        %v2660 = vadd.f32 %v2619, 1.0
        %v2661 = vadd.f32 %v2621, 1.0
        %v2662 = vadd.f32 %v2623, 1.0
        %v2663 = vadd.f32 %v2625, 1.0
        %v2664 = vadd.f32 %v2627, 1.0
        %v2665 = vadd.f32 %v2629, 1.0
        %v2666 = vadd.f32 %v2631, 1.0
        %v2667 = vadd.f32 %v2633, 1.0
        %v2668 = vadd.f32 %v2635, 1.0
        %v2669 = vadd.f32 %v2637, 1.0
        %v2670 = vrcp.pop %v2638
        %v2671 = vmul.f32 %v2638, %v2670
        %v2672 = vsub.f32 1.0, %v2671
        %v2673 = vmul.f32 %v2670, %v2672
        %v2674 = vadd.f32 %v2670, %v2673
        %vm2675 = vweird.f32 %v2638
        %vm2676 = vweird.f32 %v2670
        %vm2677 = vmor %vm2675, %vm2676
        %v2678 = vsel %vm2677, %v2670, %v2674
        %v2679 = vand.u32 2147483647, %v2638
        %vm2680 = vcmp.eq.f32.partialorder %v2679, 8.507059e+37
        %v2681 = vand.u32 %v2638, 2147483648
        %v2682 = vor.u32 1.1754944e-38, %v2681
        %v2683 = vsel %vm2680, %v2682, %v2678
        %v2684 = vmul.f32 1.0, %v2683
        %v2685 = vrcp.pop %v2639
        %v2686 = vmul.f32 %v2639, %v2685
        %v2687 = vsub.f32 1.0, %v2686
        %v2688 = vmul.f32 %v2685, %v2687
        %v2689 = vadd.f32 %v2685, %v2688
        %vm2690 = vweird.f32 %v2639
        %vm2691 = vweird.f32 %v2685
        %vm2692 = vmor %vm2690, %vm2691
        %v2693 = vsel %vm2692, %v2685, %v2689
        %v2694 = vand.u32 2147483647, %v2639
        %vm2695 = vcmp.eq.f32.partialorder %v2694, 8.507059e+37
        %v2696 = vand.u32 %v2639, 2147483648
        %v2697 = vor.u32 1.1754944e-38, %v2696
        %v2698 = vsel %vm2695, %v2697, %v2693
        %v2699 = vmul.f32 1.0, %v2698
        %v2700 = vrcp.pop %v2640
        %v2701 = vmul.f32 %v2640, %v2700
        %v2702 = vsub.f32 1.0, %v2701
        %v2703 = vmul.f32 %v2700, %v2702
        %v2704 = vadd.f32 %v2700, %v2703
        %vm2705 = vweird.f32 %v2640
        %vm2706 = vweird.f32 %v2700
        %vm2707 = vmor %vm2705, %vm2706
        %v2708 = vsel %vm2707, %v2700, %v2704
        %v2709 = vand.u32 2147483647, %v2640
        %vm2710 = vcmp.eq.f32.partialorder %v2709, 8.507059e+37
        %v2711 = vand.u32 %v2640, 2147483648
        %v2712 = vor.u32 1.1754944e-38, %v2711
        %v2713 = vsel %vm2710, %v2712, %v2708
        %v2714 = vmul.f32 1.0, %v2713
        %v2715 = vrcp.pop %v2641
        %v2716 = vmul.f32 %v2641, %v2715
        %v2717 = vsub.f32 1.0, %v2716
        %v2718 = vmul.f32 %v2715, %v2717
        %v2719 = vadd.f32 %v2715, %v2718
        %vm2720 = vweird.f32 %v2641
        %vm2721 = vweird.f32 %v2715
        %vm2722 = vmor %vm2720, %vm2721
        %v2723 = vsel %vm2722, %v2715, %v2719
        %v2724 = vand.u32 2147483647, %v2641
        %vm2725 = vcmp.eq.f32.partialorder %v2724, 8.507059e+37
        %v2726 = vand.u32 %v2641, 2147483648
        %v2727 = vor.u32 1.1754944e-38, %v2726
        %v2728 = vsel %vm2725, %v2727, %v2723
        %v2729 = vmul.f32 1.0, %v2728
        %v2730 = vrcp.pop %v2642
        %v2731 = vmul.f32 %v2642, %v2730
        %v2732 = vsub.f32 1.0, %v2731
        %v2733 = vmul.f32 %v2730, %v2732
        %v2734 = vadd.f32 %v2730, %v2733
        %vm2735 = vweird.f32 %v2642
        %vm2736 = vweird.f32 %v2730
        %vm2737 = vmor %vm2735, %vm2736
        %v2738 = vsel %vm2737, %v2730, %v2734
        %v2739 = vand.u32 2147483647, %v2642
        %vm2740 = vcmp.eq.f32.partialorder %v2739, 8.507059e+37
        %v2741 = vand.u32 %v2642, 2147483648
        %v2742 = vor.u32 1.1754944e-38, %v2741
        %v2743 = vsel %vm2740, %v2742, %v2738
        %v2744 = vmul.f32 1.0, %v2743
        %v2745 = vrcp.pop %v2643
        %v2746 = vmul.f32 %v2643, %v2745
        %v2747 = vsub.f32 1.0, %v2746
        %v2748 = vmul.f32 %v2745, %v2747
        %v2749 = vadd.f32 %v2745, %v2748
        %vm2750 = vweird.f32 %v2643
        %vm2751 = vweird.f32 %v2745
        %vm2752 = vmor %vm2750, %vm2751
        %v2753 = vsel %vm2752, %v2745, %v2749
        %v2754 = vand.u32 2147483647, %v2643
        %vm2755 = vcmp.eq.f32.partialorder %v2754, 8.507059e+37
        %v2756 = vand.u32 %v2643, 2147483648
        %v2757 = vor.u32 1.1754944e-38, %v2756
        %v2758 = vsel %vm2755, %v2757, %v2753
        %v2759 = vmul.f32 1.0, %v2758
        %v2760 = vrcp.pop %v2644
        %v2761 = vmul.f32 %v2644, %v2760
        %v2762 = vsub.f32 1.0, %v2761
        %v2763 = vmul.f32 %v2760, %v2762
        %v2764 = vadd.f32 %v2760, %v2763
        %vm2765 = vweird.f32 %v2644
        %vm2766 = vweird.f32 %v2760
        %vm2767 = vmor %vm2765, %vm2766
        %v2768 = vsel %vm2767, %v2760, %v2764
        %v2769 = vand.u32 2147483647, %v2644
        %vm2770 = vcmp.eq.f32.partialorder %v2769, 8.507059e+37
        %v2771 = vand.u32 %v2644, 2147483648
        %v2772 = vor.u32 1.1754944e-38, %v2771
        %v2773 = vsel %vm2770, %v2772, %v2768
        %v2774 = vmul.f32 1.0, %v2773
        %v2775 = vrcp.pop %v2645
        %v2776 = vmul.f32 %v2645, %v2775
        %v2777 = vsub.f32 1.0, %v2776
        %v2778 = vmul.f32 %v2775, %v2777
        %v2779 = vadd.f32 %v2775, %v2778
        %vm2780 = vweird.f32 %v2645
        %vm2781 = vweird.f32 %v2775
        %vm2782 = vmor %vm2780, %vm2781
        %v2783 = vsel %vm2782, %v2775, %v2779
        %v2784 = vand.u32 2147483647, %v2645
        %vm2785 = vcmp.eq.f32.partialorder %v2784, 8.507059e+37
        %v2786 = vand.u32 %v2645, 2147483648
        %v2787 = vor.u32 1.1754944e-38, %v2786
        %v2788 = vsel %vm2785, %v2787, %v2783
        %v2789 = vmul.f32 1.0, %v2788
        %v2790 = vrcp.pop %v2646
        %v2791 = vmul.f32 %v2646, %v2790
        %v2792 = vsub.f32 1.0, %v2791
        %v2793 = vmul.f32 %v2790, %v2792
        %v2794 = vadd.f32 %v2790, %v2793
        %vm2795 = vweird.f32 %v2646
        %vm2796 = vweird.f32 %v2790
        %vm2797 = vmor %vm2795, %vm2796
        %v2798 = vsel %vm2797, %v2790, %v2794
        %v2799 = vand.u32 2147483647, %v2646
        %vm2800 = vcmp.eq.f32.partialorder %v2799, 8.507059e+37
        %v2801 = vand.u32 %v2646, 2147483648
        %v2802 = vor.u32 1.1754944e-38, %v2801
        %v2803 = vsel %vm2800, %v2802, %v2798
        %v2804 = vmul.f32 1.0, %v2803
        %v2805 = vrcp.pop %v2647
        %v2806 = vmul.f32 %v2647, %v2805
        %v2807 = vsub.f32 1.0, %v2806
        %v2808 = vmul.f32 %v2805, %v2807
        %v2809 = vadd.f32 %v2805, %v2808
        %vm2810 = vweird.f32 %v2647
        %vm2811 = vweird.f32 %v2805
        %vm2812 = vmor %vm2810, %vm2811
        %v2813 = vsel %vm2812, %v2805, %v2809
        %v2814 = vand.u32 2147483647, %v2647
        %vm2815 = vcmp.eq.f32.partialorder %v2814, 8.507059e+37
        %v2816 = vand.u32 %v2647, 2147483648
        %v2817 = vor.u32 1.1754944e-38, %v2816
        %v2818 = vsel %vm2815, %v2817, %v2813
        %v2819 = vmul.f32 1.0, %v2818
        %v2820 = vrcp.pop %v2648
        %v2821 = vmul.f32 %v2648, %v2820
        %v2822 = vsub.f32 1.0, %v2821
        %v2823 = vmul.f32 %v2820, %v2822
        %v2824 = vadd.f32 %v2820, %v2823
        %vm2825 = vweird.f32 %v2648
        %vm2826 = vweird.f32 %v2820
        %vm2827 = vmor %vm2825, %vm2826
        %v2828 = vsel %vm2827, %v2820, %v2824
        %v2829 = vand.u32 2147483647, %v2648
        %vm2830 = vcmp.eq.f32.partialorder %v2829, 8.507059e+37
        %v2831 = vand.u32 %v2648, 2147483648
        %v2832 = vor.u32 1.1754944e-38, %v2831
        %v2833 = vsel %vm2830, %v2832, %v2828
        %v2834 = vmul.f32 1.0, %v2833
        %v2835 = vrcp.pop %v2649
        %v2836 = vmul.f32 %v2649, %v2835
        %v2837 = vsub.f32 1.0, %v2836
        %v2838 = vmul.f32 %v2835, %v2837
        %v2839 = vadd.f32 %v2835, %v2838
        %vm2840 = vweird.f32 %v2649
        %vm2841 = vweird.f32 %v2835
        %vm2842 = vmor %vm2840, %vm2841
        %v2843 = vsel %vm2842, %v2835, %v2839
        %v2844 = vand.u32 2147483647, %v2649
        %vm2845 = vcmp.eq.f32.partialorder %v2844, 8.507059e+37
        %v2846 = vand.u32 %v2649, 2147483648
        %v2847 = vor.u32 1.1754944e-38, %v2846
        %v2848 = vsel %vm2845, %v2847, %v2843
        %v2849 = vmul.f32 1.0, %v2848
        %v2850 = vrcp.pop %v2650
        %v2851 = vmul.f32 %v2650, %v2850
        %v2852 = vsub.f32 1.0, %v2851
        %v2853 = vmul.f32 %v2850, %v2852
        %v2854 = vadd.f32 %v2850, %v2853
        %vm2855 = vweird.f32 %v2650
        %vm2856 = vweird.f32 %v2850
        %vm2857 = vmor %vm2855, %vm2856
        %v2858 = vsel %vm2857, %v2850, %v2854
        %v2859 = vand.u32 2147483647, %v2650
        %vm2860 = vcmp.eq.f32.partialorder %v2859, 8.507059e+37
        %v2861 = vand.u32 %v2650, 2147483648
        %v2862 = vor.u32 1.1754944e-38, %v2861
        %v2863 = vsel %vm2860, %v2862, %v2858
        %v2864 = vmul.f32 1.0, %v2863
        %v2865 = vrcp.pop %v2651
        %v2866 = vmul.f32 %v2651, %v2865
        %v2867 = vsub.f32 1.0, %v2866
        %v2868 = vmul.f32 %v2865, %v2867
        %v2869 = vadd.f32 %v2865, %v2868
        %vm2870 = vweird.f32 %v2651
        %vm2871 = vweird.f32 %v2865
        %vm2872 = vmor %vm2870, %vm2871
        %v2873 = vsel %vm2872, %v2865, %v2869
        %v2874 = vand.u32 2147483647, %v2651
        %vm2875 = vcmp.eq.f32.partialorder %v2874, 8.507059e+37
        %v2876 = vand.u32 %v2651, 2147483648
        %v2877 = vor.u32 1.1754944e-38, %v2876
        %v2878 = vsel %vm2875, %v2877, %v2873
        %v2879 = vmul.f32 1.0, %v2878
        %v2880 = vrcp.pop %v2652
        %v2881 = vmul.f32 %v2652, %v2880
        %v2882 = vsub.f32 1.0, %v2881
        %v2883 = vmul.f32 %v2880, %v2882
        %v2884 = vadd.f32 %v2880, %v2883
        %vm2885 = vweird.f32 %v2652
        %vm2886 = vweird.f32 %v2880
        %vm2887 = vmor %vm2885, %vm2886
        %v2888 = vsel %vm2887, %v2880, %v2884
        %v2889 = vand.u32 2147483647, %v2652
        %vm2890 = vcmp.eq.f32.partialorder %v2889, 8.507059e+37
        %v2891 = vand.u32 %v2652, 2147483648
        %v2892 = vor.u32 1.1754944e-38, %v2891
        %v2893 = vsel %vm2890, %v2892, %v2888
        %v2894 = vmul.f32 1.0, %v2893
        %v2895 = vrcp.pop %v2653
        %v2896 = vmul.f32 %v2653, %v2895
        %v2897 = vsub.f32 1.0, %v2896
        %v2898 = vmul.f32 %v2895, %v2897
        %v2899 = vadd.f32 %v2895, %v2898
        %vm2900 = vweird.f32 %v2653
        %vm2901 = vweird.f32 %v2895
        %vm2902 = vmor %vm2900, %vm2901
        %v2903 = vsel %vm2902, %v2895, %v2899
        %v2904 = vand.u32 2147483647, %v2653
        %vm2905 = vcmp.eq.f32.partialorder %v2904, 8.507059e+37
        %v2906 = vand.u32 %v2653, 2147483648
        %v2907 = vor.u32 1.1754944e-38, %v2906
        %v2908 = vsel %vm2905, %v2907, %v2903
        %v2909 = vmul.f32 1.0, %v2908
        %v2910 = vrcp.pop %v2654
        %v2911 = vmul.f32 %v2654, %v2910
        %v2912 = vsub.f32 1.0, %v2911
        %v2913 = vmul.f32 %v2910, %v2912
        %v2914 = vadd.f32 %v2910, %v2913
        %vm2915 = vweird.f32 %v2654
        %vm2916 = vweird.f32 %v2910
        %vm2917 = vmor %vm2915, %vm2916
        %v2918 = vsel %vm2917, %v2910, %v2914
        %v2919 = vand.u32 2147483647, %v2654
        %vm2920 = vcmp.eq.f32.partialorder %v2919, 8.507059e+37
        %v2921 = vand.u32 %v2654, 2147483648
        %v2922 = vor.u32 1.1754944e-38, %v2921
        %v2923 = vsel %vm2920, %v2922, %v2918
        %v2924 = vmul.f32 1.0, %v2923
        %v2925 = vrcp.pop %v2655
        %v2926 = vmul.f32 %v2655, %v2925
        %v2927 = vsub.f32 1.0, %v2926
        %v2928 = vmul.f32 %v2925, %v2927
        %v2929 = vadd.f32 %v2925, %v2928
        %vm2930 = vweird.f32 %v2655
        %vm2931 = vweird.f32 %v2925
        %vm2932 = vmor %vm2930, %vm2931
        %v2933 = vsel %vm2932, %v2925, %v2929
        %v2934 = vand.u32 2147483647, %v2655
        %vm2935 = vcmp.eq.f32.partialorder %v2934, 8.507059e+37
        %v2936 = vand.u32 %v2655, 2147483648
        %v2937 = vor.u32 1.1754944e-38, %v2936
        %v2938 = vsel %vm2935, %v2937, %v2933
        %v2939 = vmul.f32 1.0, %v2938
        %v2940 = vrcp.pop %v2656
        %v2941 = vmul.f32 %v2656, %v2940
        %v2942 = vsub.f32 1.0, %v2941
        %v2943 = vmul.f32 %v2940, %v2942
        %v2944 = vadd.f32 %v2940, %v2943
        %vm2945 = vweird.f32 %v2656
        %vm2946 = vweird.f32 %v2940
        %vm2947 = vmor %vm2945, %vm2946
        %v2948 = vsel %vm2947, %v2940, %v2944
        %v2949 = vand.u32 2147483647, %v2656
        %vm2950 = vcmp.eq.f32.partialorder %v2949, 8.507059e+37
        %v2951 = vand.u32 %v2656, 2147483648
        %v2952 = vor.u32 1.1754944e-38, %v2951
        %v2953 = vsel %vm2950, %v2952, %v2948
        %v2954 = vmul.f32 1.0, %v2953
        %v2955 = vrcp.pop %v2657
        %v2956 = vmul.f32 %v2657, %v2955
        %v2957 = vsub.f32 1.0, %v2956
        %v2958 = vmul.f32 %v2955, %v2957
        %v2959 = vadd.f32 %v2955, %v2958
        %vm2960 = vweird.f32 %v2657
        %vm2961 = vweird.f32 %v2955
        %vm2962 = vmor %vm2960, %vm2961
        %v2963 = vsel %vm2962, %v2955, %v2959
        %v2964 = vand.u32 2147483647, %v2657
        %vm2965 = vcmp.eq.f32.partialorder %v2964, 8.507059e+37
        %v2966 = vand.u32 %v2657, 2147483648
        %v2967 = vor.u32 1.1754944e-38, %v2966
        %v2968 = vsel %vm2965, %v2967, %v2963
        %v2969 = vmul.f32 1.0, %v2968
        %v2970 = vrcp.pop %v2658
        %v2971 = vmul.f32 %v2658, %v2970
        %v2972 = vsub.f32 1.0, %v2971
        %v2973 = vmul.f32 %v2970, %v2972
        %v2974 = vadd.f32 %v2970, %v2973
        %vm2975 = vweird.f32 %v2658
        %vm2976 = vweird.f32 %v2970
        %vm2977 = vmor %vm2975, %vm2976
        %v2978 = vsel %vm2977, %v2970, %v2974
        %v2979 = vand.u32 2147483647, %v2658
        %vm2980 = vcmp.eq.f32.partialorder %v2979, 8.507059e+37
        %v2981 = vand.u32 %v2658, 2147483648
        %v2982 = vor.u32 1.1754944e-38, %v2981
        %v2983 = vsel %vm2980, %v2982, %v2978
        %v2984 = vmul.f32 1.0, %v2983
        %v2985 = vrcp.pop %v2659
        %v2986 = vmul.f32 %v2659, %v2985
        %v2987 = vsub.f32 1.0, %v2986
        %v2988 = vmul.f32 %v2985, %v2987
        %v2989 = vadd.f32 %v2985, %v2988
        %vm2990 = vweird.f32 %v2659
        %vm2991 = vweird.f32 %v2985
        %vm2992 = vmor %vm2990, %vm2991
        %v2993 = vsel %vm2992, %v2985, %v2989
        %v2994 = vand.u32 2147483647, %v2659
        %vm2995 = vcmp.eq.f32.partialorder %v2994, 8.507059e+37
        %v2996 = vand.u32 %v2659, 2147483648
        %v2997 = vor.u32 1.1754944e-38, %v2996
        %v2998 = vsel %vm2995, %v2997, %v2993
        %v2999 = vmul.f32 1.0, %v2998
        %v3000 = vrcp.pop %v2660
        %v3001 = vmul.f32 %v2660, %v3000
        %v3002 = vsub.f32 1.0, %v3001
        %v3003 = vmul.f32 %v3000, %v3002
        %v3004 = vadd.f32 %v3000, %v3003
        %vm3005 = vweird.f32 %v2660
        %vm3006 = vweird.f32 %v3000
        %vm3007 = vmor %vm3005, %vm3006
        %v3008 = vsel %vm3007, %v3000, %v3004
        %v3009 = vand.u32 2147483647, %v2660
        %vm3010 = vcmp.eq.f32.partialorder %v3009, 8.507059e+37
        %v3011 = vand.u32 %v2660, 2147483648
        %v3012 = vor.u32 1.1754944e-38, %v3011
        %v3013 = vsel %vm3010, %v3012, %v3008
        %v3014 = vmul.f32 1.0, %v3013
        %v3015 = vrcp.pop %v2661
        %v3016 = vmul.f32 %v2661, %v3015
        %v3017 = vsub.f32 1.0, %v3016
        %v3018 = vmul.f32 %v3015, %v3017
        %v3019 = vadd.f32 %v3015, %v3018
        %vm3020 = vweird.f32 %v2661
        %vm3021 = vweird.f32 %v3015
        %vm3022 = vmor %vm3020, %vm3021
        %v3023 = vsel %vm3022, %v3015, %v3019
        %v3024 = vand.u32 2147483647, %v2661
        %vm3025 = vcmp.eq.f32.partialorder %v3024, 8.507059e+37
        %v3026 = vand.u32 %v2661, 2147483648
        %v3027 = vor.u32 1.1754944e-38, %v3026
        %v3028 = vsel %vm3025, %v3027, %v3023
        %v3029 = vmul.f32 1.0, %v3028
        %v3030 = vrcp.pop %v2662
        %v3031 = vmul.f32 %v2662, %v3030
        %v3032 = vsub.f32 1.0, %v3031
        %v3033 = vmul.f32 %v3030, %v3032
        %v3034 = vadd.f32 %v3030, %v3033
        %vm3035 = vweird.f32 %v2662
        %vm3036 = vweird.f32 %v3030
        %vm3037 = vmor %vm3035, %vm3036
        %v3038 = vsel %vm3037, %v3030, %v3034
        %v3039 = vand.u32 2147483647, %v2662
        %vm3040 = vcmp.eq.f32.partialorder %v3039, 8.507059e+37
        %v3041 = vand.u32 %v2662, 2147483648
        %v3042 = vor.u32 1.1754944e-38, %v3041
        %v3043 = vsel %vm3040, %v3042, %v3038
        %v3044 = vmul.f32 1.0, %v3043
        %v3045 = vrcp.pop %v2663
        %v3046 = vmul.f32 %v2663, %v3045
        %v3047 = vsub.f32 1.0, %v3046
        %v3048 = vmul.f32 %v3045, %v3047
        %v3049 = vadd.f32 %v3045, %v3048
        %vm3050 = vweird.f32 %v2663
        %vm3051 = vweird.f32 %v3045
        %vm3052 = vmor %vm3050, %vm3051
        %v3053 = vsel %vm3052, %v3045, %v3049
        %v3054 = vand.u32 2147483647, %v2663
        %vm3055 = vcmp.eq.f32.partialorder %v3054, 8.507059e+37
        %v3056 = vand.u32 %v2663, 2147483648
        %v3057 = vor.u32 1.1754944e-38, %v3056
        %v3058 = vsel %vm3055, %v3057, %v3053
        %v3059 = vmul.f32 1.0, %v3058
        %v3060 = vrcp.pop %v2664
        %v3061 = vmul.f32 %v2664, %v3060
        %v3062 = vsub.f32 1.0, %v3061
        %v3063 = vmul.f32 %v3060, %v3062
        %v3064 = vadd.f32 %v3060, %v3063
        %vm3065 = vweird.f32 %v2664
        %vm3066 = vweird.f32 %v3060
        %vm3067 = vmor %vm3065, %vm3066
        %v3068 = vsel %vm3067, %v3060, %v3064
        %v3069 = vand.u32 2147483647, %v2664
        %vm3070 = vcmp.eq.f32.partialorder %v3069, 8.507059e+37
        %v3071 = vand.u32 %v2664, 2147483648
        %v3072 = vor.u32 1.1754944e-38, %v3071
        %v3073 = vsel %vm3070, %v3072, %v3068
        %v3074 = vmul.f32 1.0, %v3073
        %v3075 = vrcp.pop %v2665
        %v3076 = vmul.f32 %v2665, %v3075
        %v3077 = vsub.f32 1.0, %v3076
        %v3078 = vmul.f32 %v3075, %v3077
        %v3079 = vadd.f32 %v3075, %v3078
        %vm3080 = vweird.f32 %v2665
        %vm3081 = vweird.f32 %v3075
        %vm3082 = vmor %vm3080, %vm3081
        %v3083 = vsel %vm3082, %v3075, %v3079
        %v3084 = vand.u32 2147483647, %v2665
        %vm3085 = vcmp.eq.f32.partialorder %v3084, 8.507059e+37
        %v3086 = vand.u32 %v2665, 2147483648
        %v3087 = vor.u32 1.1754944e-38, %v3086
        %v3088 = vsel %vm3085, %v3087, %v3083
        %v3089 = vmul.f32 1.0, %v3088
        %v3090 = vrcp.pop %v2666
        %v3091 = vmul.f32 %v2666, %v3090
        %v3092 = vsub.f32 1.0, %v3091
        %v3093 = vmul.f32 %v3090, %v3092
        %v3094 = vadd.f32 %v3090, %v3093
        %vm3095 = vweird.f32 %v2666
        %vm3096 = vweird.f32 %v3090
        %vm3097 = vmor %vm3095, %vm3096
        %v3098 = vsel %vm3097, %v3090, %v3094
        %v3099 = vand.u32 2147483647, %v2666
        %vm3100 = vcmp.eq.f32.partialorder %v3099, 8.507059e+37
        %v3101 = vand.u32 %v2666, 2147483648
        %v3102 = vor.u32 1.1754944e-38, %v3101
        %v3103 = vsel %vm3100, %v3102, %v3098
        %v3104 = vmul.f32 1.0, %v3103
        %v3105 = vrcp.pop %v2667
        %v3106 = vmul.f32 %v2667, %v3105
        %v3107 = vsub.f32 1.0, %v3106
        %v3108 = vmul.f32 %v3105, %v3107
        %v3109 = vadd.f32 %v3105, %v3108
        %vm3110 = vweird.f32 %v2667
        %vm3111 = vweird.f32 %v3105
        %vm3112 = vmor %vm3110, %vm3111
        %v3113 = vsel %vm3112, %v3105, %v3109
        %v3114 = vand.u32 2147483647, %v2667
        %vm3115 = vcmp.eq.f32.partialorder %v3114, 8.507059e+37
        %v3116 = vand.u32 %v2667, 2147483648
        %v3117 = vor.u32 1.1754944e-38, %v3116
        %v3118 = vsel %vm3115, %v3117, %v3113
        %v3119 = vmul.f32 1.0, %v3118
        %v3120 = vrcp.pop %v2668
        %v3121 = vmul.f32 %v2668, %v3120
        %v3122 = vsub.f32 1.0, %v3121
        %v3123 = vmul.f32 %v3120, %v3122
        %v3124 = vadd.f32 %v3120, %v3123
        %vm3125 = vweird.f32 %v2668
        %vm3126 = vweird.f32 %v3120
        %vm3127 = vmor %vm3125, %vm3126
        %v3128 = vsel %vm3127, %v3120, %v3124
        %v3129 = vand.u32 2147483647, %v2668
        %vm3130 = vcmp.eq.f32.partialorder %v3129, 8.507059e+37
        %v3131 = vand.u32 %v2668, 2147483648
        %v3132 = vor.u32 1.1754944e-38, %v3131
        %v3133 = vsel %vm3130, %v3132, %v3128
        %v3134 = vmul.f32 1.0, %v3133
        %v3135 = vrcp.pop %v2669
        %v3136 = vmul.f32 %v2669, %v3135
        %v3137 = vsub.f32 1.0, %v3136
        %v3138 = vmul.f32 %v3135, %v3137
        %v3139 = vadd.f32 %v3135, %v3138
        %vm3140 = vweird.f32 %v2669
        %vm3141 = vweird.f32 %v3135
        %vm3142 = vmor %vm3140, %vm3141
        %v3143 = vsel %vm3142, %v3135, %v3139
        %v3144 = vand.u32 2147483647, %v2669
        %vm3145 = vcmp.eq.f32.partialorder %v3144, 8.507059e+37
        %v3146 = vand.u32 %v2669, 2147483648
        %v3147 = vor.u32 1.1754944e-38, %v3146
        %v3148 = vsel %vm3145, %v3147, %v3143
        %v3149 = vmul.f32 1.0, %v3148
        %v3150 = vpack.c.bf16 %v2699, %v2684
        %v3151 = vpack.c.bf16 %v2729, %v2714
        %v3152 = vpack.c.bf16 %v2759, %v2744
        %v3153 = vpack.c.bf16 %v2789, %v2774
        %v3154 = vpack.c.bf16 %v2819, %v2804
        %v3155 = vpack.c.bf16 %v2849, %v2834
        %v3156 = vpack.c.bf16 %v2879, %v2864
        %v3157 = vpack.c.bf16 %v2909, %v2894
        %v3158 = vpack.c.bf16 %v2939, %v2924
        %v3159 = vpack.c.bf16 %v2969, %v2954
        %v3160 = vpack.c.bf16 %v2999, %v2984
        %v3161 = vpack.c.bf16 %v3029, %v3014
        %v3162 = vpack.c.bf16 %v3059, %v3044
        %v3163 = vpack.c.bf16 %v3089, %v3074
        %v3164 = vpack.c.bf16 %v3119, %v3104
        %v3165 = vpack.c.bf16 %v3149, %v3134
        %v3166 = vld [vmem:[%s7] sm:$0xff]
        %v3167 = vld [vmem:[%s7 + $0x8] sm:$0xf]
        %v3168 = vld [vmem:[%s7 + $0xc] sm:$0xff]
        %v3169 = vld [vmem:[%s7 + $0x14] sm:$0xf]
        %v3170 = vld [vmem:[%s7 + $0x18] sm:$0x33]
        %v3171 = vld [vmem:[%s7 + $0x20] sm:$0x3]
        %v3172 = vld [vmem:[%s8] sm:$0x7]
        %v3174 = vperm.slane %v3172, 0
        %v3175 = vperm.slane %v3172, 1
        %v3176 = vperm.slane %v3172, 2
        %v3186 = vunpack.c.l.b16 %v3166
        %v3187 = vunpack.c.h.b16 %v3166
        %v3188 = vunpack.c.l.b16 %v3167
        %v3189 = vunpack.c.l.b16 %v3168
        %v3190 = vunpack.c.h.b16 %v3168
        %v3191 = vunpack.c.l.b16 %v3169
        %v3192 = vunpack.c.l.b16 %v3170
        %v3193 = vunpack.c.h.b16 %v3170
        %v3194 = vunpack.c.l.b16 %v3171
        %v3195 = vpack.c.b16 %v3189, %v3186
        %v3196 = vpack.c.b16 %v3190, %v3187
        %v3197 = vpack.c.b16 %v3191, %v3188
        %v3198 = vpack.c.b16 %v3192, %v3192
        %v3199 = vpack.c.b16 %v3193, %v3193
        %v3200 = vpack.c.b16 %v3194, %v3194
        %v3205 = vsel %vm1623, %v3150, 0
        %v3208 = vsel %vm1623, %v3151, 0
        %v3211 = vsel %vm1623, %v3152, 0
        %v3214 = vsel %vm1623, %v3153, 0
        %v3217 = vsel %vm1623, %v3154, 0
        %v3220 = vsel %vm1623, %v3155, 0
        %v3223 = vsel %vm1623, %v3156, 0
        %v3226 = vsel %vm1623, %v3157, 0
        %v3229 = vsel %vm1623, %v3158, 0
        %v3232 = vsel %vm1623, %v3159, 0
        %v3235 = vsel %vm1623, %v3160, 0
        %v3238 = vsel %vm1623, %v3161, 0
        %v3241 = vsel %vm1623, %v3162, 0
        %v3244 = vsel %vm1623, %v3163, 0
        %v3247 = vsel %vm1623, %v3164, 0
        %v3250 = vsel %vm1623, %v3165, 0
        %v3253 = vsel %vm1672, %v3198, 0
        %v3256 = vsel %vm1672, %v3199, 0
        %v3259 = vsel %vm1672, %v3200, 0
        %3261 = vmatpush.bf16.msra.mxu0 0
        %3262 = vmatpush.bf16.msra.mxu0 0
        %3263 = vmatpush.bf16.msra.mxu0 0
        %3264 = vmatpush.bf16.msra.mxu0 0
        %3265 = vmatpush.bf16.msra.mxu0 0
        %3266 = vmatpush.bf16.msra.mxu0 0
        %3267 = vmatpush.bf16.msra.mxu0 %v3253
        %3268 = vmatpush.bf16.msra.mxu0 %v3195
        %3269 = vmatmul.bf16.gmra.mxu0 %v3205
        %v3270 = vpop.f32.mrf.mxu0
        %v3271 = vadd.f32 %v3174, %v3270
        %v3272 = vpop.f32.mrf.mxu0
        %v3273 = vadd.f32 %v3174, %v3272
        %3274 = vmatmul.bf16.gmra.mxu0 %v3208
        %v3275 = vpop.f32.mrf.mxu0
        %v3276 = vadd.f32 %v3174, %v3275
        %v3277 = vpop.f32.mrf.mxu0
        %v3278 = vadd.f32 %v3174, %v3277
        %3279 = vmatmul.bf16.gmra.mxu0 %v3211
        %v3280 = vpop.f32.mrf.mxu0
        %v3281 = vadd.f32 %v3174, %v3280
        %v3282 = vpop.f32.mrf.mxu0
        %v3283 = vadd.f32 %v3174, %v3282
        %3284 = vmatmul.bf16.gmra.mxu0 %v3214
        %v3285 = vpop.f32.mrf.mxu0
        %v3286 = vadd.f32 %v3174, %v3285
        %v3287 = vpop.f32.mrf.mxu0
        %v3288 = vadd.f32 %v3174, %v3287
        %3289 = vmatmul.bf16.gmra.mxu0 %v3217
        %v3290 = vpop.f32.mrf.mxu0
        %v3291 = vadd.f32 %v3174, %v3290
        %v3292 = vpop.f32.mrf.mxu0
        %v3293 = vadd.f32 %v3174, %v3292
        %3294 = vmatmul.bf16.gmra.mxu0 %v3220
        %v3295 = vpop.f32.mrf.mxu0
        %v3296 = vadd.f32 %v3174, %v3295
        %v3297 = vpop.f32.mrf.mxu0
        %v3298 = vadd.f32 %v3174, %v3297
        %3299 = vmatmul.bf16.gmra.mxu0 %v3223
        %v3300 = vpop.f32.mrf.mxu0
        %v3301 = vadd.f32 %v3174, %v3300
        %v3302 = vpop.f32.mrf.mxu0
        %v3303 = vadd.f32 %v3174, %v3302
        %3304 = vmatmul.bf16.gmra.mxu0 %v3226
        %v3305 = vpop.f32.mrf.mxu0
        %v3306 = vadd.f32 %v3174, %v3305
        %v3307 = vpop.f32.mrf.mxu0
        %v3308 = vadd.f32 %v3174, %v3307
        %3309 = vmatmul.bf16.gmra.mxu0 %v3229
        %v3310 = vpop.f32.mrf.mxu0
        %v3311 = vadd.f32 %v3174, %v3310
        %v3312 = vpop.f32.mrf.mxu0
        %v3313 = vadd.f32 %v3174, %v3312
        %3314 = vmatmul.bf16.gmra.mxu0 %v3232
        %v3315 = vpop.f32.mrf.mxu0
        %v3316 = vadd.f32 %v3174, %v3315
        %v3317 = vpop.f32.mrf.mxu0
        %v3318 = vadd.f32 %v3174, %v3317
        %3319 = vmatmul.bf16.gmra.mxu0 %v3235
        %v3320 = vpop.f32.mrf.mxu0
        %v3321 = vadd.f32 %v3174, %v3320
        %v3322 = vpop.f32.mrf.mxu0
        %v3323 = vadd.f32 %v3174, %v3322
        %3324 = vmatmul.bf16.gmra.mxu0 %v3238
        %v3325 = vpop.f32.mrf.mxu0
        %v3326 = vadd.f32 %v3174, %v3325
        %v3327 = vpop.f32.mrf.mxu0
        %v3328 = vadd.f32 %v3174, %v3327
        %3329 = vmatmul.bf16.gmra.mxu0 %v3241
        %v3330 = vpop.f32.mrf.mxu0
        %v3331 = vadd.f32 %v3174, %v3330
        %v3332 = vpop.f32.mrf.mxu0
        %v3333 = vadd.f32 %v3174, %v3332
        %3334 = vmatmul.bf16.gmra.mxu0 %v3244
        %v3335 = vpop.f32.mrf.mxu0
        %v3336 = vadd.f32 %v3174, %v3335
        %v3337 = vpop.f32.mrf.mxu0
        %v3338 = vadd.f32 %v3174, %v3337
        %3339 = vmatmul.bf16.gmra.mxu0 %v3247
        %v3340 = vpop.f32.mrf.mxu0
        %v3341 = vadd.f32 %v3174, %v3340
        %v3342 = vpop.f32.mrf.mxu0
        %v3343 = vadd.f32 %v3174, %v3342
        %3344 = vmatmul.bf16.gmra.mxu0 %v3250
        %v3345 = vpop.f32.mrf.mxu0
        %v3346 = vadd.f32 %v3174, %v3345
        %v3347 = vpop.f32.mrf.mxu0
        %v3348 = vadd.f32 %v3174, %v3347
        %3349 = vdwg.mxu0
        %3350 = vmatpush.bf16.msra.mxu0 0
        %3351 = vmatpush.bf16.msra.mxu0 0
        %3352 = vmatpush.bf16.msra.mxu0 0
        %3353 = vmatpush.bf16.msra.mxu0 0
        %3354 = vmatpush.bf16.msra.mxu0 0
        %3355 = vmatpush.bf16.msra.mxu0 0
        %3356 = vmatpush.bf16.msra.mxu0 %v3256
        %3357 = vmatpush.bf16.msra.mxu0 %v3196
        %3358 = vmatmul.bf16.gmra.mxu0 %v3205
        %v3359 = vpop.f32.mrf.mxu0
        %v3360 = vadd.f32 %v3175, %v3359
        %v3361 = vpop.f32.mrf.mxu0
        %v3362 = vadd.f32 %v3175, %v3361
        %3363 = vmatmul.bf16.gmra.mxu0 %v3208
        %v3364 = vpop.f32.mrf.mxu0
        %v3365 = vadd.f32 %v3175, %v3364
        %v3366 = vpop.f32.mrf.mxu0
        %v3367 = vadd.f32 %v3175, %v3366
        %3368 = vmatmul.bf16.gmra.mxu0 %v3211
        %v3369 = vpop.f32.mrf.mxu0
        %v3370 = vadd.f32 %v3175, %v3369
        %v3371 = vpop.f32.mrf.mxu0
        %v3372 = vadd.f32 %v3175, %v3371
        %3373 = vmatmul.bf16.gmra.mxu0 %v3214
        %v3374 = vpop.f32.mrf.mxu0
        %v3375 = vadd.f32 %v3175, %v3374
        %v3376 = vpop.f32.mrf.mxu0
        %v3377 = vadd.f32 %v3175, %v3376
        %3378 = vmatmul.bf16.gmra.mxu0 %v3217
        %v3379 = vpop.f32.mrf.mxu0
        %v3380 = vadd.f32 %v3175, %v3379
        %v3381 = vpop.f32.mrf.mxu0
        %v3382 = vadd.f32 %v3175, %v3381
        %3383 = vmatmul.bf16.gmra.mxu0 %v3220
        %v3384 = vpop.f32.mrf.mxu0
        %v3385 = vadd.f32 %v3175, %v3384
        %v3386 = vpop.f32.mrf.mxu0
        %v3387 = vadd.f32 %v3175, %v3386
        %3388 = vmatmul.bf16.gmra.mxu0 %v3223
        %v3389 = vpop.f32.mrf.mxu0
        %v3390 = vadd.f32 %v3175, %v3389
        %v3391 = vpop.f32.mrf.mxu0
        %v3392 = vadd.f32 %v3175, %v3391
        %3393 = vmatmul.bf16.gmra.mxu0 %v3226
        %v3394 = vpop.f32.mrf.mxu0
        %v3395 = vadd.f32 %v3175, %v3394
        %v3396 = vpop.f32.mrf.mxu0
        %v3397 = vadd.f32 %v3175, %v3396
        %3398 = vmatmul.bf16.gmra.mxu0 %v3229
        %v3399 = vpop.f32.mrf.mxu0
        %v3400 = vadd.f32 %v3175, %v3399
        %v3401 = vpop.f32.mrf.mxu0
        %v3402 = vadd.f32 %v3175, %v3401
        %3403 = vmatmul.bf16.gmra.mxu0 %v3232
        %v3404 = vpop.f32.mrf.mxu0
        %v3405 = vadd.f32 %v3175, %v3404
        %v3406 = vpop.f32.mrf.mxu0
        %v3407 = vadd.f32 %v3175, %v3406
        %3408 = vmatmul.bf16.gmra.mxu0 %v3235
        %v3409 = vpop.f32.mrf.mxu0
        %v3410 = vadd.f32 %v3175, %v3409
        %v3411 = vpop.f32.mrf.mxu0
        %v3412 = vadd.f32 %v3175, %v3411
        %3413 = vmatmul.bf16.gmra.mxu0 %v3238
        %v3414 = vpop.f32.mrf.mxu0
        %v3415 = vadd.f32 %v3175, %v3414
        %v3416 = vpop.f32.mrf.mxu0
        %v3417 = vadd.f32 %v3175, %v3416
        %3418 = vmatmul.bf16.gmra.mxu0 %v3241
        %v3419 = vpop.f32.mrf.mxu0
        %v3420 = vadd.f32 %v3175, %v3419
        %v3421 = vpop.f32.mrf.mxu0
        %v3422 = vadd.f32 %v3175, %v3421
        %3423 = vmatmul.bf16.gmra.mxu0 %v3244
        %v3424 = vpop.f32.mrf.mxu0
        %v3425 = vadd.f32 %v3175, %v3424
        %v3426 = vpop.f32.mrf.mxu0
        %v3427 = vadd.f32 %v3175, %v3426
        %3428 = vmatmul.bf16.gmra.mxu0 %v3247
        %v3429 = vpop.f32.mrf.mxu0
        %v3430 = vadd.f32 %v3175, %v3429
        %v3431 = vpop.f32.mrf.mxu0
        %v3432 = vadd.f32 %v3175, %v3431
        %3433 = vmatmul.bf16.gmra.mxu0 %v3250
        %v3434 = vpop.f32.mrf.mxu0
        %v3435 = vadd.f32 %v3175, %v3434
        %v3436 = vpop.f32.mrf.mxu0
        %v3437 = vadd.f32 %v3175, %v3436
        %3438 = vdwg.mxu0
        %3439 = vmatpush.bf16.msra.mxu0 0
        %3440 = vmatpush.bf16.msra.mxu0 0
        %3441 = vmatpush.bf16.msra.mxu0 0
        %3442 = vmatpush.bf16.msra.mxu0 0
        %3443 = vmatpush.bf16.msra.mxu0 0
        %3444 = vmatpush.bf16.msra.mxu0 0
        %3445 = vmatpush.bf16.msra.mxu0 %v3259
        %3446 = vmatpush.bf16.msra.mxu0 %v3197
        %3447 = vmatmul.bf16.gmra.mxu0 %v3205
        %v3448 = vpop.f32.mrf.mxu0
        %v3449 = vadd.f32 %v3176, %v3448
        %v3450 = vpop.f32.mrf.mxu0
        %v3451 = vadd.f32 %v3176, %v3450
        %3452 = vmatmul.bf16.gmra.mxu0 %v3208
        %v3453 = vpop.f32.mrf.mxu0
        %v3454 = vadd.f32 %v3176, %v3453
        %v3455 = vpop.f32.mrf.mxu0
        %v3456 = vadd.f32 %v3176, %v3455
        %3457 = vmatmul.bf16.gmra.mxu0 %v3211
        %v3458 = vpop.f32.mrf.mxu0
        %v3459 = vadd.f32 %v3176, %v3458
        %v3460 = vpop.f32.mrf.mxu0
        %v3461 = vadd.f32 %v3176, %v3460
        %3462 = vmatmul.bf16.gmra.mxu0 %v3214
        %v3463 = vpop.f32.mrf.mxu0
        %v3464 = vadd.f32 %v3176, %v3463
        %v3465 = vpop.f32.mrf.mxu0
        %v3466 = vadd.f32 %v3176, %v3465
        %3467 = vmatmul.bf16.gmra.mxu0 %v3217
        %v3468 = vpop.f32.mrf.mxu0
        %v3469 = vadd.f32 %v3176, %v3468
        %v3470 = vpop.f32.mrf.mxu0
        %v3471 = vadd.f32 %v3176, %v3470
        %3472 = vmatmul.bf16.gmra.mxu0 %v3220
        %v3473 = vpop.f32.mrf.mxu0
        %v3474 = vadd.f32 %v3176, %v3473
        %v3475 = vpop.f32.mrf.mxu0
        %v3476 = vadd.f32 %v3176, %v3475
        %3477 = vmatmul.bf16.gmra.mxu0 %v3223
        %v3478 = vpop.f32.mrf.mxu0
        %v3479 = vadd.f32 %v3176, %v3478
        %v3480 = vpop.f32.mrf.mxu0
        %v3481 = vadd.f32 %v3176, %v3480
        %3482 = vmatmul.bf16.gmra.mxu0 %v3226
        %v3483 = vpop.f32.mrf.mxu0
        %v3484 = vadd.f32 %v3176, %v3483
        %v3485 = vpop.f32.mrf.mxu0
        %v3486 = vadd.f32 %v3176, %v3485
        %3487 = vmatmul.bf16.gmra.mxu0 %v3229
        %v3488 = vpop.f32.mrf.mxu0
        %v3489 = vadd.f32 %v3176, %v3488
        %v3490 = vpop.f32.mrf.mxu0
        %v3491 = vadd.f32 %v3176, %v3490
        %3492 = vmatmul.bf16.gmra.mxu0 %v3232
        %v3493 = vpop.f32.mrf.mxu0
        %v3494 = vadd.f32 %v3176, %v3493
        %v3495 = vpop.f32.mrf.mxu0
        %v3496 = vadd.f32 %v3176, %v3495
        %3497 = vmatmul.bf16.gmra.mxu0 %v3235
        %v3498 = vpop.f32.mrf.mxu0
        %v3499 = vadd.f32 %v3176, %v3498
        %v3500 = vpop.f32.mrf.mxu0
        %v3501 = vadd.f32 %v3176, %v3500
        %3502 = vmatmul.bf16.gmra.mxu0 %v3238
        %v3503 = vpop.f32.mrf.mxu0
        %v3504 = vadd.f32 %v3176, %v3503
        %v3505 = vpop.f32.mrf.mxu0
        %v3506 = vadd.f32 %v3176, %v3505
        %3507 = vmatmul.bf16.gmra.mxu0 %v3241
        %v3508 = vpop.f32.mrf.mxu0
        %v3509 = vadd.f32 %v3176, %v3508
        %v3510 = vpop.f32.mrf.mxu0
        %v3511 = vadd.f32 %v3176, %v3510
        %3512 = vmatmul.bf16.gmra.mxu0 %v3244
        %v3513 = vpop.f32.mrf.mxu0
        %v3514 = vadd.f32 %v3176, %v3513
        %v3515 = vpop.f32.mrf.mxu0
        %v3516 = vadd.f32 %v3176, %v3515
        %3517 = vmatmul.bf16.gmra.mxu0 %v3247
        %v3518 = vpop.f32.mrf.mxu0
        %v3519 = vadd.f32 %v3176, %v3518
        %v3520 = vpop.f32.mrf.mxu0
        %v3521 = vadd.f32 %v3176, %v3520
        %3522 = vmatmul.bf16.gmra.mxu0 %v3250
        %v3523 = vpop.f32.mrf.mxu0
        %v3524 = vadd.f32 %v3176, %v3523
        %v3525 = vpop.f32.mrf.mxu0
        %v3526 = vadd.f32 %v3176, %v3525
        %3527 = vdwg.mxu0
        %v3528 = vpack.c.bf16 %v3360, %v3271
        %v3529 = vpack.c.bf16 %v3449, %v3449
        %v3530 = vpack.c.bf16 %v3362, %v3273
        %v3531 = vpack.c.bf16 %v3451, %v3451
        %v3532 = vpack.c.bf16 %v3365, %v3276
        %v3533 = vpack.c.bf16 %v3454, %v3454
        %v3534 = vpack.c.bf16 %v3367, %v3278
        %v3535 = vpack.c.bf16 %v3456, %v3456
        %v3536 = vpack.c.bf16 %v3370, %v3281
        %v3537 = vpack.c.bf16 %v3459, %v3459
        %v3538 = vpack.c.bf16 %v3372, %v3283
        %v3539 = vpack.c.bf16 %v3461, %v3461
        %v3540 = vpack.c.bf16 %v3375, %v3286
        %v3541 = vpack.c.bf16 %v3464, %v3464
        %v3542 = vpack.c.bf16 %v3377, %v3288
        %v3543 = vpack.c.bf16 %v3466, %v3466
        %v3544 = vpack.c.bf16 %v3380, %v3291
        %v3545 = vpack.c.bf16 %v3469, %v3469
        %v3546 = vpack.c.bf16 %v3382, %v3293
        %v3547 = vpack.c.bf16 %v3471, %v3471
        %v3548 = vpack.c.bf16 %v3385, %v3296
        %v3549 = vpack.c.bf16 %v3474, %v3474
        %v3550 = vpack.c.bf16 %v3387, %v3298
        %v3551 = vpack.c.bf16 %v3476, %v3476
        %v3552 = vpack.c.bf16 %v3390, %v3301
        %v3553 = vpack.c.bf16 %v3479, %v3479
        %v3554 = vpack.c.bf16 %v3392, %v3303
        %v3555 = vpack.c.bf16 %v3481, %v3481
        %v3556 = vpack.c.bf16 %v3395, %v3306
        %v3557 = vpack.c.bf16 %v3484, %v3484
        %v3558 = vpack.c.bf16 %v3397, %v3308
        %v3559 = vpack.c.bf16 %v3486, %v3486
        %v3560 = vpack.c.bf16 %v3400, %v3311
        %v3561 = vpack.c.bf16 %v3489, %v3489
        %v3562 = vpack.c.bf16 %v3402, %v3313
        %v3563 = vpack.c.bf16 %v3491, %v3491
        %v3564 = vpack.c.bf16 %v3405, %v3316
        %v3565 = vpack.c.bf16 %v3494, %v3494
        %v3566 = vpack.c.bf16 %v3407, %v3318
        %v3567 = vpack.c.bf16 %v3496, %v3496
        %v3568 = vpack.c.bf16 %v3410, %v3321
        %v3569 = vpack.c.bf16 %v3499, %v3499
        %v3570 = vpack.c.bf16 %v3412, %v3323
        %v3571 = vpack.c.bf16 %v3501, %v3501
        %v3572 = vpack.c.bf16 %v3415, %v3326
        %v3573 = vpack.c.bf16 %v3504, %v3504
        %v3574 = vpack.c.bf16 %v3417, %v3328
        %v3575 = vpack.c.bf16 %v3506, %v3506
        %v3576 = vpack.c.bf16 %v3420, %v3331
        %v3577 = vpack.c.bf16 %v3509, %v3509
        %v3578 = vpack.c.bf16 %v3422, %v3333
        %v3579 = vpack.c.bf16 %v3511, %v3511
        %v3580 = vpack.c.bf16 %v3425, %v3336
        %v3581 = vpack.c.bf16 %v3514, %v3514
        %v3582 = vpack.c.bf16 %v3427, %v3338
        %v3583 = vpack.c.bf16 %v3516, %v3516
        %v3584 = vpack.c.bf16 %v3430, %v3341
        %v3585 = vpack.c.bf16 %v3519, %v3519
        %v3586 = vpack.c.bf16 %v3432, %v3343
        %v3587 = vpack.c.bf16 %v3521, %v3521
        %v3588 = vpack.c.bf16 %v3435, %v3346
        %v3589 = vpack.c.bf16 %v3524, %v3524
        %v3590 = vpack.c.bf16 %v3437, %v3348
        %v3591 = vpack.c.bf16 %v3526, %v3526
        %3592 = vst [vmem:[%s339] sm:$0xff] %v3528
        %vm3593 = vcmask 355328
        %3594 = vst.msk [vmem:[%s339 + $0x8] sm:$0xf] %vm3593, %v3529
        %3595 = vst [vmem:[%s339 + $0xc] sm:$0xff] %v3530
        %3596 = vst.msk [vmem:[%s339 + $0x14] sm:$0xf] %vm3593, %v3531
        %3597 = vst [vmem:[%s339 + $0x18] sm:$0xff] %v3532
        %3598 = vst.msk [vmem:[%s339 + $0x20] sm:$0xf] %vm3593, %v3533
        %3599 = vst [vmem:[%s339 + $0x24] sm:$0xff] %v3534
        %3600 = vst.msk [vmem:[%s339 + $0x2c] sm:$0xf] %vm3593, %v3535
        %3601 = vst [vmem:[%s339 + $0x30] sm:$0xff] %v3536
        %3602 = vst.msk [vmem:[%s339 + $0x38] sm:$0xf] %vm3593, %v3537
        %3603 = vst [vmem:[%s339 + $0x3c] sm:$0xff] %v3538
        %3604 = vst.msk [vmem:[%s339 + $0x44] sm:$0xf] %vm3593, %v3539
        %3605 = vst [vmem:[%s339 + $0x48] sm:$0xff] %v3540
        %3606 = vst.msk [vmem:[%s339 + $0x50] sm:$0xf] %vm3593, %v3541
        %3607 = vst [vmem:[%s339 + $0x54] sm:$0xff] %v3542
        %3608 = vst.msk [vmem:[%s339 + $0x5c] sm:$0xf] %vm3593, %v3543
        %3609 = vst [vmem:[%s339 + $0x60] sm:$0xff] %v3544
        %3610 = vst.msk [vmem:[%s339 + $0x68] sm:$0xf] %vm3593, %v3545
        %3611 = vst [vmem:[%s339 + $0x6c] sm:$0xff] %v3546
        %3612 = vst.msk [vmem:[%s339 + $0x74] sm:$0xf] %vm3593, %v3547
        %3613 = vst [vmem:[%s339 + $0x78] sm:$0xff] %v3548
        %3614 = vst.msk [vmem:[%s339 + $0x80] sm:$0xf] %vm3593, %v3549
        %3615 = vst [vmem:[%s339 + $0x84] sm:$0xff] %v3550
        %3616 = vst.msk [vmem:[%s339 + $0x8c] sm:$0xf] %vm3593, %v3551
        %3617 = vst [vmem:[%s339 + $0x90] sm:$0xff] %v3552
        %3618 = vst.msk [vmem:[%s339 + $0x98] sm:$0xf] %vm3593, %v3553
        %3619 = vst [vmem:[%s339 + $0x9c] sm:$0xff] %v3554
        %3620 = vst.msk [vmem:[%s339 + $0xa4] sm:$0xf] %vm3593, %v3555
        %3621 = vst [vmem:[%s339 + $0xa8] sm:$0xff] %v3556
        %3622 = vst.msk [vmem:[%s339 + $0xb0] sm:$0xf] %vm3593, %v3557
        %3623 = vst [vmem:[%s339 + $0xb4] sm:$0xff] %v3558
        %3624 = vst.msk [vmem:[%s339 + $0xbc] sm:$0xf] %vm3593, %v3559
        %3625 = vst [vmem:[%s339 + $0xc0] sm:$0xff] %v3560
        %3626 = vst.msk [vmem:[%s339 + $0xc8] sm:$0xf] %vm3593, %v3561
        %3627 = vst [vmem:[%s339 + $0xcc] sm:$0xff] %v3562
        %3628 = vst.msk [vmem:[%s339 + $0xd4] sm:$0xf] %vm3593, %v3563
        %3629 = vst [vmem:[%s339 + $0xd8] sm:$0xff] %v3564
        %3630 = vst.msk [vmem:[%s339 + $0xe0] sm:$0xf] %vm3593, %v3565
        %3631 = vst [vmem:[%s339 + $0xe4] sm:$0xff] %v3566
        %3632 = vst.msk [vmem:[%s339 + $0xec] sm:$0xf] %vm3593, %v3567
        %3633 = vst [vmem:[%s339 + $0xf0] sm:$0xff] %v3568
        %3634 = vst.msk [vmem:[%s339 + $0xf8] sm:$0xf] %vm3593, %v3569
        %3635 = vst [vmem:[%s339 + $0xfc] sm:$0xff] %v3570
        %3636 = vst.msk [vmem:[%s339 + $0x104] sm:$0xf] %vm3593, %v3571
        %3637 = vst [vmem:[%s339 + $0x108] sm:$0xff] %v3572
        %3638 = vst.msk [vmem:[%s339 + $0x110] sm:$0xf] %vm3593, %v3573
        %3639 = vst [vmem:[%s339 + $0x114] sm:$0xff] %v3574
        %3640 = vst.msk [vmem:[%s339 + $0x11c] sm:$0xf] %vm3593, %v3575
        %3641 = vst [vmem:[%s339 + $0x120] sm:$0xff] %v3576
        %3642 = vst.msk [vmem:[%s339 + $0x128] sm:$0xf] %vm3593, %v3577
        %3643 = vst [vmem:[%s339 + $0x12c] sm:$0xff] %v3578
        %3644 = vst.msk [vmem:[%s339 + $0x134] sm:$0xf] %vm3593, %v3579
        %3645 = vst [vmem:[%s339 + $0x138] sm:$0xff] %v3580
        %3646 = vst.msk [vmem:[%s339 + $0x140] sm:$0xf] %vm3593, %v3581
        %3647 = vst [vmem:[%s339 + $0x144] sm:$0xff] %v3582
        %3648 = vst.msk [vmem:[%s339 + $0x14c] sm:$0xf] %vm3593, %v3583
        %3649 = vst [vmem:[%s339 + $0x150] sm:$0xff] %v3584
        %3650 = vst.msk [vmem:[%s339 + $0x158] sm:$0xf] %vm3593, %v3585
        %3651 = vst [vmem:[%s339 + $0x15c] sm:$0xff] %v3586
        %3652 = vst.msk [vmem:[%s339 + $0x164] sm:$0xf] %vm3593, %v3587
        %3653 = vst [vmem:[%s339 + $0x168] sm:$0xff] %v3588
        %3654 = vst.msk [vmem:[%s339 + $0x170] sm:$0xf] %vm3593, %v3589
        %3655 = vst [vmem:[%s339 + $0x174] sm:$0xff] %v3590
        %3656 = vst.msk [vmem:[%s339 + $0x17c] sm:$0xf] %vm3593, %v3591
        %s3657 = sand.u32 %s222, 1
        %s3658 = sand.u32 %s222, 1
        %s3659 = smul.addr %s3658, 384
        %s3660 = scalar_lea.vmem [#allocation2], %s3659
        // Predicated region
        $region57: #{sae_forward.1} parent=55 // pred_check
          %p3661 = pneg %p232
        $region58: #{sae_forward.1} parent=55 // pred_check_branch
          %3663 = sbr.rel (%p3661) target = $region60
        $region59: #{sae_forward.1} parent=55 // pred_region
          %s3664 = smul.u32 32, %s20
          %s3665 = ssub.s32 63, %s3664
          %p3666 = scmp.lt.s32.totalorder %s3665, 32
          %s3667 = scalar_select %p3666, %s3665, 32
          %s3668 = smul.u32 4, %s3667
          %s3669 = smul.u32 %s3668, 3
          %p3670 = scmp.ne.s32.totalorder 0, %s3669
          %s3671 = smul.addr %s3664, 3
          %s3672 = smul.addr %s3671, 4
          %s3673 = scalar_lea.vmem %s9, %s3672
          // Predicated region
          $region61: #{sae_forward.1} parent=59 // pred_check
            %p3674 = pneg %p3670
          $region62: #{sae_forward.1} parent=59 // pred_check_branch
            %3676 = sbr.rel (%p3674) target = $region64
          $region63: #{sae_forward.1} parent=59 // pred_region
            // Predicated region
            $region65: #{sae_forward.1} parent=63 // pred_check
              _
            $region66: #{sae_forward.1} parent=63 // pred_check_branch
              %3678 = sbr.rel (0) target = $region68
            $region67: #{sae_forward.1} parent=63 // pred_region
              %s3679 = scalar_lea.vmem %s3660, 8 [#allocation2]
              %s3680 = scalar_lea.vmem %s3673, 8
              %s3681 = sshrl.u32 %s3667, 5
              // While loop
              $region69: #{sae_forward.1} parent=67 // loop_pre_header
                _
              $region70: #{sae_forward.1} parent=67 // loop_header
                %s3683 = sphi 0, %s3685
                %p3684 = scmp.ge.s32.totalorder %s3683, %s3681
                %s3688 = sphi 0, %s3757
                %s3689 = sphi %s3660, %s3760
                %s3690 = sphi %s3673, %s3761
              $region71: #{sae_forward.1} parent=67 // loop_header_branch
                %3687 = sbr.rel (%p3684) target = $region75
              $region72: #{sae_forward.1} parent=67 // loop_body
                %v3691 = vld [vmem:[%s3689] sm:$0xff]
                %3692 = vst [vmem:[%s3690] sm:$0xff] %v3691
                %v3693 = vld [vmem:[%s3689 + $0xc] sm:$0xff]
                %3694 = vst [vmem:[%s3690 + $0xc] sm:$0xff] %v3693
                %v3695 = vld [vmem:[%s3689 + $0x18] sm:$0xff]
                %3696 = vst [vmem:[%s3690 + $0x18] sm:$0xff] %v3695
                %v3697 = vld [vmem:[%s3689 + $0x24] sm:$0xff]
                %3698 = vst [vmem:[%s3690 + $0x24] sm:$0xff] %v3697
                %v3699 = vld [vmem:[%s3689 + $0x30] sm:$0xff]
                %3700 = vst [vmem:[%s3690 + $0x30] sm:$0xff] %v3699
                %v3701 = vld [vmem:[%s3689 + $0x3c] sm:$0xff]
                %3702 = vst [vmem:[%s3690 + $0x3c] sm:$0xff] %v3701
                %v3703 = vld [vmem:[%s3689 + $0x48] sm:$0xff]
                %3704 = vst [vmem:[%s3690 + $0x48] sm:$0xff] %v3703
                %v3705 = vld [vmem:[%s3689 + $0x54] sm:$0xff]
                %3706 = vst [vmem:[%s3690 + $0x54] sm:$0xff] %v3705
                %v3707 = vld [vmem:[%s3689 + $0x60] sm:$0xff]
                %3708 = vst [vmem:[%s3690 + $0x60] sm:$0xff] %v3707
                %v3709 = vld [vmem:[%s3689 + $0x6c] sm:$0xff]
                %3710 = vst [vmem:[%s3690 + $0x6c] sm:$0xff] %v3709
                %v3711 = vld [vmem:[%s3689 + $0x78] sm:$0xff]
                %3712 = vst [vmem:[%s3690 + $0x78] sm:$0xff] %v3711
                %v3713 = vld [vmem:[%s3689 + $0x84] sm:$0xff]
                %3714 = vst [vmem:[%s3690 + $0x84] sm:$0xff] %v3713
                %v3715 = vld [vmem:[%s3689 + $0x90] sm:$0xff]
                %3716 = vst [vmem:[%s3690 + $0x90] sm:$0xff] %v3715
                %v3717 = vld [vmem:[%s3689 + $0x9c] sm:$0xff]
                %3718 = vst [vmem:[%s3690 + $0x9c] sm:$0xff] %v3717
                %v3719 = vld [vmem:[%s3689 + $0xa8] sm:$0xff]
                %3720 = vst [vmem:[%s3690 + $0xa8] sm:$0xff] %v3719
                %v3721 = vld [vmem:[%s3689 + $0xb4] sm:$0xff]
                %3722 = vst [vmem:[%s3690 + $0xb4] sm:$0xff] %v3721
                %v3723 = vld [vmem:[%s3689 + $0xc0] sm:$0xff]
                %3724 = vst [vmem:[%s3690 + $0xc0] sm:$0xff] %v3723
                %v3725 = vld [vmem:[%s3689 + $0xcc] sm:$0xff]
                %3726 = vst [vmem:[%s3690 + $0xcc] sm:$0xff] %v3725
                %v3727 = vld [vmem:[%s3689 + $0xd8] sm:$0xff]
                %3728 = vst [vmem:[%s3690 + $0xd8] sm:$0xff] %v3727
                %v3729 = vld [vmem:[%s3689 + $0xe4] sm:$0xff]
                %3730 = vst [vmem:[%s3690 + $0xe4] sm:$0xff] %v3729
                %v3731 = vld [vmem:[%s3689 + $0xf0] sm:$0xff]
                %3732 = vst [vmem:[%s3690 + $0xf0] sm:$0xff] %v3731
                %v3733 = vld [vmem:[%s3689 + $0xfc] sm:$0xff]
                %3734 = vst [vmem:[%s3690 + $0xfc] sm:$0xff] %v3733
                %v3735 = vld [vmem:[%s3689 + $0x108] sm:$0xff]
                %3736 = vst [vmem:[%s3690 + $0x108] sm:$0xff] %v3735
                %v3737 = vld [vmem:[%s3689 + $0x114] sm:$0xff]
                %3738 = vst [vmem:[%s3690 + $0x114] sm:$0xff] %v3737
                %v3739 = vld [vmem:[%s3689 + $0x120] sm:$0xff]
                %3740 = vst [vmem:[%s3690 + $0x120] sm:$0xff] %v3739
                %v3741 = vld [vmem:[%s3689 + $0x12c] sm:$0xff]
                %3742 = vst [vmem:[%s3690 + $0x12c] sm:$0xff] %v3741
                %v3743 = vld [vmem:[%s3689 + $0x138] sm:$0xff]
                %3744 = vst [vmem:[%s3690 + $0x138] sm:$0xff] %v3743
                %v3745 = vld [vmem:[%s3689 + $0x144] sm:$0xff]
                %3746 = vst [vmem:[%s3690 + $0x144] sm:$0xff] %v3745
                %v3747 = vld [vmem:[%s3689 + $0x150] sm:$0xff]
                %3748 = vst [vmem:[%s3690 + $0x150] sm:$0xff] %v3747
                %v3749 = vld [vmem:[%s3689 + $0x15c] sm:$0xff]
                %3750 = vst [vmem:[%s3690 + $0x15c] sm:$0xff] %v3749
                %v3751 = vld [vmem:[%s3689 + $0x168] sm:$0xff]
                %3752 = vst [vmem:[%s3690 + $0x168] sm:$0xff] %v3751
                %v3753 = vld [vmem:[%s3689 + $0x174] sm:$0xff]
                %3754 = vst [vmem:[%s3690 + $0x174] sm:$0xff] %v3753
                %s3755 = sadd.s32 1, %s3688
                %p3756 = scmp.ge.s32.totalorder %s3755, %s3681
                %s3757 = scalar_select %p3756, 0, %s3755
                %s3758 = smul.u32 %s3757, 384
                %s3759 = smul.u32 %s3757, 384
                %s3760 = scalar_lea.vmem %s3660, %s3758 [#allocation2]
                %s3761 = scalar_lea.vmem %s3673, %s3759
              $region73: #{sae_forward.1} parent=67 // loop_footer
                %s3685 = sadd.s32 %s3683, 1
              $region74: #{sae_forward.1} parent=67 // loop_footer_branch
                %3682 = sbr.rel target = $region70
              $region75: #{sae_forward.1} parent=67 // loop_exit
                _
              %s3762 = sshrl.u32 %s3667, 5
              %s3763 = sand.u32 %s3667, 31
              %s3764 = smul.u32 %s3762, 32
              %s3765 = smul.u32 12, %s3764
              %s3766 = scalar_lea.vmem %s3660, %s3765 [#allocation2]
              %s3767 = smul.u32 12, %s3764
              %s3768 = scalar_lea.vmem %s3673, %s3767
              // While loop
              $region76: #{sae_forward.1} parent=67 // loop_pre_header
                _
              $region77: #{sae_forward.1} parent=67 // loop_header
                %s3770 = sphi 0, %s3772
                %p3771 = scmp.ge.s32.totalorder %s3770, %s3763
                %s3775 = sphi 0, %s3782
                %s3776 = sphi %s3766, %s3785
                %s3777 = sphi %s3768, %s3786
              $region78: #{sae_forward.1} parent=67 // loop_header_branch
                %3774 = sbr.rel (%p3771) target = $region82
              $region79: #{sae_forward.1} parent=67 // loop_body
                %v3778 = vld [vmem:[%s3776] sm:$0xff]
                %3779 = vst [vmem:[%s3777] sm:$0xff] %v3778
                %s3780 = sadd.s32 1, %s3775
                %p3781 = scmp.ge.s32.totalorder %s3780, %s3763
                %s3782 = scalar_select %p3781, 0, %s3780
                %s3783 = smul.u32 %s3782, 12
                %s3784 = smul.u32 %s3782, 12
                %s3785 = scalar_lea.vmem %s3766, %s3783 [#allocation2]
                %s3786 = scalar_lea.vmem %s3768, %s3784
              $region80: #{sae_forward.1} parent=67 // loop_footer
                %s3772 = sadd.s32 %s3770, 1
              $region81: #{sae_forward.1} parent=67 // loop_footer_branch
                %3769 = sbr.rel target = $region77
              $region82: #{sae_forward.1} parent=67 // loop_exit
                _
              %s3788 = ssub.s32 16, 1
              %s3789 = sshrl.u32 %s3667, 5
              // While loop
              $region83: #{sae_forward.1} parent=67 // loop_pre_header
                _
              $region84: #{sae_forward.1} parent=67 // loop_header
                %s3791 = sphi 0, %s3793
                %p3792 = scmp.ge.s32.totalorder %s3791, %s3789
                %s3796 = sphi 0, %s3865
                %s3797 = sphi %s3679, %s3868
                %s3798 = sphi %s3680, %s3869
              $region85: #{sae_forward.1} parent=67 // loop_header_branch
                %3795 = sbr.rel (%p3792) target = $region89
              $region86: #{sae_forward.1} parent=67 // loop_body
                %v3799 = vld [vmem:[%s3797] sm:%s3788]
                %3800 = vst [vmem:[%s3798] sm:%s3788] %v3799
                %v3801 = vld [vmem:[%s3797 + $0xc] sm:%s3788]
                %3802 = vst [vmem:[%s3798 + $0xc] sm:%s3788] %v3801
                %v3803 = vld [vmem:[%s3797 + $0x18] sm:%s3788]
                %3804 = vst [vmem:[%s3798 + $0x18] sm:%s3788] %v3803
                %v3805 = vld [vmem:[%s3797 + $0x24] sm:%s3788]
                %3806 = vst [vmem:[%s3798 + $0x24] sm:%s3788] %v3805
                %v3807 = vld [vmem:[%s3797 + $0x30] sm:%s3788]
                %3808 = vst [vmem:[%s3798 + $0x30] sm:%s3788] %v3807
                %v3809 = vld [vmem:[%s3797 + $0x3c] sm:%s3788]
                %3810 = vst [vmem:[%s3798 + $0x3c] sm:%s3788] %v3809
                %v3811 = vld [vmem:[%s3797 + $0x48] sm:%s3788]
                %3812 = vst [vmem:[%s3798 + $0x48] sm:%s3788] %v3811
                %v3813 = vld [vmem:[%s3797 + $0x54] sm:%s3788]
                %3814 = vst [vmem:[%s3798 + $0x54] sm:%s3788] %v3813
                %v3815 = vld [vmem:[%s3797 + $0x60] sm:%s3788]
                %3816 = vst [vmem:[%s3798 + $0x60] sm:%s3788] %v3815
                %v3817 = vld [vmem:[%s3797 + $0x6c] sm:%s3788]
                %3818 = vst [vmem:[%s3798 + $0x6c] sm:%s3788] %v3817
                %v3819 = vld [vmem:[%s3797 + $0x78] sm:%s3788]
                %3820 = vst [vmem:[%s3798 + $0x78] sm:%s3788] %v3819
                %v3821 = vld [vmem:[%s3797 + $0x84] sm:%s3788]
                %3822 = vst [vmem:[%s3798 + $0x84] sm:%s3788] %v3821
                %v3823 = vld [vmem:[%s3797 + $0x90] sm:%s3788]
                %3824 = vst [vmem:[%s3798 + $0x90] sm:%s3788] %v3823
                %v3825 = vld [vmem:[%s3797 + $0x9c] sm:%s3788]
                %3826 = vst [vmem:[%s3798 + $0x9c] sm:%s3788] %v3825
                %v3827 = vld [vmem:[%s3797 + $0xa8] sm:%s3788]
                %3828 = vst [vmem:[%s3798 + $0xa8] sm:%s3788] %v3827
                %v3829 = vld [vmem:[%s3797 + $0xb4] sm:%s3788]
                %3830 = vst [vmem:[%s3798 + $0xb4] sm:%s3788] %v3829
                %v3831 = vld [vmem:[%s3797 + $0xc0] sm:%s3788]
                %3832 = vst [vmem:[%s3798 + $0xc0] sm:%s3788] %v3831
                %v3833 = vld [vmem:[%s3797 + $0xcc] sm:%s3788]
                %3834 = vst [vmem:[%s3798 + $0xcc] sm:%s3788] %v3833
                %v3835 = vld [vmem:[%s3797 + $0xd8] sm:%s3788]
                %3836 = vst [vmem:[%s3798 + $0xd8] sm:%s3788] %v3835
                %v3837 = vld [vmem:[%s3797 + $0xe4] sm:%s3788]
                %3838 = vst [vmem:[%s3798 + $0xe4] sm:%s3788] %v3837
                %v3839 = vld [vmem:[%s3797 + $0xf0] sm:%s3788]
                %3840 = vst [vmem:[%s3798 + $0xf0] sm:%s3788] %v3839
                %v3841 = vld [vmem:[%s3797 + $0xfc] sm:%s3788]
                %3842 = vst [vmem:[%s3798 + $0xfc] sm:%s3788] %v3841
                %v3843 = vld [vmem:[%s3797 + $0x108] sm:%s3788]
                %3844 = vst [vmem:[%s3798 + $0x108] sm:%s3788] %v3843
                %v3845 = vld [vmem:[%s3797 + $0x114] sm:%s3788]
                %3846 = vst [vmem:[%s3798 + $0x114] sm:%s3788] %v3845
                %v3847 = vld [vmem:[%s3797 + $0x120] sm:%s3788]
                %3848 = vst [vmem:[%s3798 + $0x120] sm:%s3788] %v3847
                %v3849 = vld [vmem:[%s3797 + $0x12c] sm:%s3788]
                %3850 = vst [vmem:[%s3798 + $0x12c] sm:%s3788] %v3849
                %v3851 = vld [vmem:[%s3797 + $0x138] sm:%s3788]
                %3852 = vst [vmem:[%s3798 + $0x138] sm:%s3788] %v3851
                %v3853 = vld [vmem:[%s3797 + $0x144] sm:%s3788]
                %3854 = vst [vmem:[%s3798 + $0x144] sm:%s3788] %v3853
                %v3855 = vld [vmem:[%s3797 + $0x150] sm:%s3788]
                %3856 = vst [vmem:[%s3798 + $0x150] sm:%s3788] %v3855
                %v3857 = vld [vmem:[%s3797 + $0x15c] sm:%s3788]
                %3858 = vst [vmem:[%s3798 + $0x15c] sm:%s3788] %v3857
                %v3859 = vld [vmem:[%s3797 + $0x168] sm:%s3788]
                %3860 = vst [vmem:[%s3798 + $0x168] sm:%s3788] %v3859
                %v3861 = vld [vmem:[%s3797 + $0x174] sm:%s3788]
                %3862 = vst [vmem:[%s3798 + $0x174] sm:%s3788] %v3861
                %s3863 = sadd.s32 1, %s3796
                %p3864 = scmp.ge.s32.totalorder %s3863, %s3789
                %s3865 = scalar_select %p3864, 0, %s3863
                %s3866 = smul.u32 %s3865, 384
                %s3867 = smul.u32 %s3865, 384
                %s3868 = scalar_lea.vmem %s3679, %s3866 [#allocation2]
                %s3869 = scalar_lea.vmem %s3680, %s3867
              $region87: #{sae_forward.1} parent=67 // loop_footer
                %s3793 = sadd.s32 %s3791, 1
              $region88: #{sae_forward.1} parent=67 // loop_footer_branch
                %3790 = sbr.rel target = $region84
              $region89: #{sae_forward.1} parent=67 // loop_exit
                _
              %s3870 = sshrl.u32 %s3667, 5
              %s3871 = sand.u32 %s3667, 31
              %s3872 = smul.u32 %s3870, 32
              %s3873 = smul.u32 12, %s3872
              %s3874 = scalar_lea.vmem %s3679, %s3873 [#allocation2]
              %s3875 = smul.u32 12, %s3872
              %s3876 = scalar_lea.vmem %s3680, %s3875
              // While loop
              $region90: #{sae_forward.1} parent=67 // loop_pre_header
                _
              $region91: #{sae_forward.1} parent=67 // loop_header
                %s3878 = sphi 0, %s3880
                %p3879 = scmp.ge.s32.totalorder %s3878, %s3871
                %s3883 = sphi 0, %s3890
                %s3884 = sphi %s3874, %s3893
                %s3885 = sphi %s3876, %s3894
              $region92: #{sae_forward.1} parent=67 // loop_header_branch
                %3882 = sbr.rel (%p3879) target = $region96
              $region93: #{sae_forward.1} parent=67 // loop_body
                %v3886 = vld [vmem:[%s3884] sm:%s3788]
                %3887 = vst [vmem:[%s3885] sm:%s3788] %v3886
                %s3888 = sadd.s32 1, %s3883
                %p3889 = scmp.ge.s32.totalorder %s3888, %s3871
                %s3890 = scalar_select %p3889, 0, %s3888
                %s3891 = smul.u32 %s3890, 12
                %s3892 = smul.u32 %s3890, 12
                %s3893 = scalar_lea.vmem %s3874, %s3891 [#allocation2]
                %s3894 = scalar_lea.vmem %s3876, %s3892
              $region94: #{sae_forward.1} parent=67 // loop_footer
                %s3880 = sadd.s32 %s3878, 1
              $region95: #{sae_forward.1} parent=67 // loop_footer_branch
                %3877 = sbr.rel target = $region91
              $region96: #{sae_forward.1} parent=67 // loop_exit
                _
            $region68: #{sae_forward.1} parent=63 // pred_fallthru
              _
          $region64: #{sae_forward.1} parent=59 // pred_fallthru
            _
          %3895 = vnop
        $region60: #{sae_forward.1} parent=55 // pred_fallthru
          _
      $region56: #{sae_forward.1} parent=5 // pred_fallthru
        _
      %p3896 = scmp.le.s32.totalorder 2, %s15
      // Predicated region
      $region97: #{sae_forward.1} parent=5 // pred_check
        %p3897 = pneg %p3896
      $region98: #{sae_forward.1} parent=5 // pred_check_branch
        %3899 = sbr.rel (%p3897) target = $region100
      $region99: #{sae_forward.1} parent=5 // pred_region
        %s3900 = ssub.s32 %s15, 2
        // Predicated region
        $region101: #{sae_forward.1} parent=99 // pred_check
          %p3901 = pneg %p238
        $region102: #{sae_forward.1} parent=99 // pred_check_branch
          %3903 = sbr.rel (%p3901) target = $region104
        $region103: #{sae_forward.1} parent=99 // pred_region
          %s3904 = sand.u32 %s223, 1
          %s3905 = sand.u32 %s223, 1
          %s3906 = smul.addr %s3905, 384
          %s3907 = scalar_lea.vmem [#allocation2], %s3906
        $region104: #{sae_forward.1} parent=99 // pred_fallthru
          _
      $region100: #{sae_forward.1} parent=5 // pred_fallthru
        _
    $region6: #{sae_forward.1} parent=1 // loop_footer
      %s19 = sadd.s32 1, %s15
    $region7: #{sae_forward.1} parent=1 // loop_footer_branch
      %14 = sbr.rel target = $region3
    $region8: #{sae_forward.1} parent=1 // loop_exit
      _

</llo_original>
